<compile_context>
chip_gen: v5e
topology: v5e:2x2
jax: 0.10.0
libtpu: 0.0.40
codegen_flags: <defaults>
</compile_context>

<pallas_src>
import functools
import numpy as np

import jax
import jax.numpy as jnp
from jax import lax
from jax.experimental import pallas as pl
from jax.experimental.pallas import tpu as pltpu  # noqa: F401  (kept for clarity)

EPS = 1e-6
NEG_INF = -1e9


# ----------------------------------------------------------------------------
# In-kernel helpers
# ----------------------------------------------------------------------------
def _layer_norm(x, gamma, beta):
    # PyTorch nn.LayerNorm(d_model, eps=1e-6): biased variance over last dim.
    mean = jnp.mean(x, axis=-1, keepdims=True)
    var = jnp.mean((x - mean) ** 2, axis=-1, keepdims=True)
    return (x - mean) * lax.rsqrt(var + EPS) * gamma + beta


def _softmax_rows(s):
    # Manual softmax: exp + approx reciprocal go to the EUP slot.
    m = jnp.max(s, axis=-1, keepdims=True)
    e = jnp.exp(s - m)
    denom = jnp.sum(e, axis=-1, keepdims=True)
    return e * pl.reciprocal(denom, approx=True)


# ----------------------------------------------------------------------------
# Single fused decoder kernel (posenc + LN + all layers)
# ----------------------------------------------------------------------------
def decoder_kernel(x_ref, pos_ref, enc_ref, trg_bias_ref, src_bias_ref,
                   ln_g_ref, ln_b_ref,
                   slf_wqkv_ref, slf_wo_ref, slf_g_ref, slf_b_ref,
                   enc_wq_ref, enc_wkv_ref, enc_wo_ref, enc_g_ref, enc_b_ref,
                   w1_ref, b1_ref, w2_ref, b2_ref, ffn_g_ref, ffn_b_ref,
                   o_ref,
                   *, B, Lq, Lk, n_layers, n_head, d_k, d_v, d_model):
    HDK = n_head * d_k
    HDV = n_head * d_v
    scale = 1.0 / (d_k ** 0.5)

    # --- positional encoding add (broadcast over batch) + top LayerNorm ------
    x3 = x_ref[...].reshape(B, Lq, d_model) + pos_ref[...][None, :, :]
    x = _layer_norm(x3.reshape(B * Lq, d_model), ln_g_ref[...], ln_b_ref[...])

    enc = enc_ref[...]                                  # (B*Lk, D)
    trg_bias = trg_bias_ref[...]                        # (B, Lq, Lq) additive {0,-1e9}
    src_bias = src_bias_ref[...]                        # (B, 1,  Lk) additive {0,-1e9}

    def attention(q, k, v, residual, wo, gamma, beta, bias, Lkv):
        # q: (B*Lq, HDK), k: (B*Lkv, HDK), v: (B*Lkv, HDV) -- q already scaled.
        q3 = q.reshape(B, Lq, HDK)
        k3 = k.reshape(B, Lkv, HDK)
        v3 = v.reshape(B, Lkv, HDV)
        out = None
        for h in range(n_head):                         # static unroll over heads
            qh = q3[:, :, h * d_k:(h + 1) * d_k]
            kh = k3[:, :, h * d_k:(h + 1) * d_k]
            vh = v3[:, :, h * d_v:(h + 1) * d_v]
            s = jnp.einsum('bqd,bkd->bqk', qh, kh,
                           preferred_element_type=jnp.float32)      # (B,Lq,Lkv)
            s = s + bias                                             # masked_fill
            attn = _softmax_rows(s)
            ctx = jnp.einsum('bqk,bkd->bqd', attn, vh,
                             preferred_element_type=jnp.float32)    # (B,Lq,dv)
            # accumulate each head directly into the output projection
            proj = jnp.dot(ctx.reshape(B * Lq, d_v),
                           wo[h * d_v:(h + 1) * d_v, :],
                           preferred_element_type=jnp.float32)      # (B*Lq, D)
            out = proj if out is None else out + proj
        return _layer_norm(out + residual, gamma, beta)

    for l in range(n_layers):                           # static unroll over layers
        # ---------------- masked self-attention ----------------
        qkv = jnp.dot(x, slf_wqkv_ref[l], preferred_element_type=jnp.float32)
        q = qkv[:, :HDK] * scale                        # scale applied once
        k = qkv[:, HDK:2 * HDK]
        v = qkv[:, 2 * HDK:]
        x = attention(q, k, v, x, slf_wo_ref[l], slf_g_ref[l], slf_b_ref[l],
                      trg_bias, Lq)

        # ---------------- encoder-decoder attention ----------------
        q = jnp.dot(x, enc_wq_ref[l], preferred_element_type=jnp.float32) * scale
        kv = jnp.dot(enc, enc_wkv_ref[l], preferred_element_type=jnp.float32)
        k = kv[:, :HDK]
        v = kv[:, HDK:]
        x = attention(q, k, v, x, enc_wo_ref[l], enc_g_ref[l], enc_b_ref[l],
                      src_bias, Lk)

        # ---------------- position-wise feed-forward ----------------
        h1 = jnp.maximum(
            jnp.dot(x, w1_ref[l], preferred_element_type=jnp.float32) + b1_ref[l],
            0.0)
        y = jnp.dot(h1, w2_ref[l], preferred_element_type=jnp.float32) + b2_ref[l] + x
        x = _layer_norm(y, ffn_g_ref[l], ffn_b_ref[l])

    o_ref[...] = x


# ----------------------------------------------------------------------------
# Wrapper: padding / flattening glue + single pallas_call
# ----------------------------------------------------------------------------
def _round_up(n, m):
    return ((n + m - 1) // m) * m


def _pad_axis(a, axis, target):
    pad = target - a.shape[axis]
    if pad == 0:
        return a
    widths = [(0, 0)] * a.ndim
    widths[axis] = (0, pad)
    return jnp.pad(a, widths)


def decoder_forward(trg_seq, trg_mask, enc_output, src_mask, params, *,
                    n_head, d_k, d_v, d_model, scale_emb=False):
    B, L = trg_seq.shape
    Ls = enc_output.shape[1]
    D = d_model
    n_layers = params['slf_wqkv'].shape[0]

    # pad sequence dims up to sublane multiples; padded keys are masked out and
    # padded query rows are sliced away, so semantics are unchanged
    Lp = _round_up(L, 8)
    Lsp = _round_up(Ls, 8)

    # embedding lookup (vocab gather) -- plain JAX glue
    x = jnp.take(params['emb'], trg_seq, axis=0)                   # (B, L, D)
    if scale_emb:
        x = x * (d_model ** 0.5)
    # dropout == identity in eval mode

    x = _pad_axis(x, 1, Lp).reshape(B * Lp, D)
    enc = _pad_axis(enc_output, 1, Lsp).reshape(B * Lsp, D)

    # masks -> additive {0, -1e9} biases (pad the boolean mask FIRST so padded
    # keys end up masked out)
    trg_mask_f = jnp.broadcast_to(trg_mask, (B, L, L)).astype(jnp.float32)
    trg_mask_f = _pad_axis(_pad_axis(trg_mask_f, 1, Lp), 2, Lp)    # (B, Lp, Lp)
    trg_bias = jnp.where(trg_mask_f > 0, 0.0, NEG_INF).astype(jnp.float32)

    src_mask_f = jnp.broadcast_to(src_mask, (B, 1, Ls)).astype(jnp.float32)
    src_mask_f = _pad_axis(src_mask_f, 2, Lsp)                     # (B, 1, Lsp)
    src_bias = jnp.where(src_mask_f > 0, 0.0, NEG_INF).astype(jnp.float32)

    pos = params['pos_table'][:Lp]                                 # (Lp, D)

    kern = functools.partial(
        decoder_kernel, B=B, Lq=Lp, Lk=Lsp, n_layers=n_layers,
        n_head=n_head, d_k=d_k, d_v=d_v, d_model=d_model)

    out = pl.pallas_call(
        kern,
        out_shape=jax.ShapeDtypeStruct((B * Lp, D), jnp.float32),
    )(x, pos, enc, trg_bias, src_bias,
      params['ln_g'], params['ln_b'],
      params['slf_wqkv'], params['slf_wo'], params['slf_g'], params['slf_b'],
      params['enc_wq'], params['enc_wkv'], params['enc_wo'],
      params['enc_g'], params['enc_b'],
      params['w1'], params['b1'], params['w2'], params['b2'],
      params['ffn_g'], params['ffn_b'])

    return out.reshape(B, Lp, D)[:, :L, :]


# ----------------------------------------------------------------------------
# Parameter construction (deterministic, synthetic)
# ----------------------------------------------------------------------------
def sinusoid_table(n_position, d_hid):
    pos = np.arange(n_position)[:, None].astype(np.float64)
    j = np.arange(d_hid)[None, :]
    angle = pos / np.power(10000.0, 2 * (j // 2) / d_hid)
    table = np.zeros((n_position, d_hid), dtype=np.float64)
    table[:, 0::2] = np.sin(angle[:, 0::2])
    table[:, 1::2] = np.cos(angle[:, 1::2])
    return table.astype(np.float32)


def init_params(key, n_trg_vocab, d_word_vec, n_layers, n_head, d_k, d_v,
                d_model, d_inner, pad_idx, n_position):
    keys = jax.random.split(key, 1 + n_layers)
    emb = 0.02 * jax.random.normal(keys[0], (n_trg_vocab, d_word_vec), jnp.float32)
    emb = emb.at[pad_idx].set(0.0)  # padding_idx row is zero

    def lin(k, shape):
        return 0.05 * jax.random.normal(k, shape, jnp.float32)

    names = ['slf_wqkv', 'slf_wo', 'slf_g', 'slf_b',
             'enc_wq', 'enc_wkv', 'enc_wo', 'enc_g', 'enc_b',
             'w1', 'b1', 'w2', 'b2', 'ffn_g', 'ffn_b']
    per = {n: [] for n in names}

    for i in range(n_layers):
        lk = jax.random.split(keys[1 + i], 12)
        # self-attention (no-bias linears, as in the reference repo); fused QKV
        slf_wq = lin(lk[0], (d_model, n_head * d_k))
        slf_wk = lin(lk[1], (d_model, n_head * d_k))
        slf_wv = lin(lk[2], (d_model, n_head * d_v))
        per['slf_wqkv'].append(jnp.concatenate([slf_wq, slf_wk, slf_wv], axis=1))
        per['slf_wo'].append(lin(lk[3], (n_head * d_v, d_model)))
        per['slf_g'].append(jnp.ones((1, d_model), jnp.float32))
        per['slf_b'].append(jnp.zeros((1, d_model), jnp.float32))
        # encoder-decoder attention; fused KV
        per['enc_wq'].append(lin(lk[4], (d_model, n_head * d_k)))
        enc_wk = lin(lk[5], (d_model, n_head * d_k))
        enc_wv = lin(lk[6], (d_model, n_head * d_v))
        per['enc_wkv'].append(jnp.concatenate([enc_wk, enc_wv], axis=1))
        per['enc_wo'].append(lin(lk[7], (n_head * d_v, d_model)))
        per['enc_g'].append(jnp.ones((1, d_model), jnp.float32))
        per['enc_b'].append(jnp.zeros((1, d_model), jnp.float32))
        # position-wise FFN (with bias)
        per['w1'].append(lin(lk[8], (d_model, d_inner)))
        per['b1'].append(0.05 * jax.random.normal(lk[9], (1, d_inner), jnp.float32))
        per['w2'].append(lin(lk[10], (d_inner, d_model)))
        per['b2'].append(0.05 * jax.random.normal(lk[11], (1, d_model), jnp.float32))
        per['ffn_g'].append(jnp.ones((1, d_model), jnp.float32))
        per['ffn_b'].append(jnp.zeros((1, d_model), jnp.float32))

    params = {n: jnp.stack(v, axis=0) for n, v in per.items()}  # leading n_layers axis
    params['emb'] = emb
    params['pos_table'] = jnp.asarray(sinusoid_table(n_position, d_word_vec))
    params['ln_g'] = jnp.ones((1, d_model), jnp.float32)
    params['ln_b'] = jnp.zeros((1, d_model), jnp.float32)
    return params


# ----------------------------------------------------------------------------
# Main
# ----------------------------------------------------------------------------
if __name__ == "__main__":
    # Hyperparameters implied by Decoder.__init__
    n_trg_vocab = 20
    d_word_vec = d_model = 32
    n_layers = 2
    n_head = 2
    d_k = d_v = 16
    d_inner = 64
    pad_idx = 0
    n_position = 200

    B, L_trg, L_src = 2, 8, 10

    key = jax.random.PRNGKey(0)
    k_par, k_enc = jax.random.split(key)

    params = init_params(k_par, n_trg_vocab, d_word_vec, n_layers, n_head,
                         d_k, d_v, d_model, d_inner, pad_idx, n_position)

    # deterministic inputs
    trg_seq = jnp.array([[3, 5, 7, 2, 9, 1, 0, 0],
                         [4, 6, 8, 2, 0, 0, 0, 0]], dtype=jnp.int32)   # (B, L_trg)
    enc_output = jax.random.normal(k_enc, (B, L_src, d_model), jnp.float32)

    # masks as in the reference training script: pad mask & subsequent mask
    pad_mask = (trg_seq != pad_idx)[:, None, :]                        # (B, 1, L)
    subsequent = jnp.tril(jnp.ones((1, L_trg, L_trg), dtype=bool))     # (1, L, L)
    trg_mask = pad_mask & subsequent                                   # (B, L, L)
    src_valid = jnp.array([[True] * 10, [True] * 7 + [False] * 3])
    src_mask = src_valid[:, None, :]                                   # (B, 1, L_src)

    out = decoder_forward(trg_seq, trg_mask, enc_output, src_mask, params,
                          n_head=n_head, d_k=d_k, d_v=d_v, d_model=d_model,
                          scale_emb=False)
    out = jax.block_until_ready(out)

    assert out.shape == (B, L_trg, d_model)
    assert bool(jnp.all(jnp.isfinite(out)))
    print("KERNEL_OK")
</pallas_src>

<mosaic_0001>
module attributes {stable_mosaic.version = 11 : i64} {
  func.func @decoder_kernel(%arg0: memref<16x32xf32, #tpu.memory_space<vmem>>, %arg1: memref<8x32xf32, #tpu.memory_space<vmem>>, %arg2: memref<32x32xf32, #tpu.memory_space<vmem>>, %arg3: memref<2x8x8xf32, #tpu.memory_space<vmem>>, %arg4: memref<2x1x16xf32, #tpu.memory_space<vmem>>, %arg5: memref<1x32xf32, #tpu.memory_space<vmem>>, %arg6: memref<1x32xf32, #tpu.memory_space<vmem>>, %arg7: memref<2x32x96xf32, #tpu.memory_space<vmem>>, %arg8: memref<2x32x32xf32, #tpu.memory_space<vmem>>, %arg9: memref<2x1x32xf32, #tpu.memory_space<vmem>>, %arg10: memref<2x1x32xf32, #tpu.memory_space<vmem>>, %arg11: memref<2x32x32xf32, #tpu.memory_space<vmem>>, %arg12: memref<2x32x64xf32, #tpu.memory_space<vmem>>, %arg13: memref<2x32x32xf32, #tpu.memory_space<vmem>>, %arg14: memref<2x1x32xf32, #tpu.memory_space<vmem>>, %arg15: memref<2x1x32xf32, #tpu.memory_space<vmem>>, %arg16: memref<2x32x64xf32, #tpu.memory_space<vmem>>, %arg17: memref<2x1x64xf32, #tpu.memory_space<vmem>>, %arg18: memref<2x64x32xf32, #tpu.memory_space<vmem>>, %arg19: memref<2x1x32xf32, #tpu.memory_space<vmem>>, %arg20: memref<2x1x32xf32, #tpu.memory_space<vmem>>, %arg21: memref<2x1x32xf32, #tpu.memory_space<vmem>>, %arg22: memref<16x32xf32, #tpu.memory_space<vmem>>) attributes {dimension_semantics = [], scalar_prefetch = 0 : i64, scratch_operands = 0 : i64, tpu.core_type = #tpu.core_type<tc>} {
    %c0 = arith.constant 0 : index
    %c0_0 = arith.constant 0 : index
    %0 = vector.load %arg0[%c0, %c0_0] : memref<16x32xf32, #tpu.memory_space<vmem>>, vector<16x32xf32>
    %1 = vector.shape_cast %0 : vector<16x32xf32> to vector<2x8x32xf32>
    %c0_1 = arith.constant 0 : index
    %c0_2 = arith.constant 0 : index
    %2 = vector.load %arg1[%c0_1, %c0_2] : memref<8x32xf32, #tpu.memory_space<vmem>>, vector<8x32xf32>
    %3 = vector.shape_cast %2 : vector<8x32xf32> to vector<1x8x32xf32>
    %4 = vector.broadcast %3 : vector<1x8x32xf32> to vector<2x8x32xf32>
    %5 = arith.addf %1, %4 : vector<2x8x32xf32>
    %6 = vector.shape_cast %5 : vector<2x8x32xf32> to vector<16x32xf32>
    %c0_3 = arith.constant 0 : index
    %c0_4 = arith.constant 0 : index
    %7 = vector.load %arg5[%c0_3, %c0_4] : memref<1x32xf32, #tpu.memory_space<vmem>>, vector<1x32xf32>
    %c0_5 = arith.constant 0 : index
    %c0_6 = arith.constant 0 : index
    %8 = vector.load %arg6[%c0_5, %c0_6] : memref<1x32xf32, #tpu.memory_space<vmem>>, vector<1x32xf32>
    %cst = arith.constant dense<0.000000e+00> : vector<16xf32>
    %9 = vector.multi_reduction <add>, %6, %cst [1] : vector<16x32xf32> to vector<16xf32>
    %10 = vector.shape_cast %9 : vector<16xf32> to vector<16x1xf32>
    %cst_7 = arith.constant 3.200000e+01 : f32
    %11 = vector.broadcast %cst_7 : f32 to vector<16x1xf32>
    %12 = arith.divf %10, %11 : vector<16x1xf32>
    %13 = vector.broadcast %12 : vector<16x1xf32> to vector<16x32xf32>
    %14 = arith.subf %6, %13 : vector<16x32xf32>
    %15 = arith.mulf %14, %14 : vector<16x32xf32>
    %cst_8 = arith.constant dense<0.000000e+00> : vector<16xf32>
    %16 = vector.multi_reduction <add>, %15, %cst_8 [1] : vector<16x32xf32> to vector<16xf32>
    %17 = vector.shape_cast %16 : vector<16xf32> to vector<16x1xf32>
    %cst_9 = arith.constant 3.200000e+01 : f32
    %18 = vector.broadcast %cst_9 : f32 to vector<16x1xf32>
    %19 = arith.divf %17, %18 : vector<16x1xf32>
    %20 = vector.broadcast %12 : vector<16x1xf32> to vector<16x32xf32>
    %21 = arith.subf %6, %20 : vector<16x32xf32>
    %cst_10 = arith.constant 9.99999997E-7 : f32
    %22 = vector.broadcast %cst_10 : f32 to vector<16x1xf32>
    %23 = arith.addf %19, %22 : vector<16x1xf32>
    %24 = math.rsqrt %23 : vector<16x1xf32>
    %25 = vector.broadcast %24 : vector<16x1xf32> to vector<16x32xf32>
    %26 = arith.mulf %21, %25 : vector<16x32xf32>
    %27 = vector.broadcast %7 : vector<1x32xf32> to vector<16x32xf32>
    %28 = arith.mulf %26, %27 : vector<16x32xf32>
    %29 = vector.broadcast %8 : vector<1x32xf32> to vector<16x32xf32>
    %30 = arith.addf %28, %29 : vector<16x32xf32>
    %c0_11 = arith.constant 0 : index
    %c0_12 = arith.constant 0 : index
    %31 = vector.load %arg2[%c0_11, %c0_12] : memref<32x32xf32, #tpu.memory_space<vmem>>, vector<32x32xf32>
    %c0_13 = arith.constant 0 : index
    %c0_14 = arith.constant 0 : index
    %c0_15 = arith.constant 0 : index
    %32 = vector.load %arg3[%c0_13, %c0_14, %c0_15] : memref<2x8x8xf32, #tpu.memory_space<vmem>>, vector<2x8x8xf32>
    %c0_16 = arith.constant 0 : index
    %c0_17 = arith.constant 0 : index
    %c0_18 = arith.constant 0 : index
    %33 = vector.load %arg4[%c0_16, %c0_17, %c0_18] : memref<2x1x16xf32, #tpu.memory_space<vmem>>, vector<2x1x16xf32>
    %c0_19 = arith.constant 0 : index
    %c0_20 = arith.constant 0 : index
    %c0_21 = arith.constant 0 : index
    %34 = vector.load %arg7[%c0_19, %c0_20, %c0_21] : memref<2x32x96xf32, #tpu.memory_space<vmem>>, vector<1x32x96xf32>
    %35 = vector.shape_cast %34 : vector<1x32x96xf32> to vector<32x96xf32>
    %cst_22 = arith.constant dense<0.000000e+00> : vector<16x96xf32>
    %36 = tpu.matmul %30, %35, %cst_22 {dimension_numbers = #tpu.dot_dimension_numbers<[1], [0], [0], [1], [0, 0, 1, 1], [], []>} : vector<16x32xf32>, vector<32x96xf32>, vector<16x96xf32> -> vector<16x96xf32>
    %37 = vector.extract_strided_slice %36 {offsets = [0, 0], sizes = [16, 32], strides = [1, 1]} : vector<16x96xf32> to vector<16x32xf32>
    %cst_23 = arith.constant 2.500000e-01 : f32
    %38 = vector.broadcast %cst_23 : f32 to vector<16x32xf32>
    %39 = arith.mulf %37, %38 : vector<16x32xf32>
    %40 = vector.extract_strided_slice %36 {offsets = [0, 32], sizes = [16, 32], strides = [1, 1]} : vector<16x96xf32> to vector<16x32xf32>
    %41 = vector.extract_strided_slice %36 {offsets = [0, 64], sizes = [16, 32], strides = [1, 1]} : vector<16x96xf32> to vector<16x32xf32>
    %c0_24 = arith.constant 0 : index
    %c0_25 = arith.constant 0 : index
    %c0_26 = arith.constant 0 : index
    %42 = vector.load %arg8[%c0_24, %c0_25, %c0_26] : memref<2x32x32xf32, #tpu.memory_space<vmem>>, vector<1x32x32xf32>
    %43 = vector.shape_cast %42 : vector<1x32x32xf32> to vector<32x32xf32>
    %c0_27 = arith.constant 0 : index
    %c0_28 = arith.constant 0 : index
    %c0_29 = arith.constant 0 : index
    %44 = vector.load %arg9[%c0_27, %c0_28, %c0_29] : memref<2x1x32xf32, #tpu.memory_space<vmem>>, vector<1x1x32xf32>
    %45 = vector.shape_cast %44 : vector<1x1x32xf32> to vector<1x32xf32>
    %c0_30 = arith.constant 0 : index
    %c0_31 = arith.constant 0 : index
    %c0_32 = arith.constant 0 : index
    %46 = vector.load %arg10[%c0_30, %c0_31, %c0_32] : memref<2x1x32xf32, #tpu.memory_space<vmem>>, vector<1x1x32xf32>
    %47 = vector.shape_cast %46 : vector<1x1x32xf32> to vector<1x32xf32>
    %48 = vector.shape_cast %39 : vector<16x32xf32> to vector<2x8x32xf32>
    %49 = vector.shape_cast %40 : vector<16x32xf32> to vector<2x8x32xf32>
    %50 = vector.shape_cast %41 : vector<16x32xf32> to vector<2x8x32xf32>
    %51 = vector.extract_strided_slice %48 {offsets = [0, 0, 0], sizes = [2, 8, 16], strides = [1, 1, 1]} : vector<2x8x32xf32> to vector<2x8x16xf32>
    %52 = vector.extract_strided_slice %49 {offsets = [0, 0, 0], sizes = [2, 8, 16], strides = [1, 1, 1]} : vector<2x8x32xf32> to vector<2x8x16xf32>
    %53 = vector.extract_strided_slice %50 {offsets = [0, 0, 0], sizes = [2, 8, 16], strides = [1, 1, 1]} : vector<2x8x32xf32> to vector<2x8x16xf32>
    "tpu.trace_start"() <{level = 10 : i32, message = "bqd,bkd->bqk"}> : () -> ()
    %cst_33 = arith.constant dense<0.000000e+00> : vector<2x8x8xf32>
    %54 = tpu.matmul %51, %52, %cst_33 {dimension_numbers = #tpu.dot_dimension_numbers<[2], [2], [1], [1], [0, 0, 0, 1, 1, 1], [0], [0]>} : vector<2x8x16xf32>, vector<2x8x16xf32>, vector<2x8x8xf32> -> vector<2x8x8xf32>
    "tpu.trace_stop"() : () -> ()
    %55 = arith.addf %54, %32 : vector<2x8x8xf32>
    %cst_34 = arith.constant dense<0xFF800000> : vector<2x8xf32>
    %56 = vector.multi_reduction <maximumf>, %55, %cst_34 [2] : vector<2x8x8xf32> to vector<2x8xf32>
    %57 = vector.shape_cast %56 : vector<2x8xf32> to vector<2x8x1xf32>
    %58 = vector.broadcast %57 : vector<2x8x1xf32> to vector<2x8x8xf32>
    %59 = arith.subf %55, %58 : vector<2x8x8xf32>
    %60 = math.exp %59 : vector<2x8x8xf32>
    %cst_35 = arith.constant dense<0.000000e+00> : vector<2x8xf32>
    %61 = vector.multi_reduction <add>, %60, %cst_35 [2] : vector<2x8x8xf32> to vector<2x8xf32>
    %62 = vector.shape_cast %61 : vector<2x8xf32> to vector<2x8x1xf32>
    %63 = tpu.reciprocal %62 {approx = true} : vector<2x8x1xf32> -> vector<2x8x1xf32>
    %64 = vector.broadcast %63 : vector<2x8x1xf32> to vector<2x8x8xf32>
    %65 = arith.mulf %60, %64 : vector<2x8x8xf32>
    "tpu.trace_start"() <{level = 10 : i32, message = "bqk,bkd->bqd"}> : () -> ()
    %cst_36 = arith.constant dense<0.000000e+00> : vector<2x8x16xf32>
    %66 = tpu.matmul %65, %53, %cst_36 {dimension_numbers = #tpu.dot_dimension_numbers<[2], [1], [1], [2], [0, 0, 0, 1, 1, 2], [0], [0]>} : vector<2x8x8xf32>, vector<2x8x16xf32>, vector<2x8x16xf32> -> vector<2x8x16xf32>
    "tpu.trace_stop"() : () -> ()
    %67 = vector.shape_cast %66 : vector<2x8x16xf32> to vector<16x16xf32>
    %68 = vector.extract_strided_slice %43 {offsets = [0, 0], sizes = [16, 32], strides = [1, 1]} : vector<32x32xf32> to vector<16x32xf32>
    %cst_37 = arith.constant dense<0.000000e+00> : vector<16x32xf32>
    %69 = tpu.matmul %67, %68, %cst_37 {dimension_numbers = #tpu.dot_dimension_numbers<[1], [0], [0], [1], [0, 0, 1, 1], [], []>} : vector<16x16xf32>, vector<16x32xf32>, vector<16x32xf32> -> vector<16x32xf32>
    %70 = vector.extract_strided_slice %48 {offsets = [0, 0, 16], sizes = [2, 8, 16], strides = [1, 1, 1]} : vector<2x8x32xf32> to vector<2x8x16xf32>
    %71 = vector.extract_strided_slice %49 {offsets = [0, 0, 16], sizes = [2, 8, 16], strides = [1, 1, 1]} : vector<2x8x32xf32> to vector<2x8x16xf32>
    %72 = vector.extract_strided_slice %50 {offsets = [0, 0, 16], sizes = [2, 8, 16], strides = [1, 1, 1]} : vector<2x8x32xf32> to vector<2x8x16xf32>
    "tpu.trace_start"() <{level = 10 : i32, message = "bqd,bkd->bqk"}> : () -> ()
    %cst_38 = arith.constant dense<0.000000e+00> : vector<2x8x8xf32>
    %73 = tpu.matmul %70, %71, %cst_38 {dimension_numbers = #tpu.dot_dimension_numbers<[2], [2], [1], [1], [0, 0, 0, 1, 1, 1], [0], [0]>} : vector<2x8x16xf32>, vector<2x8x16xf32>, vector<2x8x8xf32> -> vector<2x8x8xf32>
    "tpu.trace_stop"() : () -> ()
    %74 = arith.addf %73, %32 : vector<2x8x8xf32>
    %cst_39 = arith.constant dense<0xFF800000> : vector<2x8xf32>
    %75 = vector.multi_reduction <maximumf>, %74, %cst_39 [2] : vector<2x8x8xf32> to vector<2x8xf32>
    %76 = vector.shape_cast %75 : vector<2x8xf32> to vector<2x8x1xf32>
    %77 = vector.broadcast %76 : vector<2x8x1xf32> to vector<2x8x8xf32>
    %78 = arith.subf %74, %77 : vector<2x8x8xf32>
    %79 = math.exp %78 : vector<2x8x8xf32>
    %cst_40 = arith.constant dense<0.000000e+00> : vector<2x8xf32>
    %80 = vector.multi_reduction <add>, %79, %cst_40 [2] : vector<2x8x8xf32> to vector<2x8xf32>
    %81 = vector.shape_cast %80 : vector<2x8xf32> to vector<2x8x1xf32>
    %82 = tpu.reciprocal %81 {approx = true} : vector<2x8x1xf32> -> vector<2x8x1xf32>
    %83 = vector.broadcast %82 : vector<2x8x1xf32> to vector<2x8x8xf32>
    %84 = arith.mulf %79, %83 : vector<2x8x8xf32>
    "tpu.trace_start"() <{level = 10 : i32, message = "bqk,bkd->bqd"}> : () -> ()
    %cst_41 = arith.constant dense<0.000000e+00> : vector<2x8x16xf32>
    %85 = tpu.matmul %84, %72, %cst_41 {dimension_numbers = #tpu.dot_dimension_numbers<[2], [1], [1], [2], [0, 0, 0, 1, 1, 2], [0], [0]>} : vector<2x8x8xf32>, vector<2x8x16xf32>, vector<2x8x16xf32> -> vector<2x8x16xf32>
    "tpu.trace_stop"() : () -> ()
    %86 = vector.shape_cast %85 : vector<2x8x16xf32> to vector<16x16xf32>
    %87 = vector.extract_strided_slice %43 {offsets = [16, 0], sizes = [16, 32], strides = [1, 1]} : vector<32x32xf32> to vector<16x32xf32>
    %cst_42 = arith.constant dense<0.000000e+00> : vector<16x32xf32>
    %88 = tpu.matmul %86, %87, %cst_42 {dimension_numbers = #tpu.dot_dimension_numbers<[1], [0], [0], [1], [0, 0, 1, 1], [], []>} : vector<16x16xf32>, vector<16x32xf32>, vector<16x32xf32> -> vector<16x32xf32>
    %89 = arith.addf %69, %88 : vector<16x32xf32>
    %90 = arith.addf %89, %30 : vector<16x32xf32>
    %cst_43 = arith.constant dense<0.000000e+00> : vector<16xf32>
    %91 = vector.multi_reduction <add>, %90, %cst_43 [1] : vector<16x32xf32> to vector<16xf32>
    %92 = vector.shape_cast %91 : vector<16xf32> to vector<16x1xf32>
    %cst_44 = arith.constant 3.200000e+01 : f32
    %93 = vector.broadcast %cst_44 : f32 to vector<16x1xf32>
    %94 = arith.divf %92, %93 : vector<16x1xf32>
    %95 = vector.broadcast %94 : vector<16x1xf32> to vector<16x32xf32>
    %96 = arith.subf %90, %95 : vector<16x32xf32>
    %97 = arith.mulf %96, %96 : vector<16x32xf32>
    %cst_45 = arith.constant dense<0.000000e+00> : vector<16xf32>
    %98 = vector.multi_reduction <add>, %97, %cst_45 [1] : vector<16x32xf32> to vector<16xf32>
    %99 = vector.shape_cast %98 : vector<16xf32> to vector<16x1xf32>
    %cst_46 = arith.constant 3.200000e+01 : f32
    %100 = vector.broadcast %cst_46 : f32 to vector<16x1xf32>
    %101 = arith.divf %99, %100 : vector<16x1xf32>
    %102 = vector.broadcast %94 : vector<16x1xf32> to vector<16x32xf32>
    %103 = arith.subf %90, %102 : vector<16x32xf32>
    %cst_47 = arith.constant 9.99999997E-7 : f32
    %104 = vector.broadcast %cst_47 : f32 to vector<16x1xf32>
    %105 = arith.addf %101, %104 : vector<16x1xf32>
    %106 = math.rsqrt %105 : vector<16x1xf32>
    %107 = vector.broadcast %106 : vector<16x1xf32> to vector<16x32xf32>
    %108 = arith.mulf %103, %107 : vector<16x32xf32>
    %109 = vector.broadcast %45 : vector<1x32xf32> to vector<16x32xf32>
    %110 = arith.mulf %108, %109 : vector<16x32xf32>
    %111 = vector.broadcast %47 : vector<1x32xf32> to vector<16x32xf32>
    %112 = arith.addf %110, %111 : vector<16x32xf32>
    %c0_48 = arith.constant 0 : index
    %c0_49 = arith.constant 0 : index
    %c0_50 = arith.constant 0 : index
    %113 = vector.load %arg11[%c0_48, %c0_49, %c0_50] : memref<2x32x32xf32, #tpu.memory_space<vmem>>, vector<1x32x32xf32>
    %114 = vector.shape_cast %113 : vector<1x32x32xf32> to vector<32x32xf32>
    %cst_51 = arith.constant dense<0.000000e+00> : vector<16x32xf32>
    %115 = tpu.matmul %112, %114, %cst_51 {dimension_numbers = #tpu.dot_dimension_numbers<[1], [0], [0], [1], [0, 0, 1, 1], [], []>} : vector<16x32xf32>, vector<32x32xf32>, vector<16x32xf32> -> vector<16x32xf32>
    %cst_52 = arith.constant 2.500000e-01 : f32
    %116 = vector.broadcast %cst_52 : f32 to vector<16x32xf32>
    %117 = arith.mulf %115, %116 : vector<16x32xf32>
    %c0_53 = arith.constant 0 : index
    %c0_54 = arith.constant 0 : index
    %c0_55 = arith.constant 0 : index
    %118 = vector.load %arg12[%c0_53, %c0_54, %c0_55] : memref<2x32x64xf32, #tpu.memory_space<vmem>>, vector<1x32x64xf32>
    %119 = vector.shape_cast %118 : vector<1x32x64xf32> to vector<32x64xf32>
    %cst_56 = arith.constant dense<0.000000e+00> : vector<32x64xf32>
    %120 = tpu.matmul %31, %119, %cst_56 {dimension_numbers = #tpu.dot_dimension_numbers<[1], [0], [0], [1], [0, 0, 1, 1], [], []>} : vector<32x32xf32>, vector<32x64xf32>, vector<32x64xf32> -> vector<32x64xf32>
    %121 = vector.extract_strided_slice %120 {offsets = [0, 0], sizes = [32, 32], strides = [1, 1]} : vector<32x64xf32> to vector<32x32xf32>
    %122 = vector.extract_strided_slice %120 {offsets = [0, 32], sizes = [32, 32], strides = [1, 1]} : vector<32x64xf32> to vector<32x32xf32>
    %c0_57 = arith.constant 0 : index
    %c0_58 = arith.constant 0 : index
    %c0_59 = arith.constant 0 : index
    %123 = vector.load %arg13[%c0_57, %c0_58, %c0_59] : memref<2x32x32xf32, #tpu.memory_space<vmem>>, vector<1x32x32xf32>
    %124 = vector.shape_cast %123 : vector<1x32x32xf32> to vector<32x32xf32>
    %c0_60 = arith.constant 0 : index
    %c0_61 = arith.constant 0 : index
    %c0_62 = arith.constant 0 : index
    %125 = vector.load %arg14[%c0_60, %c0_61, %c0_62] : memref<2x1x32xf32, #tpu.memory_space<vmem>>, vector<1x1x32xf32>
    %126 = vector.shape_cast %125 : vector<1x1x32xf32> to vector<1x32xf32>
    %c0_63 = arith.constant 0 : index
    %c0_64 = arith.constant 0 : index
    %c0_65 = arith.constant 0 : index
    %127 = vector.load %arg15[%c0_63, %c0_64, %c0_65] : memref<2x1x32xf32, #tpu.memory_space<vmem>>, vector<1x1x32xf32>
    %128 = vector.shape_cast %127 : vector<1x1x32xf32> to vector<1x32xf32>
    %129 = vector.shape_cast %117 : vector<16x32xf32> to vector<2x8x32xf32>
    %130 = vector.shape_cast %121 : vector<32x32xf32> to vector<2x16x32xf32>
    %131 = vector.shape_cast %122 : vector<32x32xf32> to vector<2x16x32xf32>
    %132 = vector.extract_strided_slice %129 {offsets = [0, 0, 0], sizes = [2, 8, 16], strides = [1, 1, 1]} : vector<2x8x32xf32> to vector<2x8x16xf32>
    %133 = vector.extract_strided_slice %130 {offsets = [0, 0, 0], sizes = [2, 16, 16], strides = [1, 1, 1]} : vector<2x16x32xf32> to vector<2x16x16xf32>
    %134 = vector.extract_strided_slice %131 {offsets = [0, 0, 0], sizes = [2, 16, 16], strides = [1, 1, 1]} : vector<2x16x32xf32> to vector<2x16x16xf32>
    "tpu.trace_start"() <{level = 10 : i32, message = "bqd,bkd->bqk"}> : () -> ()
    %cst_66 = arith.constant dense<0.000000e+00> : vector<2x8x16xf32>
    %135 = tpu.matmul %132, %133, %cst_66 {dimension_numbers = #tpu.dot_dimension_numbers<[2], [2], [1], [1], [0, 0, 0, 1, 1, 1], [0], [0]>} : vector<2x8x16xf32>, vector<2x16x16xf32>, vector<2x8x16xf32> -> vector<2x8x16xf32>
    "tpu.trace_stop"() : () -> ()
    %136 = vector.broadcast %33 : vector<2x1x16xf32> to vector<2x8x16xf32>
    %137 = arith.addf %135, %136 : vector<2x8x16xf32>
    %cst_67 = arith.constant dense<0xFF800000> : vector<2x8xf32>
    %138 = vector.multi_reduction <maximumf>, %137, %cst_67 [2] : vector<2x8x16xf32> to vector<2x8xf32>
    %139 = vector.shape_cast %138 : vector<2x8xf32> to vector<2x8x1xf32>
    %140 = vector.broadcast %139 : vector<2x8x1xf32> to vector<2x8x16xf32>
    %141 = arith.subf %137, %140 : vector<2x8x16xf32>
    %142 = math.exp %141 : vector<2x8x16xf32>
    %cst_68 = arith.constant dense<0.000000e+00> : vector<2x8xf32>
    %143 = vector.multi_reduction <add>, %142, %cst_68 [2] : vector<2x8x16xf32> to vector<2x8xf32>
    %144 = vector.shape_cast %143 : vector<2x8xf32> to vector<2x8x1xf32>
    %145 = tpu.reciprocal %144 {approx = true} : vector<2x8x1xf32> -> vector<2x8x1xf32>
    %146 = vector.broadcast %145 : vector<2x8x1xf32> to vector<2x8x16xf32>
    %147 = arith.mulf %142, %146 : vector<2x8x16xf32>
    "tpu.trace_start"() <{level = 10 : i32, message = "bqk,bkd->bqd"}> : () -> ()
    %cst_69 = arith.constant dense<0.000000e+00> : vector<2x8x16xf32>
    %148 = tpu.matmul %147, %134, %cst_69 {dimension_numbers = #tpu.dot_dimension_numbers<[2], [1], [1], [2], [0, 0, 0, 1, 1, 2], [0], [0]>} : vector<2x8x16xf32>, vector<2x16x16xf32>, vector<2x8x16xf32> -> vector<2x8x16xf32>
    "tpu.trace_stop"() : () -> ()
    %149 = vector.shape_cast %148 : vector<2x8x16xf32> to vector<16x16xf32>
    %150 = vector.extract_strided_slice %124 {offsets = [0, 0], sizes = [16, 32], strides = [1, 1]} : vector<32x32xf32> to vector<16x32xf32>
    %cst_70 = arith.constant dense<0.000000e+00> : vector<16x32xf32>
    %151 = tpu.matmul %149, %150, %cst_70 {dimension_numbers = #tpu.dot_dimension_numbers<[1], [0], [0], [1], [0, 0, 1, 1], [], []>} : vector<16x16xf32>, vector<16x32xf32>, vector<16x32xf32> -> vector<16x32xf32>
    %152 = vector.extract_strided_slice %129 {offsets = [0, 0, 16], sizes = [2, 8, 16], strides = [1, 1, 1]} : vector<2x8x32xf32> to vector<2x8x16xf32>
    %153 = vector.extract_strided_slice %130 {offsets = [0, 0, 16], sizes = [2, 16, 16], strides = [1, 1, 1]} : vector<2x16x32xf32> to vector<2x16x16xf32>
    %154 = vector.extract_strided_slice %131 {offsets = [0, 0, 16], sizes = [2, 16, 16], strides = [1, 1, 1]} : vector<2x16x32xf32> to vector<2x16x16xf32>
    "tpu.trace_start"() <{level = 10 : i32, message = "bqd,bkd->bqk"}> : () -> ()
    %cst_71 = arith.constant dense<0.000000e+00> : vector<2x8x16xf32>
    %155 = tpu.matmul %152, %153, %cst_71 {dimension_numbers = #tpu.dot_dimension_numbers<[2], [2], [1], [1], [0, 0, 0, 1, 1, 1], [0], [0]>} : vector<2x8x16xf32>, vector<2x16x16xf32>, vector<2x8x16xf32> -> vector<2x8x16xf32>
    "tpu.trace_stop"() : () -> ()
    %156 = vector.broadcast %33 : vector<2x1x16xf32> to vector<2x8x16xf32>
    %157 = arith.addf %155, %156 : vector<2x8x16xf32>
    %cst_72 = arith.constant dense<0xFF800000> : vector<2x8xf32>
    %158 = vector.multi_reduction <maximumf>, %157, %cst_72 [2] : vector<2x8x16xf32> to vector<2x8xf32>
    %159 = vector.shape_cast %158 : vector<2x8xf32> to vector<2x8x1xf32>
    %160 = vector.broadcast %159 : vector<2x8x1xf32> to vector<2x8x16xf32>
    %161 = arith.subf %157, %160 : vector<2x8x16xf32>
    %162 = math.exp %161 : vector<2x8x16xf32>
    %cst_73 = arith.constant dense<0.000000e+00> : vector<2x8xf32>
    %163 = vector.multi_reduction <add>, %162, %cst_73 [2] : vector<2x8x16xf32> to vector<2x8xf32>
    %164 = vector.shape_cast %163 : vector<2x8xf32> to vector<2x8x1xf32>
    %165 = tpu.reciprocal %164 {approx = true} : vector<2x8x1xf32> -> vector<2x8x1xf32>
    %166 = vector.broadcast %165 : vector<2x8x1xf32> to vector<2x8x16xf32>
    %167 = arith.mulf %162, %166 : vector<2x8x16xf32>
    "tpu.trace_start"() <{level = 10 : i32, message = "bqk,bkd->bqd"}> : () -> ()
    %cst_74 = arith.constant dense<0.000000e+00> : vector<2x8x16xf32>
    %168 = tpu.matmul %167, %154, %cst_74 {dimension_numbers = #tpu.dot_dimension_numbers<[2], [1], [1], [2], [0, 0, 0, 1, 1, 2], [0], [0]>} : vector<2x8x16xf32>, vector<2x16x16xf32>, vector<2x8x16xf32> -> vector<2x8x16xf32>
    "tpu.trace_stop"() : () -> ()
    %169 = vector.shape_cast %168 : vector<2x8x16xf32> to vector<16x16xf32>
    %170 = vector.extract_strided_slice %124 {offsets = [16, 0], sizes = [16, 32], strides = [1, 1]} : vector<32x32xf32> to vector<16x32xf32>
    %cst_75 = arith.constant dense<0.000000e+00> : vector<16x32xf32>
    %171 = tpu.matmul %169, %170, %cst_75 {dimension_numbers = #tpu.dot_dimension_numbers<[1], [0], [0], [1], [0, 0, 1, 1], [], []>} : vector<16x16xf32>, vector<16x32xf32>, vector<16x32xf32> -> vector<16x32xf32>
    %172 = arith.addf %151, %171 : vector<16x32xf32>
    %173 = arith.addf %172, %112 : vector<16x32xf32>
    %cst_76 = arith.constant dense<0.000000e+00> : vector<16xf32>
    %174 = vector.multi_reduction <add>, %173, %cst_76 [1] : vector<16x32xf32> to vector<16xf32>
    %175 = vector.shape_cast %174 : vector<16xf32> to vector<16x1xf32>
    %cst_77 = arith.constant 3.200000e+01 : f32
    %176 = vector.broadcast %cst_77 : f32 to vector<16x1xf32>
    %177 = arith.divf %175, %176 : vector<16x1xf32>
    %178 = vector.broadcast %177 : vector<16x1xf32> to vector<16x32xf32>
    %179 = arith.subf %173, %178 : vector<16x32xf32>
    %180 = arith.mulf %179, %179 : vector<16x32xf32>
    %cst_78 = arith.constant dense<0.000000e+00> : vector<16xf32>
    %181 = vector.multi_reduction <add>, %180, %cst_78 [1] : vector<16x32xf32> to vector<16xf32>
    %182 = vector.shape_cast %181 : vector<16xf32> to vector<16x1xf32>
    %cst_79 = arith.constant 3.200000e+01 : f32
    %183 = vector.broadcast %cst_79 : f32 to vector<16x1xf32>
    %184 = arith.divf %182, %183 : vector<16x1xf32>
    %185 = vector.broadcast %177 : vector<16x1xf32> to vector<16x32xf32>
    %186 = arith.subf %173, %185 : vector<16x32xf32>
    %cst_80 = arith.constant 9.99999997E-7 : f32
    %187 = vector.broadcast %cst_80 : f32 to vector<16x1xf32>
    %188 = arith.addf %184, %187 : vector<16x1xf32>
    %189 = math.rsqrt %188 : vector<16x1xf32>
    %190 = vector.broadcast %189 : vector<16x1xf32> to vector<16x32xf32>
    %191 = arith.mulf %186, %190 : vector<16x32xf32>
    %192 = vector.broadcast %126 : vector<1x32xf32> to vector<16x32xf32>
    %193 = arith.mulf %191, %192 : vector<16x32xf32>
    %194 = vector.broadcast %128 : vector<1x32xf32> to vector<16x32xf32>
    %195 = arith.addf %193, %194 : vector<16x32xf32>
    %c0_81 = arith.constant 0 : index
    %c0_82 = arith.constant 0 : index
    %c0_83 = arith.constant 0 : index
    %196 = vector.load %arg16[%c0_81, %c0_82, %c0_83] : memref<2x32x64xf32, #tpu.memory_space<vmem>>, vector<1x32x64xf32>
    %197 = vector.shape_cast %196 : vector<1x32x64xf32> to vector<32x64xf32>
    %cst_84 = arith.constant dense<0.000000e+00> : vector<16x64xf32>
    %198 = tpu.matmul %195, %197, %cst_84 {dimension_numbers = #tpu.dot_dimension_numbers<[1], [0], [0], [1], [0, 0, 1, 1], [], []>} : vector<16x32xf32>, vector<32x64xf32>, vector<16x64xf32> -> vector<16x64xf32>
    %c0_85 = arith.constant 0 : index
    %c0_86 = arith.constant 0 : index
    %c0_87 = arith.constant 0 : index
    %199 = vector.load %arg17[%c0_85, %c0_86, %c0_87] : memref<2x1x64xf32, #tpu.memory_space<vmem>>, vector<1x1x64xf32>
    %200 = vector.shape_cast %199 : vector<1x1x64xf32> to vector<1x64xf32>
    %201 = vector.broadcast %200 : vector<1x64xf32> to vector<16x64xf32>
    %202 = arith.addf %198, %201 : vector<16x64xf32>
    %cst_88 = arith.constant 0.000000e+00 : f32
    %203 = vector.broadcast %cst_88 : f32 to vector<16x64xf32>
    %204 = arith.maximumf %202, %203 : vector<16x64xf32>
    %c0_89 = arith.constant 0 : index
    %c0_90 = arith.constant 0 : index
    %c0_91 = arith.constant 0 : index
    %205 = vector.load %arg18[%c0_89, %c0_90, %c0_91] : memref<2x64x32xf32, #tpu.memory_space<vmem>>, vector<1x64x32xf32>
    %206 = vector.shape_cast %205 : vector<1x64x32xf32> to vector<64x32xf32>
    %cst_92 = arith.constant dense<0.000000e+00> : vector<16x32xf32>
    %207 = tpu.matmul %204, %206, %cst_92 {dimension_numbers = #tpu.dot_dimension_numbers<[1], [0], [0], [1], [0, 0, 1, 1], [], []>} : vector<16x64xf32>, vector<64x32xf32>, vector<16x32xf32> -> vector<16x32xf32>
    %c0_93 = arith.constant 0 : index
    %c0_94 = arith.constant 0 : index
    %c0_95 = arith.constant 0 : index
    %208 = vector.load %arg19[%c0_93, %c0_94, %c0_95] : memref<2x1x32xf32, #tpu.memory_space<vmem>>, vector<1x1x32xf32>
    %209 = vector.shape_cast %208 : vector<1x1x32xf32> to vector<1x32xf32>
    %210 = vector.broadcast %209 : vector<1x32xf32> to vector<16x32xf32>
    %211 = arith.addf %207, %210 : vector<16x32xf32>
    %212 = arith.addf %211, %195 : vector<16x32xf32>
    %c0_96 = arith.constant 0 : index
    %c0_97 = arith.constant 0 : index
    %c0_98 = arith.constant 0 : index
    %213 = vector.load %arg20[%c0_96, %c0_97, %c0_98] : memref<2x1x32xf32, #tpu.memory_space<vmem>>, vector<1x1x32xf32>
    %214 = vector.shape_cast %213 : vector<1x1x32xf32> to vector<1x32xf32>
    %c0_99 = arith.constant 0 : index
    %c0_100 = arith.constant 0 : index
    %c0_101 = arith.constant 0 : index
    %215 = vector.load %arg21[%c0_99, %c0_100, %c0_101] : memref<2x1x32xf32, #tpu.memory_space<vmem>>, vector<1x1x32xf32>
    %216 = vector.shape_cast %215 : vector<1x1x32xf32> to vector<1x32xf32>
    %cst_102 = arith.constant dense<0.000000e+00> : vector<16xf32>
    %217 = vector.multi_reduction <add>, %212, %cst_102 [1] : vector<16x32xf32> to vector<16xf32>
    %218 = vector.shape_cast %217 : vector<16xf32> to vector<16x1xf32>
    %cst_103 = arith.constant 3.200000e+01 : f32
    %219 = vector.broadcast %cst_103 : f32 to vector<16x1xf32>
    %220 = arith.divf %218, %219 : vector<16x1xf32>
    %221 = vector.broadcast %220 : vector<16x1xf32> to vector<16x32xf32>
    %222 = arith.subf %212, %221 : vector<16x32xf32>
    %223 = arith.mulf %222, %222 : vector<16x32xf32>
    %cst_104 = arith.constant dense<0.000000e+00> : vector<16xf32>
    %224 = vector.multi_reduction <add>, %223, %cst_104 [1] : vector<16x32xf32> to vector<16xf32>
    %225 = vector.shape_cast %224 : vector<16xf32> to vector<16x1xf32>
    %cst_105 = arith.constant 3.200000e+01 : f32
    %226 = vector.broadcast %cst_105 : f32 to vector<16x1xf32>
    %227 = arith.divf %225, %226 : vector<16x1xf32>
    %228 = vector.broadcast %220 : vector<16x1xf32> to vector<16x32xf32>
    %229 = arith.subf %212, %228 : vector<16x32xf32>
    %cst_106 = arith.constant 9.99999997E-7 : f32
    %230 = vector.broadcast %cst_106 : f32 to vector<16x1xf32>
    %231 = arith.addf %227, %230 : vector<16x1xf32>
    %232 = math.rsqrt %231 : vector<16x1xf32>
    %233 = vector.broadcast %232 : vector<16x1xf32> to vector<16x32xf32>
    %234 = arith.mulf %229, %233 : vector<16x32xf32>
    %235 = vector.broadcast %214 : vector<1x32xf32> to vector<16x32xf32>
    %236 = arith.mulf %234, %235 : vector<16x32xf32>
    %237 = vector.broadcast %216 : vector<1x32xf32> to vector<16x32xf32>
    %238 = arith.addf %236, %237 : vector<16x32xf32>
    %c1 = arith.constant 1 : index
    %c0_107 = arith.constant 0 : index
    %c0_108 = arith.constant 0 : index
    %239 = vector.load %arg7[%c1, %c0_107, %c0_108] : memref<2x32x96xf32, #tpu.memory_space<vmem>>, vector<1x32x96xf32>
    %240 = vector.shape_cast %239 : vector<1x32x96xf32> to vector<32x96xf32>
    %cst_109 = arith.constant dense<0.000000e+00> : vector<16x96xf32>
    %241 = tpu.matmul %238, %240, %cst_109 {dimension_numbers = #tpu.dot_dimension_numbers<[1], [0], [0], [1], [0, 0, 1, 1], [], []>} : vector<16x32xf32>, vector<32x96xf32>, vector<16x96xf32> -> vector<16x96xf32>
    %242 = vector.extract_strided_slice %241 {offsets = [0, 0], sizes = [16, 32], strides = [1, 1]} : vector<16x96xf32> to vector<16x32xf32>
    %cst_110 = arith.constant 2.500000e-01 : f32
    %243 = vector.broadcast %cst_110 : f32 to vector<16x32xf32>
    %244 = arith.mulf %242, %243 : vector<16x32xf32>
    %245 = vector.extract_strided_slice %241 {offsets = [0, 32], sizes = [16, 32], strides = [1, 1]} : vector<16x96xf32> to vector<16x32xf32>
    %246 = vector.extract_strided_slice %241 {offsets = [0, 64], sizes = [16, 32], strides = [1, 1]} : vector<16x96xf32> to vector<16x32xf32>
    %c1_111 = arith.constant 1 : index
    %c0_112 = arith.constant 0 : index
    %c0_113 = arith.constant 0 : index
    %247 = vector.load %arg8[%c1_111, %c0_112, %c0_113] : memref<2x32x32xf32, #tpu.memory_space<vmem>>, vector<1x32x32xf32>
    %248 = vector.shape_cast %247 : vector<1x32x32xf32> to vector<32x32xf32>
    %c1_114 = arith.constant 1 : index
    %c0_115 = arith.constant 0 : index
    %c0_116 = arith.constant 0 : index
    %249 = vector.load %arg9[%c1_114, %c0_115, %c0_116] : memref<2x1x32xf32, #tpu.memory_space<vmem>>, vector<1x1x32xf32>
    %250 = vector.shape_cast %249 : vector<1x1x32xf32> to vector<1x32xf32>
    %c1_117 = arith.constant 1 : index
    %c0_118 = arith.constant 0 : index
    %c0_119 = arith.constant 0 : index
    %251 = vector.load %arg10[%c1_117, %c0_118, %c0_119] : memref<2x1x32xf32, #tpu.memory_space<vmem>>, vector<1x1x32xf32>
    %252 = vector.shape_cast %251 : vector<1x1x32xf32> to vector<1x32xf32>
    %253 = vector.shape_cast %244 : vector<16x32xf32> to vector<2x8x32xf32>
    %254 = vector.shape_cast %245 : vector<16x32xf32> to vector<2x8x32xf32>
    %255 = vector.shape_cast %246 : vector<16x32xf32> to vector<2x8x32xf32>
    %256 = vector.extract_strided_slice %253 {offsets = [0, 0, 0], sizes = [2, 8, 16], strides = [1, 1, 1]} : vector<2x8x32xf32> to vector<2x8x16xf32>
    %257 = vector.extract_strided_slice %254 {offsets = [0, 0, 0], sizes = [2, 8, 16], strides = [1, 1, 1]} : vector<2x8x32xf32> to vector<2x8x16xf32>
    %258 = vector.extract_strided_slice %255 {offsets = [0, 0, 0], sizes = [2, 8, 16], strides = [1, 1, 1]} : vector<2x8x32xf32> to vector<2x8x16xf32>
    "tpu.trace_start"() <{level = 10 : i32, message = "bqd,bkd->bqk"}> : () -> ()
    %cst_120 = arith.constant dense<0.000000e+00> : vector<2x8x8xf32>
    %259 = tpu.matmul %256, %257, %cst_120 {dimension_numbers = #tpu.dot_dimension_numbers<[2], [2], [1], [1], [0, 0, 0, 1, 1, 1], [0], [0]>} : vector<2x8x16xf32>, vector<2x8x16xf32>, vector<2x8x8xf32> -> vector<2x8x8xf32>
    "tpu.trace_stop"() : () -> ()
    %260 = arith.addf %259, %32 : vector<2x8x8xf32>
    %cst_121 = arith.constant dense<0xFF800000> : vector<2x8xf32>
    %261 = vector.multi_reduction <maximumf>, %260, %cst_121 [2] : vector<2x8x8xf32> to vector<2x8xf32>
    %262 = vector.shape_cast %261 : vector<2x8xf32> to vector<2x8x1xf32>
    %263 = vector.broadcast %262 : vector<2x8x1xf32> to vector<2x8x8xf32>
    %264 = arith.subf %260, %263 : vector<2x8x8xf32>
    %265 = math.exp %264 : vector<2x8x8xf32>
    %cst_122 = arith.constant dense<0.000000e+00> : vector<2x8xf32>
    %266 = vector.multi_reduction <add>, %265, %cst_122 [2] : vector<2x8x8xf32> to vector<2x8xf32>
    %267 = vector.shape_cast %266 : vector<2x8xf32> to vector<2x8x1xf32>
    %268 = tpu.reciprocal %267 {approx = true} : vector<2x8x1xf32> -> vector<2x8x1xf32>
    %269 = vector.broadcast %268 : vector<2x8x1xf32> to vector<2x8x8xf32>
    %270 = arith.mulf %265, %269 : vector<2x8x8xf32>
    "tpu.trace_start"() <{level = 10 : i32, message = "bqk,bkd->bqd"}> : () -> ()
    %cst_123 = arith.constant dense<0.000000e+00> : vector<2x8x16xf32>
    %271 = tpu.matmul %270, %258, %cst_123 {dimension_numbers = #tpu.dot_dimension_numbers<[2], [1], [1], [2], [0, 0, 0, 1, 1, 2], [0], [0]>} : vector<2x8x8xf32>, vector<2x8x16xf32>, vector<2x8x16xf32> -> vector<2x8x16xf32>
    "tpu.trace_stop"() : () -> ()
    %272 = vector.shape_cast %271 : vector<2x8x16xf32> to vector<16x16xf32>
    %273 = vector.extract_strided_slice %248 {offsets = [0, 0], sizes = [16, 32], strides = [1, 1]} : vector<32x32xf32> to vector<16x32xf32>
    %cst_124 = arith.constant dense<0.000000e+00> : vector<16x32xf32>
    %274 = tpu.matmul %272, %273, %cst_124 {dimension_numbers = #tpu.dot_dimension_numbers<[1], [0], [0], [1], [0, 0, 1, 1], [], []>} : vector<16x16xf32>, vector<16x32xf32>, vector<16x32xf32> -> vector<16x32xf32>
    %275 = vector.extract_strided_slice %253 {offsets = [0, 0, 16], sizes = [2, 8, 16], strides = [1, 1, 1]} : vector<2x8x32xf32> to vector<2x8x16xf32>
    %276 = vector.extract_strided_slice %254 {offsets = [0, 0, 16], sizes = [2, 8, 16], strides = [1, 1, 1]} : vector<2x8x32xf32> to vector<2x8x16xf32>
    %277 = vector.extract_strided_slice %255 {offsets = [0, 0, 16], sizes = [2, 8, 16], strides = [1, 1, 1]} : vector<2x8x32xf32> to vector<2x8x16xf32>
    "tpu.trace_start"() <{level = 10 : i32, message = "bqd,bkd->bqk"}> : () -> ()
    %cst_125 = arith.constant dense<0.000000e+00> : vector<2x8x8xf32>
    %278 = tpu.matmul %275, %276, %cst_125 {dimension_numbers = #tpu.dot_dimension_numbers<[2], [2], [1], [1], [0, 0, 0, 1, 1, 1], [0], [0]>} : vector<2x8x16xf32>, vector<2x8x16xf32>, vector<2x8x8xf32> -> vector<2x8x8xf32>
    "tpu.trace_stop"() : () -> ()
    %279 = arith.addf %278, %32 : vector<2x8x8xf32>
    %cst_126 = arith.constant dense<0xFF800000> : vector<2x8xf32>
    %280 = vector.multi_reduction <maximumf>, %279, %cst_126 [2] : vector<2x8x8xf32> to vector<2x8xf32>
    %281 = vector.shape_cast %280 : vector<2x8xf32> to vector<2x8x1xf32>
    %282 = vector.broadcast %281 : vector<2x8x1xf32> to vector<2x8x8xf32>
    %283 = arith.subf %279, %282 : vector<2x8x8xf32>
    %284 = math.exp %283 : vector<2x8x8xf32>
    %cst_127 = arith.constant dense<0.000000e+00> : vector<2x8xf32>
    %285 = vector.multi_reduction <add>, %284, %cst_127 [2] : vector<2x8x8xf32> to vector<2x8xf32>
    %286 = vector.shape_cast %285 : vector<2x8xf32> to vector<2x8x1xf32>
    %287 = tpu.reciprocal %286 {approx = true} : vector<2x8x1xf32> -> vector<2x8x1xf32>
    %288 = vector.broadcast %287 : vector<2x8x1xf32> to vector<2x8x8xf32>
    %289 = arith.mulf %284, %288 : vector<2x8x8xf32>
    "tpu.trace_start"() <{level = 10 : i32, message = "bqk,bkd->bqd"}> : () -> ()
    %cst_128 = arith.constant dense<0.000000e+00> : vector<2x8x16xf32>
    %290 = tpu.matmul %289, %277, %cst_128 {dimension_numbers = #tpu.dot_dimension_numbers<[2], [1], [1], [2], [0, 0, 0, 1, 1, 2], [0], [0]>} : vector<2x8x8xf32>, vector<2x8x16xf32>, vector<2x8x16xf32> -> vector<2x8x16xf32>
    "tpu.trace_stop"() : () -> ()
    %291 = vector.shape_cast %290 : vector<2x8x16xf32> to vector<16x16xf32>
    %292 = vector.extract_strided_slice %248 {offsets = [16, 0], sizes = [16, 32], strides = [1, 1]} : vector<32x32xf32> to vector<16x32xf32>
    %cst_129 = arith.constant dense<0.000000e+00> : vector<16x32xf32>
    %293 = tpu.matmul %291, %292, %cst_129 {dimension_numbers = #tpu.dot_dimension_numbers<[1], [0], [0], [1], [0, 0, 1, 1], [], []>} : vector<16x16xf32>, vector<16x32xf32>, vector<16x32xf32> -> vector<16x32xf32>
    %294 = arith.addf %274, %293 : vector<16x32xf32>
    %295 = arith.addf %294, %238 : vector<16x32xf32>
    %cst_130 = arith.constant dense<0.000000e+00> : vector<16xf32>
    %296 = vector.multi_reduction <add>, %295, %cst_130 [1] : vector<16x32xf32> to vector<16xf32>
    %297 = vector.shape_cast %296 : vector<16xf32> to vector<16x1xf32>
    %cst_131 = arith.constant 3.200000e+01 : f32
    %298 = vector.broadcast %cst_131 : f32 to vector<16x1xf32>
    %299 = arith.divf %297, %298 : vector<16x1xf32>
    %300 = vector.broadcast %299 : vector<16x1xf32> to vector<16x32xf32>
    %301 = arith.subf %295, %300 : vector<16x32xf32>
    %302 = arith.mulf %301, %301 : vector<16x32xf32>
    %cst_132 = arith.constant dense<0.000000e+00> : vector<16xf32>
    %303 = vector.multi_reduction <add>, %302, %cst_132 [1] : vector<16x32xf32> to vector<16xf32>
    %304 = vector.shape_cast %303 : vector<16xf32> to vector<16x1xf32>
    %cst_133 = arith.constant 3.200000e+01 : f32
    %305 = vector.broadcast %cst_133 : f32 to vector<16x1xf32>
    %306 = arith.divf %304, %305 : vector<16x1xf32>
    %307 = vector.broadcast %299 : vector<16x1xf32> to vector<16x32xf32>
    %308 = arith.subf %295, %307 : vector<16x32xf32>
    %cst_134 = arith.constant 9.99999997E-7 : f32
    %309 = vector.broadcast %cst_134 : f32 to vector<16x1xf32>
    %310 = arith.addf %306, %309 : vector<16x1xf32>
    %311 = math.rsqrt %310 : vector<16x1xf32>
    %312 = vector.broadcast %311 : vector<16x1xf32> to vector<16x32xf32>
    %313 = arith.mulf %308, %312 : vector<16x32xf32>
    %314 = vector.broadcast %250 : vector<1x32xf32> to vector<16x32xf32>
    %315 = arith.mulf %313, %314 : vector<16x32xf32>
    %316 = vector.broadcast %252 : vector<1x32xf32> to vector<16x32xf32>
    %317 = arith.addf %315, %316 : vector<16x32xf32>
    %c1_135 = arith.constant 1 : index
    %c0_136 = arith.constant 0 : index
    %c0_137 = arith.constant 0 : index
    %318 = vector.load %arg11[%c1_135, %c0_136, %c0_137] : memref<2x32x32xf32, #tpu.memory_space<vmem>>, vector<1x32x32xf32>
    %319 = vector.shape_cast %318 : vector<1x32x32xf32> to vector<32x32xf32>
    %cst_138 = arith.constant dense<0.000000e+00> : vector<16x32xf32>
    %320 = tpu.matmul %317, %319, %cst_138 {dimension_numbers = #tpu.dot_dimension_numbers<[1], [0], [0], [1], [0, 0, 1, 1], [], []>} : vector<16x32xf32>, vector<32x32xf32>, vector<16x32xf32> -> vector<16x32xf32>
    %cst_139 = arith.constant 2.500000e-01 : f32
    %321 = vector.broadcast %cst_139 : f32 to vector<16x32xf32>
    %322 = arith.mulf %320, %321 : vector<16x32xf32>
    %c1_140 = arith.constant 1 : index
    %c0_141 = arith.constant 0 : index
    %c0_142 = arith.constant 0 : index
    %323 = vector.load %arg12[%c1_140, %c0_141, %c0_142] : memref<2x32x64xf32, #tpu.memory_space<vmem>>, vector<1x32x64xf32>
    %324 = vector.shape_cast %323 : vector<1x32x64xf32> to vector<32x64xf32>
    %cst_143 = arith.constant dense<0.000000e+00> : vector<32x64xf32>
    %325 = tpu.matmul %31, %324, %cst_143 {dimension_numbers = #tpu.dot_dimension_numbers<[1], [0], [0], [1], [0, 0, 1, 1], [], []>} : vector<32x32xf32>, vector<32x64xf32>, vector<32x64xf32> -> vector<32x64xf32>
    %326 = vector.extract_strided_slice %325 {offsets = [0, 0], sizes = [32, 32], strides = [1, 1]} : vector<32x64xf32> to vector<32x32xf32>
    %327 = vector.extract_strided_slice %325 {offsets = [0, 32], sizes = [32, 32], strides = [1, 1]} : vector<32x64xf32> to vector<32x32xf32>
    %c1_144 = arith.constant 1 : index
    %c0_145 = arith.constant 0 : index
    %c0_146 = arith.constant 0 : index
    %328 = vector.load %arg13[%c1_144, %c0_145, %c0_146] : memref<2x32x32xf32, #tpu.memory_space<vmem>>, vector<1x32x32xf32>
    %329 = vector.shape_cast %328 : vector<1x32x32xf32> to vector<32x32xf32>
    %c1_147 = arith.constant 1 : index
    %c0_148 = arith.constant 0 : index
    %c0_149 = arith.constant 0 : index
    %330 = vector.load %arg14[%c1_147, %c0_148, %c0_149] : memref<2x1x32xf32, #tpu.memory_space<vmem>>, vector<1x1x32xf32>
    %331 = vector.shape_cast %330 : vector<1x1x32xf32> to vector<1x32xf32>
    %c1_150 = arith.constant 1 : index
    %c0_151 = arith.constant 0 : index
    %c0_152 = arith.constant 0 : index
    %332 = vector.load %arg15[%c1_150, %c0_151, %c0_152] : memref<2x1x32xf32, #tpu.memory_space<vmem>>, vector<1x1x32xf32>
    %333 = vector.shape_cast %332 : vector<1x1x32xf32> to vector<1x32xf32>
    %334 = vector.shape_cast %322 : vector<16x32xf32> to vector<2x8x32xf32>
    %335 = vector.shape_cast %326 : vector<32x32xf32> to vector<2x16x32xf32>
    %336 = vector.shape_cast %327 : vector<32x32xf32> to vector<2x16x32xf32>
    %337 = vector.extract_strided_slice %334 {offsets = [0, 0, 0], sizes = [2, 8, 16], strides = [1, 1, 1]} : vector<2x8x32xf32> to vector<2x8x16xf32>
    %338 = vector.extract_strided_slice %335 {offsets = [0, 0, 0], sizes = [2, 16, 16], strides = [1, 1, 1]} : vector<2x16x32xf32> to vector<2x16x16xf32>
    %339 = vector.extract_strided_slice %336 {offsets = [0, 0, 0], sizes = [2, 16, 16], strides = [1, 1, 1]} : vector<2x16x32xf32> to vector<2x16x16xf32>
    "tpu.trace_start"() <{level = 10 : i32, message = "bqd,bkd->bqk"}> : () -> ()
    %cst_153 = arith.constant dense<0.000000e+00> : vector<2x8x16xf32>
    %340 = tpu.matmul %337, %338, %cst_153 {dimension_numbers = #tpu.dot_dimension_numbers<[2], [2], [1], [1], [0, 0, 0, 1, 1, 1], [0], [0]>} : vector<2x8x16xf32>, vector<2x16x16xf32>, vector<2x8x16xf32> -> vector<2x8x16xf32>
    "tpu.trace_stop"() : () -> ()
    %341 = vector.broadcast %33 : vector<2x1x16xf32> to vector<2x8x16xf32>
    %342 = arith.addf %340, %341 : vector<2x8x16xf32>
    %cst_154 = arith.constant dense<0xFF800000> : vector<2x8xf32>
    %343 = vector.multi_reduction <maximumf>, %342, %cst_154 [2] : vector<2x8x16xf32> to vector<2x8xf32>
    %344 = vector.shape_cast %343 : vector<2x8xf32> to vector<2x8x1xf32>
    %345 = vector.broadcast %344 : vector<2x8x1xf32> to vector<2x8x16xf32>
    %346 = arith.subf %342, %345 : vector<2x8x16xf32>
    %347 = math.exp %346 : vector<2x8x16xf32>
    %cst_155 = arith.constant dense<0.000000e+00> : vector<2x8xf32>
    %348 = vector.multi_reduction <add>, %347, %cst_155 [2] : vector<2x8x16xf32> to vector<2x8xf32>
    %349 = vector.shape_cast %348 : vector<2x8xf32> to vector<2x8x1xf32>
    %350 = tpu.reciprocal %349 {approx = true} : vector<2x8x1xf32> -> vector<2x8x1xf32>
    %351 = vector.broadcast %350 : vector<2x8x1xf32> to vector<2x8x16xf32>
    %352 = arith.mulf %347, %351 : vector<2x8x16xf32>
    "tpu.trace_start"() <{level = 10 : i32, message = "bqk,bkd->bqd"}> : () -> ()
    %cst_156 = arith.constant dense<0.000000e+00> : vector<2x8x16xf32>
    %353 = tpu.matmul %352, %339, %cst_156 {dimension_numbers = #tpu.dot_dimension_numbers<[2], [1], [1], [2], [0, 0, 0, 1, 1, 2], [0], [0]>} : vector<2x8x16xf32>, vector<2x16x16xf32>, vector<2x8x16xf32> -> vector<2x8x16xf32>
    "tpu.trace_stop"() : () -> ()
    %354 = vector.shape_cast %353 : vector<2x8x16xf32> to vector<16x16xf32>
    %355 = vector.extract_strided_slice %329 {offsets = [0, 0], sizes = [16, 32], strides = [1, 1]} : vector<32x32xf32> to vector<16x32xf32>
    %cst_157 = arith.constant dense<0.000000e+00> : vector<16x32xf32>
    %356 = tpu.matmul %354, %355, %cst_157 {dimension_numbers = #tpu.dot_dimension_numbers<[1], [0], [0], [1], [0, 0, 1, 1], [], []>} : vector<16x16xf32>, vector<16x32xf32>, vector<16x32xf32> -> vector<16x32xf32>
    %357 = vector.extract_strided_slice %334 {offsets = [0, 0, 16], sizes = [2, 8, 16], strides = [1, 1, 1]} : vector<2x8x32xf32> to vector<2x8x16xf32>
    %358 = vector.extract_strided_slice %335 {offsets = [0, 0, 16], sizes = [2, 16, 16], strides = [1, 1, 1]} : vector<2x16x32xf32> to vector<2x16x16xf32>
    %359 = vector.extract_strided_slice %336 {offsets = [0, 0, 16], sizes = [2, 16, 16], strides = [1, 1, 1]} : vector<2x16x32xf32> to vector<2x16x16xf32>
    "tpu.trace_start"() <{level = 10 : i32, message = "bqd,bkd->bqk"}> : () -> ()
    %cst_158 = arith.constant dense<0.000000e+00> : vector<2x8x16xf32>
    %360 = tpu.matmul %357, %358, %cst_158 {dimension_numbers = #tpu.dot_dimension_numbers<[2], [2], [1], [1], [0, 0, 0, 1, 1, 1], [0], [0]>} : vector<2x8x16xf32>, vector<2x16x16xf32>, vector<2x8x16xf32> -> vector<2x8x16xf32>
    "tpu.trace_stop"() : () -> ()
    %361 = vector.broadcast %33 : vector<2x1x16xf32> to vector<2x8x16xf32>
    %362 = arith.addf %360, %361 : vector<2x8x16xf32>
    %cst_159 = arith.constant dense<0xFF800000> : vector<2x8xf32>
    %363 = vector.multi_reduction <maximumf>, %362, %cst_159 [2] : vector<2x8x16xf32> to vector<2x8xf32>
    %364 = vector.shape_cast %363 : vector<2x8xf32> to vector<2x8x1xf32>
    %365 = vector.broadcast %364 : vector<2x8x1xf32> to vector<2x8x16xf32>
    %366 = arith.subf %362, %365 : vector<2x8x16xf32>
    %367 = math.exp %366 : vector<2x8x16xf32>
    %cst_160 = arith.constant dense<0.000000e+00> : vector<2x8xf32>
    %368 = vector.multi_reduction <add>, %367, %cst_160 [2] : vector<2x8x16xf32> to vector<2x8xf32>
    %369 = vector.shape_cast %368 : vector<2x8xf32> to vector<2x8x1xf32>
    %370 = tpu.reciprocal %369 {approx = true} : vector<2x8x1xf32> -> vector<2x8x1xf32>
    %371 = vector.broadcast %370 : vector<2x8x1xf32> to vector<2x8x16xf32>
    %372 = arith.mulf %367, %371 : vector<2x8x16xf32>
    "tpu.trace_start"() <{level = 10 : i32, message = "bqk,bkd->bqd"}> : () -> ()
    %cst_161 = arith.constant dense<0.000000e+00> : vector<2x8x16xf32>
    %373 = tpu.matmul %372, %359, %cst_161 {dimension_numbers = #tpu.dot_dimension_numbers<[2], [1], [1], [2], [0, 0, 0, 1, 1, 2], [0], [0]>} : vector<2x8x16xf32>, vector<2x16x16xf32>, vector<2x8x16xf32> -> vector<2x8x16xf32>
    "tpu.trace_stop"() : () -> ()
    %374 = vector.shape_cast %373 : vector<2x8x16xf32> to vector<16x16xf32>
    %375 = vector.extract_strided_slice %329 {offsets = [16, 0], sizes = [16, 32], strides = [1, 1]} : vector<32x32xf32> to vector<16x32xf32>
    %cst_162 = arith.constant dense<0.000000e+00> : vector<16x32xf32>
    %376 = tpu.matmul %374, %375, %cst_162 {dimension_numbers = #tpu.dot_dimension_numbers<[1], [0], [0], [1], [0, 0, 1, 1], [], []>} : vector<16x16xf32>, vector<16x32xf32>, vector<16x32xf32> -> vector<16x32xf32>
    %377 = arith.addf %356, %376 : vector<16x32xf32>
    %378 = arith.addf %377, %317 : vector<16x32xf32>
    %cst_163 = arith.constant dense<0.000000e+00> : vector<16xf32>
    %379 = vector.multi_reduction <add>, %378, %cst_163 [1] : vector<16x32xf32> to vector<16xf32>
    %380 = vector.shape_cast %379 : vector<16xf32> to vector<16x1xf32>
    %cst_164 = arith.constant 3.200000e+01 : f32
    %381 = vector.broadcast %cst_164 : f32 to vector<16x1xf32>
    %382 = arith.divf %380, %381 : vector<16x1xf32>
    %383 = vector.broadcast %382 : vector<16x1xf32> to vector<16x32xf32>
    %384 = arith.subf %378, %383 : vector<16x32xf32>
    %385 = arith.mulf %384, %384 : vector<16x32xf32>
    %cst_165 = arith.constant dense<0.000000e+00> : vector<16xf32>
    %386 = vector.multi_reduction <add>, %385, %cst_165 [1] : vector<16x32xf32> to vector<16xf32>
    %387 = vector.shape_cast %386 : vector<16xf32> to vector<16x1xf32>
    %cst_166 = arith.constant 3.200000e+01 : f32
    %388 = vector.broadcast %cst_166 : f32 to vector<16x1xf32>
    %389 = arith.divf %387, %388 : vector<16x1xf32>
    %390 = vector.broadcast %382 : vector<16x1xf32> to vector<16x32xf32>
    %391 = arith.subf %378, %390 : vector<16x32xf32>
    %cst_167 = arith.constant 9.99999997E-7 : f32
    %392 = vector.broadcast %cst_167 : f32 to vector<16x1xf32>
    %393 = arith.addf %389, %392 : vector<16x1xf32>
    %394 = math.rsqrt %393 : vector<16x1xf32>
    %395 = vector.broadcast %394 : vector<16x1xf32> to vector<16x32xf32>
    %396 = arith.mulf %391, %395 : vector<16x32xf32>
    %397 = vector.broadcast %331 : vector<1x32xf32> to vector<16x32xf32>
    %398 = arith.mulf %396, %397 : vector<16x32xf32>
    %399 = vector.broadcast %333 : vector<1x32xf32> to vector<16x32xf32>
    %400 = arith.addf %398, %399 : vector<16x32xf32>
    %c1_168 = arith.constant 1 : index
    %c0_169 = arith.constant 0 : index
    %c0_170 = arith.constant 0 : index
    %401 = vector.load %arg16[%c1_168, %c0_169, %c0_170] : memref<2x32x64xf32, #tpu.memory_space<vmem>>, vector<1x32x64xf32>
    %402 = vector.shape_cast %401 : vector<1x32x64xf32> to vector<32x64xf32>
    %cst_171 = arith.constant dense<0.000000e+00> : vector<16x64xf32>
    %403 = tpu.matmul %400, %402, %cst_171 {dimension_numbers = #tpu.dot_dimension_numbers<[1], [0], [0], [1], [0, 0, 1, 1], [], []>} : vector<16x32xf32>, vector<32x64xf32>, vector<16x64xf32> -> vector<16x64xf32>
    %c1_172 = arith.constant 1 : index
    %c0_173 = arith.constant 0 : index
    %c0_174 = arith.constant 0 : index
    %404 = vector.load %arg17[%c1_172, %c0_173, %c0_174] : memref<2x1x64xf32, #tpu.memory_space<vmem>>, vector<1x1x64xf32>
    %405 = vector.shape_cast %404 : vector<1x1x64xf32> to vector<1x64xf32>
    %406 = vector.broadcast %405 : vector<1x64xf32> to vector<16x64xf32>
    %407 = arith.addf %403, %406 : vector<16x64xf32>
    %cst_175 = arith.constant 0.000000e+00 : f32
    %408 = vector.broadcast %cst_175 : f32 to vector<16x64xf32>
    %409 = arith.maximumf %407, %408 : vector<16x64xf32>
    %c1_176 = arith.constant 1 : index
    %c0_177 = arith.constant 0 : index
    %c0_178 = arith.constant 0 : index
    %410 = vector.load %arg18[%c1_176, %c0_177, %c0_178] : memref<2x64x32xf32, #tpu.memory_space<vmem>>, vector<1x64x32xf32>
    %411 = vector.shape_cast %410 : vector<1x64x32xf32> to vector<64x32xf32>
    %cst_179 = arith.constant dense<0.000000e+00> : vector<16x32xf32>
    %412 = tpu.matmul %409, %411, %cst_179 {dimension_numbers = #tpu.dot_dimension_numbers<[1], [0], [0], [1], [0, 0, 1, 1], [], []>} : vector<16x64xf32>, vector<64x32xf32>, vector<16x32xf32> -> vector<16x32xf32>
    %c1_180 = arith.constant 1 : index
    %c0_181 = arith.constant 0 : index
    %c0_182 = arith.constant 0 : index
    %413 = vector.load %arg19[%c1_180, %c0_181, %c0_182] : memref<2x1x32xf32, #tpu.memory_space<vmem>>, vector<1x1x32xf32>
    %414 = vector.shape_cast %413 : vector<1x1x32xf32> to vector<1x32xf32>
    %415 = vector.broadcast %414 : vector<1x32xf32> to vector<16x32xf32>
    %416 = arith.addf %412, %415 : vector<16x32xf32>
    %417 = arith.addf %416, %400 : vector<16x32xf32>
    %c1_183 = arith.constant 1 : index
    %c0_184 = arith.constant 0 : index
    %c0_185 = arith.constant 0 : index
    %418 = vector.load %arg20[%c1_183, %c0_184, %c0_185] : memref<2x1x32xf32, #tpu.memory_space<vmem>>, vector<1x1x32xf32>
    %419 = vector.shape_cast %418 : vector<1x1x32xf32> to vector<1x32xf32>
    %c1_186 = arith.constant 1 : index
    %c0_187 = arith.constant 0 : index
    %c0_188 = arith.constant 0 : index
    %420 = vector.load %arg21[%c1_186, %c0_187, %c0_188] : memref<2x1x32xf32, #tpu.memory_space<vmem>>, vector<1x1x32xf32>
    %421 = vector.shape_cast %420 : vector<1x1x32xf32> to vector<1x32xf32>
    %cst_189 = arith.constant dense<0.000000e+00> : vector<16xf32>
    %422 = vector.multi_reduction <add>, %417, %cst_189 [1] : vector<16x32xf32> to vector<16xf32>
    %423 = vector.shape_cast %422 : vector<16xf32> to vector<16x1xf32>
    %cst_190 = arith.constant 3.200000e+01 : f32
    %424 = vector.broadcast %cst_190 : f32 to vector<16x1xf32>
    %425 = arith.divf %423, %424 : vector<16x1xf32>
    %426 = vector.broadcast %425 : vector<16x1xf32> to vector<16x32xf32>
    %427 = arith.subf %417, %426 : vector<16x32xf32>
    %428 = arith.mulf %427, %427 : vector<16x32xf32>
    %cst_191 = arith.constant dense<0.000000e+00> : vector<16xf32>
    %429 = vector.multi_reduction <add>, %428, %cst_191 [1] : vector<16x32xf32> to vector<16xf32>
    %430 = vector.shape_cast %429 : vector<16xf32> to vector<16x1xf32>
    %cst_192 = arith.constant 3.200000e+01 : f32
    %431 = vector.broadcast %cst_192 : f32 to vector<16x1xf32>
    %432 = arith.divf %430, %431 : vector<16x1xf32>
    %433 = vector.broadcast %425 : vector<16x1xf32> to vector<16x32xf32>
    %434 = arith.subf %417, %433 : vector<16x32xf32>
    %cst_193 = arith.constant 9.99999997E-7 : f32
    %435 = vector.broadcast %cst_193 : f32 to vector<16x1xf32>
    %436 = arith.addf %432, %435 : vector<16x1xf32>
    %437 = math.rsqrt %436 : vector<16x1xf32>
    %438 = vector.broadcast %437 : vector<16x1xf32> to vector<16x32xf32>
    %439 = arith.mulf %434, %438 : vector<16x32xf32>
    %440 = vector.broadcast %419 : vector<1x32xf32> to vector<16x32xf32>
    %441 = arith.mulf %439, %440 : vector<16x32xf32>
    %442 = vector.broadcast %421 : vector<1x32xf32> to vector<16x32xf32>
    %443 = arith.addf %441, %442 : vector<16x32xf32>
    %c0_194 = arith.constant 0 : index
    %c0_195 = arith.constant 0 : index
    %444 = vector.load %arg22[%c0_194, %c0_195] : memref<16x32xf32, #tpu.memory_space<vmem>>, vector<16x32xf32>
    tpu.vector_store %arg22[%c0_194, %c0_195], %443 {strides = array<i32>} : memref<16x32xf32, #tpu.memory_space<vmem>>, vector<16x32xf32>,
    return
  }
}

</mosaic_0001>

<llo_original>
// kernel: tpu_custom_call.1
$region0: #{tpu_custom_call.1}
  #allocation0 [shape = 'u32[]', space=smem, size = 0x4, offset = 0x4, fixed_abs, tag = 'smem constant byte address 0x4 - core index']
  #allocation1 [shape = 'u32[72,128]{1,0:T(1,128)}', space=vmem, size = 0x9000, scoped, tag = 'internal scratch']
  %s0 = inlined_call_operand.hbm [shape: f32[16,32], index: 0, kind: input, shape index: {}]
  %s1 = inlined_call_operand.hbm [shape: f32[8,32], index: 1, kind: input, shape index: {}]
  %s2 = inlined_call_operand.hbm [shape: f32[32,32], index: 2, kind: input, shape index: {}]
  %s3 = inlined_call_operand.hbm [shape: f32[2,8,8], index: 3, kind: input, shape index: {}]
  %s4 = inlined_call_operand.vmem [shape: f32[2,1,16], index: 4, kind: input, shape index: {}]
  %s5 = inlined_call_operand.hbm [shape: f32[1,32], index: 5, kind: input, shape index: {}]
  %s6 = inlined_call_operand.hbm [shape: f32[1,32], index: 6, kind: input, shape index: {}]
  %s7 = inlined_call_operand.vmem [shape: f32[2,32,96], index: 7, kind: input, shape index: {}]
  %s8 = inlined_call_operand.vmem [shape: f32[2,32,32], index: 8, kind: input, shape index: {}]
  %s9 = inlined_call_operand.vmem [shape: f32[2,1,32], index: 9, kind: input, shape index: {}]
  %s10 = inlined_call_operand.vmem [shape: f32[2,1,32], index: 10, kind: input, shape index: {}]
  %s11 = inlined_call_operand.vmem [shape: f32[2,32,32], index: 11, kind: input, shape index: {}]
  %s12 = inlined_call_operand.hbm [shape: f32[2,32,64], index: 12, kind: input, shape index: {}]
  %s13 = inlined_call_operand.hbm [shape: f32[2,32,32], index: 13, kind: input, shape index: {}]
  %s14 = inlined_call_operand.vmem [shape: f32[2,1,32], index: 14, kind: input, shape index: {}]
  %s15 = inlined_call_operand.vmem [shape: f32[2,1,32], index: 15, kind: input, shape index: {}]
  %s16 = inlined_call_operand.hbm [shape: f32[2,32,64], index: 16, kind: input, shape index: {}]
  %s17 = inlined_call_operand.vmem [shape: f32[2,1,64], index: 17, kind: input, shape index: {}]
  %s18 = inlined_call_operand.vmem [shape: f32[2,64,32], index: 18, kind: input, shape index: {}]
  %s19 = inlined_call_operand.vmem [shape: f32[2,1,32], index: 19, kind: input, shape index: {}]
  %s20 = inlined_call_operand.vmem [shape: f32[2,1,32], index: 20, kind: input, shape index: {}]
  %s21 = inlined_call_operand.vmem [shape: f32[2,1,32], index: 21, kind: input, shape index: {}]
  %s22 = inlined_call_operand.hbm [shape: f32[16,32], index: 22, kind: output, shape index: {}]
  %s23 = sld [smem:[#allocation0]]
  $region134: #{tpu_custom_call.1} parent=0
    _
  %s25 = ssub.s32 1, %s23
  %s26 = scalar_select 0, %s25, %s23
  $region1: #{tpu_custom_call.1} parent=0
    #allocation2 [shape = 'u8[8192]{0}', space=vmem, size = 0x2000, scoped, tag = 'input window, operand 0, single buffered']
    #allocation3 [shape = 's32[1]{0}', space=sflag, size = 0x4, scoped, tag = 'scoped memory for tpu_custom_call.1']
    #allocation4 [shape = 's32[1]{0}', space=sflag, size = 0x4, scoped, tag = 'scoped memory for tpu_custom_call.1']
    #allocation5 [shape = 'u8[4096]{0}', space=vmem, size = 0x1000, scoped, tag = 'input window, operand 1, single buffered']
    #allocation6 [shape = 's32[1]{0}', space=sflag, size = 0x4, scoped, tag = 'scoped memory for tpu_custom_call.1']
    #allocation7 [shape = 'u8[16384]{0}', space=vmem, size = 0x4000, scoped, tag = 'input window, operand 2, single buffered']
    #allocation8 [shape = 'u8[8192]{0}', space=vmem, size = 0x2000, scoped, tag = 'input window, operand 3, single buffered']
    #allocation9 [shape = 's32[1]{0}', space=sflag, size = 0x4, scoped, tag = 'scoped memory for tpu_custom_call.1']
    #allocation10 [shape = 'u8[512]{0}', space=vmem, size = 0x400, scoped, tag = 'input window, operand 5, single buffered']
    #allocation11 [shape = 'u8[512]{0}', space=vmem, size = 0x400, scoped, tag = 'input window, operand 6, single buffered']
    #allocation12 [shape = 's32[1]{0}', space=sflag, size = 0x4, scoped, tag = 'scoped memory for tpu_custom_call.1']
    #allocation13 [shape = 'u8[32768]{0}', space=vmem, size = 0x8000, scoped, tag = 'input window, operand 12, single buffered']
    #allocation14 [shape = 'u8[32768]{0}', space=vmem, size = 0x8000, scoped, tag = 'input window, operand 13, single buffered']
    #allocation15 [shape = 's32[1]{0}', space=sflag, size = 0x4, scoped, tag = 'scoped memory for tpu_custom_call.1']
    #allocation16 [shape = 'u8[32768]{0}', space=vmem, size = 0x8000, scoped, tag = 'input window, operand 16, single buffered']
    #allocation17 [shape = 'u8[8192]{0}', space=vmem, size = 0x2000, scoped, tag = 'output window, operand 0, single buffered']
    %27 = vsyncpa [#allocation3], 0
    %28 = vsyncpa [#allocation6], 0
    %29 = vsyncpa [#allocation9], 0
    %30 = vsyncpa [#allocation12], 0
    %31 = vsyncpa [#allocation15], 0
    %32 = vsyncpa [#allocation4], 0
    // Predicated region
    $region2: #{tpu_custom_call.1} parent=1 // pred_check
      _
    $region3: #{tpu_custom_call.1} parent=1 // pred_check_branch
      %34 = sbr.rel (0) target = $region5
    $region4: #{tpu_custom_call.1} parent=1 // pred_region
      %36 = vsyncadd [#allocation3], 0
      %s37 = sshll.u32 %s0, 4
      %s38 = int_to_ptr.hbm [resolvable:$true] %s37
      %s39 = sshll.u32 [#allocation2], 4
      %s40 = int_to_ptr.vmem [resolvable:$true] %s39
      %45 = dma.hbm_to_vmem [thread:$0]  %s38, 256, %s40, [#allocation3], 128, 128, 8
    $region5: #{tpu_custom_call.1} parent=1 // pred_fallthru
      _
    // Predicated region
    $region6: #{tpu_custom_call.1} parent=1 // pred_check
      _
    $region7: #{tpu_custom_call.1} parent=1 // pred_check_branch
      %47 = sbr.rel (0) target = $region9
    $region8: #{tpu_custom_call.1} parent=1 // pred_region
      %49 = vsyncadd [#allocation6], 0
      %s51 = sshll.u32 %s1, 4
      %s52 = int_to_ptr.hbm [resolvable:$true] %s51
      %s53 = sshll.u32 [#allocation5], 4
      %s54 = int_to_ptr.vmem [resolvable:$true] %s53
      %56 = dma.hbm_to_vmem [thread:$0]  %s52, 128, %s54, [#allocation6]
    $region9: #{tpu_custom_call.1} parent=1 // pred_fallthru
      _
    // Predicated region
    $region10: #{tpu_custom_call.1} parent=1 // pred_check
      _
    $region11: #{tpu_custom_call.1} parent=1 // pred_check_branch
      %58 = sbr.rel (0) target = $region13
    $region12: #{tpu_custom_call.1} parent=1 // pred_region
      %60 = vsyncadd [#allocation6], 0
      %s61 = sshll.u32 %s2, 4
      %s62 = int_to_ptr.hbm [resolvable:$true] %s61
      %s63 = sshll.u32 [#allocation7], 4
      %s64 = int_to_ptr.vmem [resolvable:$true] %s63
      %69 = dma.hbm_to_vmem [thread:$0]  %s62, 512, %s64, [#allocation6], 128, 128, 8
    $region13: #{tpu_custom_call.1} parent=1 // pred_fallthru
      _
    // Predicated region
    $region14: #{tpu_custom_call.1} parent=1 // pred_check
      _
    $region15: #{tpu_custom_call.1} parent=1 // pred_check_branch
      %71 = sbr.rel (0) target = $region17
    $region16: #{tpu_custom_call.1} parent=1 // pred_region
      %73 = vsyncadd [#allocation9], 0
      %s74 = sshll.u32 %s3, 4
      %s75 = int_to_ptr.hbm [resolvable:$true] %s74
      %s76 = sshll.u32 [#allocation8], 4
      %s77 = int_to_ptr.vmem [resolvable:$true] %s76
      %82 = dma.hbm_to_vmem [thread:$0]  %s75, 256, %s77, [#allocation9], 128, 128, 8
    $region17: #{tpu_custom_call.1} parent=1 // pred_fallthru
      _
    // Predicated region
    $region18: #{tpu_custom_call.1} parent=1 // pred_check
      _
    $region19: #{tpu_custom_call.1} parent=1 // pred_check_branch
      %84 = sbr.rel (0) target = $region21
    $region20: #{tpu_custom_call.1} parent=1 // pred_region
      _
    $region21: #{tpu_custom_call.1} parent=1 // pred_fallthru
      _
    // Predicated region
    $region22: #{tpu_custom_call.1} parent=1 // pred_check
      _
    $region23: #{tpu_custom_call.1} parent=1 // pred_check_branch
      %86 = sbr.rel (0) target = $region25
    $region24: #{tpu_custom_call.1} parent=1 // pred_region
      %88 = vsyncadd [#allocation9], 0
      %s90 = sshll.u32 %s5, 4
      %s91 = int_to_ptr.hbm [resolvable:$true] %s90
      %s92 = sshll.u32 [#allocation10], 4
      %s93 = int_to_ptr.vmem [resolvable:$true] %s92
      %95 = dma.hbm_to_vmem [thread:$0]  %s91, 16, %s93, [#allocation9]
    $region25: #{tpu_custom_call.1} parent=1 // pred_fallthru
      _
    // Predicated region
    $region26: #{tpu_custom_call.1} parent=1 // pred_check
      _
    $region27: #{tpu_custom_call.1} parent=1 // pred_check_branch
      %97 = sbr.rel (0) target = $region29
    $region28: #{tpu_custom_call.1} parent=1 // pred_region
      %99 = vsyncadd [#allocation12], 0
      %s101 = sshll.u32 %s6, 4
      %s102 = int_to_ptr.hbm [resolvable:$true] %s101
      %s103 = sshll.u32 [#allocation11], 4
      %s104 = int_to_ptr.vmem [resolvable:$true] %s103
      %106 = dma.hbm_to_vmem [thread:$0]  %s102, 16, %s104, [#allocation12]
    $region29: #{tpu_custom_call.1} parent=1 // pred_fallthru
      _
    // Predicated region
    $region30: #{tpu_custom_call.1} parent=1 // pred_check
      _
    $region31: #{tpu_custom_call.1} parent=1 // pred_check_branch
      %108 = sbr.rel (0) target = $region33
    $region32: #{tpu_custom_call.1} parent=1 // pred_region
      _
    $region33: #{tpu_custom_call.1} parent=1 // pred_fallthru
      _
    // Predicated region
    $region34: #{tpu_custom_call.1} parent=1 // pred_check
      _
    $region35: #{tpu_custom_call.1} parent=1 // pred_check_branch
      %110 = sbr.rel (0) target = $region37
    $region36: #{tpu_custom_call.1} parent=1 // pred_region
      _
    $region37: #{tpu_custom_call.1} parent=1 // pred_fallthru
      _
    // Predicated region
    $region38: #{tpu_custom_call.1} parent=1 // pred_check
      _
    $region39: #{tpu_custom_call.1} parent=1 // pred_check_branch
      %112 = sbr.rel (0) target = $region41
    $region40: #{tpu_custom_call.1} parent=1 // pred_region
      _
    $region41: #{tpu_custom_call.1} parent=1 // pred_fallthru
      _
    // Predicated region
    $region42: #{tpu_custom_call.1} parent=1 // pred_check
      _
    $region43: #{tpu_custom_call.1} parent=1 // pred_check_branch
      %114 = sbr.rel (0) target = $region45
    $region44: #{tpu_custom_call.1} parent=1 // pred_region
      _
    $region45: #{tpu_custom_call.1} parent=1 // pred_fallthru
      _
    // Predicated region
    $region46: #{tpu_custom_call.1} parent=1 // pred_check
      _
    $region47: #{tpu_custom_call.1} parent=1 // pred_check_branch
      %116 = sbr.rel (0) target = $region49
    $region48: #{tpu_custom_call.1} parent=1 // pred_region
      _
    $region49: #{tpu_custom_call.1} parent=1 // pred_fallthru
      _
    // Predicated region
    $region50: #{tpu_custom_call.1} parent=1 // pred_check
      _
    $region51: #{tpu_custom_call.1} parent=1 // pred_check_branch
      %118 = sbr.rel (0) target = $region53
    $region52: #{tpu_custom_call.1} parent=1 // pred_region
      %120 = vsyncadd [#allocation12], 0
      %s121 = sshll.u32 %s12, 4
      %s122 = int_to_ptr.hbm [resolvable:$true] %s121
      %s123 = sshll.u32 [#allocation13], 4
      %s124 = int_to_ptr.vmem [resolvable:$true] %s123
      %129 = dma.hbm_to_vmem [thread:$0]  %s122, 1024, %s124, [#allocation12], 128, 128, 8
    $region53: #{tpu_custom_call.1} parent=1 // pred_fallthru
      _
    // Predicated region
    $region54: #{tpu_custom_call.1} parent=1 // pred_check
      _
    $region55: #{tpu_custom_call.1} parent=1 // pred_check_branch
      %131 = sbr.rel (0) target = $region57
    $region56: #{tpu_custom_call.1} parent=1 // pred_region
      %133 = vsyncadd [#allocation15], 0
      %s134 = sshll.u32 %s13, 4
      %s135 = int_to_ptr.hbm [resolvable:$true] %s134
      %s136 = sshll.u32 [#allocation14], 4
      %s137 = int_to_ptr.vmem [resolvable:$true] %s136
      %142 = dma.hbm_to_vmem [thread:$0]  %s135, 1024, %s137, [#allocation15], 128, 128, 8
    $region57: #{tpu_custom_call.1} parent=1 // pred_fallthru
      _
    // Predicated region
    $region58: #{tpu_custom_call.1} parent=1 // pred_check
      _
    $region59: #{tpu_custom_call.1} parent=1 // pred_check_branch
      %144 = sbr.rel (0) target = $region61
    $region60: #{tpu_custom_call.1} parent=1 // pred_region
      _
    $region61: #{tpu_custom_call.1} parent=1 // pred_fallthru
      _
    // Predicated region
    $region62: #{tpu_custom_call.1} parent=1 // pred_check
      _
    $region63: #{tpu_custom_call.1} parent=1 // pred_check_branch
      %146 = sbr.rel (0) target = $region65
    $region64: #{tpu_custom_call.1} parent=1 // pred_region
      _
    $region65: #{tpu_custom_call.1} parent=1 // pred_fallthru
      _
    // Predicated region
    $region66: #{tpu_custom_call.1} parent=1 // pred_check
      _
    $region67: #{tpu_custom_call.1} parent=1 // pred_check_branch
      %148 = sbr.rel (0) target = $region69
    $region68: #{tpu_custom_call.1} parent=1 // pred_region
      %150 = vsyncadd [#allocation15], 0
      %s151 = sshll.u32 %s16, 4
      %s152 = int_to_ptr.hbm [resolvable:$true] %s151
      %s153 = sshll.u32 [#allocation16], 4
      %s154 = int_to_ptr.vmem [resolvable:$true] %s153
      %159 = dma.hbm_to_vmem [thread:$0]  %s152, 1024, %s154, [#allocation15], 128, 128, 8
    $region69: #{tpu_custom_call.1} parent=1 // pred_fallthru
      _
    // Predicated region
    $region70: #{tpu_custom_call.1} parent=1 // pred_check
      _
    $region71: #{tpu_custom_call.1} parent=1 // pred_check_branch
      %161 = sbr.rel (0) target = $region73
    $region72: #{tpu_custom_call.1} parent=1 // pred_region
      _
    $region73: #{tpu_custom_call.1} parent=1 // pred_fallthru
      _
    // Predicated region
    $region74: #{tpu_custom_call.1} parent=1 // pred_check
      _
    $region75: #{tpu_custom_call.1} parent=1 // pred_check_branch
      %163 = sbr.rel (0) target = $region77
    $region76: #{tpu_custom_call.1} parent=1 // pred_region
      _
    $region77: #{tpu_custom_call.1} parent=1 // pred_fallthru
      _
    // Predicated region
    $region78: #{tpu_custom_call.1} parent=1 // pred_check
      _
    $region79: #{tpu_custom_call.1} parent=1 // pred_check_branch
      %165 = sbr.rel (0) target = $region81
    $region80: #{tpu_custom_call.1} parent=1 // pred_region
      _
    $region81: #{tpu_custom_call.1} parent=1 // pred_fallthru
      _
    // Predicated region
    $region82: #{tpu_custom_call.1} parent=1 // pred_check
      _
    $region83: #{tpu_custom_call.1} parent=1 // pred_check_branch
      %167 = sbr.rel (0) target = $region85
    $region84: #{tpu_custom_call.1} parent=1 // pred_region
      _
    $region85: #{tpu_custom_call.1} parent=1 // pred_fallthru
      _
    // Predicated region
    $region86: #{tpu_custom_call.1} parent=1 // pred_check
      _
    $region87: #{tpu_custom_call.1} parent=1 // pred_check_branch
      %169 = sbr.rel (0) target = $region89
    $region88: #{tpu_custom_call.1} parent=1 // pred_region
      _
    $region89: #{tpu_custom_call.1} parent=1 // pred_fallthru
      _
    // Predicated region
    $region90: #{tpu_custom_call.1} parent=1 // pred_check
      _
    $region91: #{tpu_custom_call.1} parent=1 // pred_check_branch
      %171 = sbr.rel (0) target = $region93
    $region92: #{tpu_custom_call.1} parent=1 // pred_region
      %173 = dma.done [#allocation3], 256
    $region93: #{tpu_custom_call.1} parent=1 // pred_fallthru
      _
    // Predicated region
    $region94: #{tpu_custom_call.1} parent=1 // pred_check
      _
    $region95: #{tpu_custom_call.1} parent=1 // pred_check_branch
      %175 = sbr.rel (0) target = $region97
    $region96: #{tpu_custom_call.1} parent=1 // pred_region
      %177 = dma.done [#allocation6], 128
    $region97: #{tpu_custom_call.1} parent=1 // pred_fallthru
      _
    // Predicated region
    $region98: #{tpu_custom_call.1} parent=1 // pred_check
      _
    $region99: #{tpu_custom_call.1} parent=1 // pred_check_branch
      %179 = sbr.rel (0) target = $region101
    $region100: #{tpu_custom_call.1} parent=1 // pred_region
      %181 = dma.done [#allocation6], 512
    $region101: #{tpu_custom_call.1} parent=1 // pred_fallthru
      _
    // Predicated region
    $region102: #{tpu_custom_call.1} parent=1 // pred_check
      _
    $region103: #{tpu_custom_call.1} parent=1 // pred_check_branch
      %183 = sbr.rel (0) target = $region105
    $region104: #{tpu_custom_call.1} parent=1 // pred_region
      %185 = dma.done [#allocation9], 256
    $region105: #{tpu_custom_call.1} parent=1 // pred_fallthru
      _
    // Predicated region
    $region106: #{tpu_custom_call.1} parent=1 // pred_check
      _
    $region107: #{tpu_custom_call.1} parent=1 // pred_check_branch
      %187 = sbr.rel (0) target = $region109
    $region108: #{tpu_custom_call.1} parent=1 // pred_region
      %189 = dma.done [#allocation9], 16
    $region109: #{tpu_custom_call.1} parent=1 // pred_fallthru
      _
    // Predicated region
    $region110: #{tpu_custom_call.1} parent=1 // pred_check
      _
    $region111: #{tpu_custom_call.1} parent=1 // pred_check_branch
      %191 = sbr.rel (0) target = $region113
    $region112: #{tpu_custom_call.1} parent=1 // pred_region
      %193 = dma.done [#allocation12], 16
    $region113: #{tpu_custom_call.1} parent=1 // pred_fallthru
      _
    // Predicated region
    $region114: #{tpu_custom_call.1} parent=1 // pred_check
      _
    $region115: #{tpu_custom_call.1} parent=1 // pred_check_branch
      %195 = sbr.rel (0) target = $region117
    $region116: #{tpu_custom_call.1} parent=1 // pred_region
      %197 = dma.done [#allocation12], 1024
    $region117: #{tpu_custom_call.1} parent=1 // pred_fallthru
      _
    // Predicated region
    $region118: #{tpu_custom_call.1} parent=1 // pred_check
      _
    $region119: #{tpu_custom_call.1} parent=1 // pred_check_branch
      %199 = sbr.rel (0) target = $region121
    $region120: #{tpu_custom_call.1} parent=1 // pred_region
      %201 = dma.done [#allocation15], 1024
    $region121: #{tpu_custom_call.1} parent=1 // pred_fallthru
      _
    // Predicated region
    $region122: #{tpu_custom_call.1} parent=1 // pred_check
      _
    $region123: #{tpu_custom_call.1} parent=1 // pred_check_branch
      %203 = sbr.rel (0) target = $region125
    $region124: #{tpu_custom_call.1} parent=1 // pred_region
      %205 = dma.done [#allocation15], 1024
    $region125: #{tpu_custom_call.1} parent=1 // pred_fallthru
      _
    %v206 = vld [vmem:[#allocation2] sm:$0xff]
    %v207 = vld [vmem:[#allocation2 + $0x8] sm:$0xff]
    %v208 = vld [vmem:[#allocation5] sm:$0xff]
    %v209 = vadd.f32 %v206, %v208
    %v210 = vadd.f32 %v207, %v208
    %v211 = vld [vmem:[#allocation10] sm:$0x1]
    %v212 = vld [vmem:[#allocation11] sm:$0x1]
    %vm213 = vcmask 261120
    %v214 = vsel %vm213, %v209, 0.0
    %215 = vadd.xlane.f32.xlu0 %v214
    %v216 = vpop.xlane.xlu0 %215
    %v217 = vsel %vm213, %v210, 0.0
    %218 = vadd.xlane.f32.xlu0 %v217
    %v219 = vpop.xlane.xlu0 %218
    %v220 = vrcp.pop 32.0
    %v221 = vmul.f32 32.0, %v220
    %v222 = vsub.f32 1.0, %v221
    %v223 = vmul.f32 %v220, %v222
    %v224 = vadd.f32 %v220, %v223
    %vm225 = vweird.f32 %v220
    %v226 = vsel %vm225, %v220, %v224
    %v227 = vmul.f32 %v216, %v226
    %v228 = vmul.f32 %v219, %v226
    %v229 = vsub.f32 %v209, %v227
    %v230 = vsub.f32 %v210, %v228
    %v231 = vmul.f32 %v229, %v229
    %v232 = vmul.f32 %v230, %v230
    %v233 = vsel %vm213, %v231, 0.0
    %234 = vadd.xlane.f32.xlu0 %v233
    %v235 = vpop.xlane.xlu0 %234
    %v236 = vsel %vm213, %v232, 0.0
    %237 = vadd.xlane.f32.xlu0 %v236
    %v238 = vpop.xlane.xlu0 %237
    %v239 = vmul.f32 %v235, %v226
    %v240 = vmul.f32 %v238, %v226
    %v241 = vadd.f32 %v239, 1e-06
    %v242 = vadd.f32 %v240, 1e-06
    %v243 = vrsqrt.pop %v241
    %v244 = vmul.f32 %v243, %v241
    %v245 = vmul.f32 %v244, %v243
    %v246 = vmul.f32 0.5, %v245
    %v247 = vsub.f32 1.5, %v246
    %v248 = vmul.f32 %v243, %v247
    %vm249 = vweird.f32 %v241
    %vm250 = vweird.f32 %v243
    %vm251 = vmor %vm249, %vm250
    %v252 = vsel %vm251, %v243, %v248
    %v253 = vrsqrt.pop %v242
    %v254 = vmul.f32 %v253, %v242
    %v255 = vmul.f32 %v254, %v253
    %v256 = vmul.f32 0.5, %v255
    %v257 = vsub.f32 1.5, %v256
    %v258 = vmul.f32 %v253, %v257
    %vm259 = vweird.f32 %v242
    %vm260 = vweird.f32 %v253
    %vm261 = vmor %vm259, %vm260
    %v262 = vsel %vm261, %v253, %v258
    %v263 = vmul.f32 %v229, %v252
    %v264 = vmul.f32 %v230, %v262
    %v266 = vperm.slane %v211, 0
    %v268 = vmul.f32 %v263, %v266
    %v269 = vmul.f32 %v264, %v266
    %v271 = vperm.slane %v212, 0
    %v273 = vadd.f32 %v268, %v271
    %v274 = vadd.f32 %v269, %v271
    %v275 = vld [vmem:[#allocation7] sm:$0xff]
    %v276 = vld [vmem:[#allocation7 + $0x8] sm:$0xff]
    %v277 = vld [vmem:[#allocation7 + $0x10] sm:$0xff]
    %v278 = vld [vmem:[#allocation7 + $0x18] sm:$0xff]
    %v279 = vld [vmem:[#allocation8] sm:$0xff]
    %v280 = vld [vmem:[#allocation8 + $0x8] sm:$0xff]
    %v281 = vld [vmem:[%s4] sm:$0x1]
    %v282 = vld [vmem:[%s4 + $0x1] sm:$0x1]
    %v283 = vld [vmem:[%s7] sm:$0xff]
    %v284 = vld [vmem:[%s7 + $0x8] sm:$0xff]
    %v285 = vld [vmem:[%s7 + $0x10] sm:$0xff]
    %v286 = vld [vmem:[%s7 + $0x18] sm:$0xff]
    %v288 = vsel %vm213, %v273, 0
    %v291 = vsel %vm213, %v274, 0
    %293 = vmatpush.msra.mxu0 0.0
    %294 = vmatpush.msra.mxu0 0.0
    %295 = vmatpush.msra.mxu0 0.0
    %296 = vmatpush.msra.mxu0 0.0
    %297 = vmatpush.msra.mxu0 0.0
    %298 = vmatpush.msra.mxu0 0.0
    %299 = vmatpush.msra.mxu0 0.0
    %300 = vmatpush.msra.mxu0 0.0
    %301 = vmatpush.msra.mxu0 0.0
    %302 = vmatpush.msra.mxu0 0.0
    %303 = vmatpush.msra.mxu0 0.0
    %304 = vmatpush.msra.mxu0 0.0
    %305 = vmatpush.msra.mxu0 %v286
    %306 = vmatpush.msra.mxu0 %v285
    %307 = vmatpush.msra.mxu0 %v284
    %308 = vmatpush.msra.mxu0 %v283
    %309 = vmatmul.f32.gmra.mxu0 %v288
    %v310 = vpop.f32.mrf.mxu0
    %v311 = vadd.f32 0.0, %v310
    %312 = vmatmul.f32.gmra.mxu0 %v291
    %v313 = vpop.f32.mrf.mxu0
    %v314 = vadd.f32 0.0, %v313
    %315 = vdwg.mxu0
    %v316 = vmul.f32 %v311, 0.25
    %v317 = vmul.f32 %v314, 0.25
    %v318 = vld [vmem:[%s8] sm:$0xff]
    %v319 = vld [vmem:[%s8 + $0x8] sm:$0xff]
    %v320 = vld [vmem:[%s8 + $0x10] sm:$0xff]
    %v321 = vld [vmem:[%s8 + $0x18] sm:$0xff]
    %v322 = vld [vmem:[%s9] sm:$0x1]
    %v323 = vld [vmem:[%s10] sm:$0x1]
    %325 = vrot.lane.b32.xlu0 %v311, 96
    %v326 = vpop.permute.xlu0 %325
    %vm327 = vcmask 130048
    %v329 = vsel %vm327, %v316, 0
    %v331 = vsel %vm327, %v326, 0
    %333 = vmatpush.xpose.msra.mxu0 0.0
    %334 = vmatpush.xpose.msra.mxu0 0.0
    %335 = vmatpush.xpose.msra.mxu0 0.0
    %336 = vmatpush.xpose.msra.mxu0 0.0
    %337 = vmatpush.xpose.msra.mxu0 0.0
    %338 = vmatpush.xpose.msra.mxu0 0.0
    %339 = vmatpush.xpose.msra.mxu0 0.0
    %340 = vmatpush.xpose.msra.mxu0 0.0
    %341 = vmatpush.xpose.msra.mxu0 0.0
    %342 = vmatpush.xpose.msra.mxu0 0.0
    %343 = vmatpush.xpose.msra.mxu0 0.0
    %344 = vmatpush.xpose.msra.mxu0 0.0
    %345 = vmatpush.xpose.msra.mxu0 0.0
    %346 = vmatpush.xpose.msra.mxu0 0.0
    %347 = vmatpush.xpose.msra.mxu0 0.0
    %348 = vmatpush.xpose.msra.mxu0 %v331
    %349 = vmatmul.f32.gmra.mxu0 %v329
    %v350 = vpop.f32.mrf.mxu0
    %v351 = vadd.f32 %v279, %v350
    %352 = vdwg.mxu0
    %354 = vrot.lane.b32.xlu0 %v314, 96
    %v355 = vpop.permute.xlu0 %354
    %v357 = vsel %vm327, %v317, 0
    %v359 = vsel %vm327, %v355, 0
    %361 = vmatpush.xpose.msra.mxu0 0.0
    %362 = vmatpush.xpose.msra.mxu0 0.0
    %363 = vmatpush.xpose.msra.mxu0 0.0
    %364 = vmatpush.xpose.msra.mxu0 0.0
    %365 = vmatpush.xpose.msra.mxu0 0.0
    %366 = vmatpush.xpose.msra.mxu0 0.0
    %367 = vmatpush.xpose.msra.mxu0 0.0
    %368 = vmatpush.xpose.msra.mxu0 0.0
    %369 = vmatpush.xpose.msra.mxu0 0.0
    %370 = vmatpush.xpose.msra.mxu0 0.0
    %371 = vmatpush.xpose.msra.mxu0 0.0
    %372 = vmatpush.xpose.msra.mxu0 0.0
    %373 = vmatpush.xpose.msra.mxu0 0.0
    %374 = vmatpush.xpose.msra.mxu0 0.0
    %375 = vmatpush.xpose.msra.mxu0 0.0
    %376 = vmatpush.xpose.msra.mxu0 %v359
    %377 = vmatmul.f32.gmra.mxu0 %v357
    %v378 = vpop.f32.mrf.mxu0
    %v379 = vadd.f32 %v280, %v378
    %380 = vdwg.mxu0
    %vm381 = vcmask 64512
    %v382 = vsel %vm381, %v351, -inf
    %383 = vmax.xlane.f32.xlu0 %v382
    %v384 = vpop.xlane.xlu0 %383
    %v385 = vsel %vm381, %v379, -inf
    %386 = vmax.xlane.f32.xlu0 %v385
    %v387 = vpop.xlane.xlu0 %386
    %v388 = vsub.f32 %v351, %v384
    %v389 = vsub.f32 %v379, %v387
    %v390 = vmul.f32 %v388, 1.442695
    %v391 = vpow.pop %v390
    %v392 = vmul.f32 %v389, 1.442695
    %v393 = vpow.pop %v392
    %v394 = vsel %vm381, %v391, 0.0
    %395 = vadd.xlane.f32.xlu0 %v394
    %v396 = vpop.xlane.xlu0 %395
    %v397 = vsel %vm381, %v393, 0.0
    %398 = vadd.xlane.f32.xlu0 %v397
    %v399 = vpop.xlane.xlu0 %398
    %v400 = vrcp.pop %v396
    %v401 = vrcp.pop %v399
    %v402 = vmul.f32 %v391, %v400
    %v403 = vmul.f32 %v393, %v401
    %404 = vrot.lane.b32.xlu0 %v311, 64
    %v405 = vpop.permute.xlu0 %404
    %v408 = vsel %vm381, %v402, 0
    %410 = vmatpush.msra.mxu0 0.0
    %411 = vmatpush.msra.mxu0 0.0
    %412 = vmatpush.msra.mxu0 0.0
    %413 = vmatpush.msra.mxu0 0.0
    %414 = vmatpush.msra.mxu0 0.0
    %415 = vmatpush.msra.mxu0 0.0
    %416 = vmatpush.msra.mxu0 0.0
    %417 = vmatpush.msra.mxu0 0.0
    %418 = vmatpush.msra.mxu0 0.0
    %419 = vmatpush.msra.mxu0 0.0
    %420 = vmatpush.msra.mxu0 0.0
    %421 = vmatpush.msra.mxu0 0.0
    %422 = vmatpush.msra.mxu0 0.0
    %423 = vmatpush.msra.mxu0 0.0
    %424 = vmatpush.msra.mxu0 0.0
    %425 = vmatpush.msra.mxu0 %v405
    %426 = vmatmul.f32.gmra.mxu0 %v408
    %v427 = vpop.f32.mrf.mxu0
    %v428 = vadd.f32 0.0, %v427
    %429 = vdwg.mxu0
    %430 = vrot.lane.b32.xlu0 %v314, 64
    %v431 = vpop.permute.xlu0 %430
    %v434 = vsel %vm381, %v403, 0
    %436 = vmatpush.msra.mxu0 0.0
    %437 = vmatpush.msra.mxu0 0.0
    %438 = vmatpush.msra.mxu0 0.0
    %439 = vmatpush.msra.mxu0 0.0
    %440 = vmatpush.msra.mxu0 0.0
    %441 = vmatpush.msra.mxu0 0.0
    %442 = vmatpush.msra.mxu0 0.0
    %443 = vmatpush.msra.mxu0 0.0
    %444 = vmatpush.msra.mxu0 0.0
    %445 = vmatpush.msra.mxu0 0.0
    %446 = vmatpush.msra.mxu0 0.0
    %447 = vmatpush.msra.mxu0 0.0
    %448 = vmatpush.msra.mxu0 0.0
    %449 = vmatpush.msra.mxu0 0.0
    %450 = vmatpush.msra.mxu0 0.0
    %451 = vmatpush.msra.mxu0 %v431
    %452 = vmatmul.f32.gmra.mxu0 %v434
    %v453 = vpop.f32.mrf.mxu0
    %v454 = vadd.f32 0.0, %v453
    %455 = vdwg.mxu0
    %456 = vrot.lane.b32.xlu0 %v316, 112
    %v457 = vpop.permute.xlu0 %456
    %458 = vrot.lane.b32.xlu0 %v311, 80
    %v459 = vpop.permute.xlu0 %458
    %v460 = vsel %vm327, %v457, 0
    %v462 = vsel %vm327, %v459, 0
    %464 = vmatpush.xpose.msra.mxu0 0.0
    %465 = vmatpush.xpose.msra.mxu0 0.0
    %466 = vmatpush.xpose.msra.mxu0 0.0
    %467 = vmatpush.xpose.msra.mxu0 0.0
    %468 = vmatpush.xpose.msra.mxu0 0.0
    %469 = vmatpush.xpose.msra.mxu0 0.0
    %470 = vmatpush.xpose.msra.mxu0 0.0
    %471 = vmatpush.xpose.msra.mxu0 0.0
    %472 = vmatpush.xpose.msra.mxu0 0.0
    %473 = vmatpush.xpose.msra.mxu0 0.0
    %474 = vmatpush.xpose.msra.mxu0 0.0
    %475 = vmatpush.xpose.msra.mxu0 0.0
    %476 = vmatpush.xpose.msra.mxu0 0.0
    %477 = vmatpush.xpose.msra.mxu0 0.0
    %478 = vmatpush.xpose.msra.mxu0 0.0
    %479 = vmatpush.xpose.msra.mxu0 %v462
    %480 = vmatmul.f32.gmra.mxu0 %v460
    %v481 = vpop.f32.mrf.mxu0
    %v482 = vadd.f32 %v279, %v481
    %483 = vdwg.mxu0
    %484 = vrot.lane.b32.xlu0 %v317, 112
    %v485 = vpop.permute.xlu0 %484
    %486 = vrot.lane.b32.xlu0 %v314, 80
    %v487 = vpop.permute.xlu0 %486
    %v488 = vsel %vm327, %v485, 0
    %v490 = vsel %vm327, %v487, 0
    %492 = vmatpush.xpose.msra.mxu0 0.0
    %493 = vmatpush.xpose.msra.mxu0 0.0
    %494 = vmatpush.xpose.msra.mxu0 0.0
    %495 = vmatpush.xpose.msra.mxu0 0.0
    %496 = vmatpush.xpose.msra.mxu0 0.0
    %497 = vmatpush.xpose.msra.mxu0 0.0
    %498 = vmatpush.xpose.msra.mxu0 0.0
    %499 = vmatpush.xpose.msra.mxu0 0.0
    %500 = vmatpush.xpose.msra.mxu0 0.0
    %501 = vmatpush.xpose.msra.mxu0 0.0
    %502 = vmatpush.xpose.msra.mxu0 0.0
    %503 = vmatpush.xpose.msra.mxu0 0.0
    %504 = vmatpush.xpose.msra.mxu0 0.0
    %505 = vmatpush.xpose.msra.mxu0 0.0
    %506 = vmatpush.xpose.msra.mxu0 0.0
    %507 = vmatpush.xpose.msra.mxu0 %v490
    %508 = vmatmul.f32.gmra.mxu0 %v488
    %v509 = vpop.f32.mrf.mxu0
    %v510 = vadd.f32 %v280, %v509
    %511 = vdwg.mxu0
    %v512 = vsel %vm381, %v482, -inf
    %513 = vmax.xlane.f32.xlu0 %v512
    %v514 = vpop.xlane.xlu0 %513
    %v515 = vsel %vm381, %v510, -inf
    %516 = vmax.xlane.f32.xlu0 %v515
    %v517 = vpop.xlane.xlu0 %516
    %v518 = vsub.f32 %v482, %v514
    %v519 = vsub.f32 %v510, %v517
    %v520 = vmul.f32 %v518, 1.442695
    %v521 = vpow.pop %v520
    %v522 = vmul.f32 %v519, 1.442695
    %v523 = vpow.pop %v522
    %v524 = vsel %vm381, %v521, 0.0
    %525 = vadd.xlane.f32.xlu0 %v524
    %v526 = vpop.xlane.xlu0 %525
    %v527 = vsel %vm381, %v523, 0.0
    %528 = vadd.xlane.f32.xlu0 %v527
    %v529 = vpop.xlane.xlu0 %528
    %v530 = vrcp.pop %v526
    %v531 = vrcp.pop %v529
    %v532 = vmul.f32 %v521, %v530
    %v533 = vmul.f32 %v523, %v531
    %534 = vrot.lane.b32.xlu0 %v311, 48
    %v535 = vpop.permute.xlu0 %534
    %v538 = vsel %vm381, %v532, 0
    %540 = vmatpush.msra.mxu0 0.0
    %541 = vmatpush.msra.mxu0 0.0
    %542 = vmatpush.msra.mxu0 0.0
    %543 = vmatpush.msra.mxu0 0.0
    %544 = vmatpush.msra.mxu0 0.0
    %545 = vmatpush.msra.mxu0 0.0
    %546 = vmatpush.msra.mxu0 0.0
    %547 = vmatpush.msra.mxu0 0.0
    %548 = vmatpush.msra.mxu0 0.0
    %549 = vmatpush.msra.mxu0 0.0
    %550 = vmatpush.msra.mxu0 0.0
    %551 = vmatpush.msra.mxu0 0.0
    %552 = vmatpush.msra.mxu0 0.0
    %553 = vmatpush.msra.mxu0 0.0
    %554 = vmatpush.msra.mxu0 0.0
    %555 = vmatpush.msra.mxu0 %v535
    %556 = vmatmul.f32.gmra.mxu0 %v538
    %v557 = vpop.f32.mrf.mxu0
    %v558 = vadd.f32 0.0, %v557
    %559 = vdwg.mxu0
    %560 = vrot.lane.b32.xlu0 %v314, 48
    %v561 = vpop.permute.xlu0 %560
    %v564 = vsel %vm381, %v533, 0
    %566 = vmatpush.msra.mxu0 0.0
    %567 = vmatpush.msra.mxu0 0.0
    %568 = vmatpush.msra.mxu0 0.0
    %569 = vmatpush.msra.mxu0 0.0
    %570 = vmatpush.msra.mxu0 0.0
    %571 = vmatpush.msra.mxu0 0.0
    %572 = vmatpush.msra.mxu0 0.0
    %573 = vmatpush.msra.mxu0 0.0
    %574 = vmatpush.msra.mxu0 0.0
    %575 = vmatpush.msra.mxu0 0.0
    %576 = vmatpush.msra.mxu0 0.0
    %577 = vmatpush.msra.mxu0 0.0
    %578 = vmatpush.msra.mxu0 0.0
    %579 = vmatpush.msra.mxu0 0.0
    %580 = vmatpush.msra.mxu0 0.0
    %581 = vmatpush.msra.mxu0 %v561
    %582 = vmatmul.f32.gmra.mxu0 %v564
    %v583 = vpop.f32.mrf.mxu0
    %v584 = vadd.f32 0.0, %v583
    %585 = vdwg.mxu0
    %v587 = vsel %vm327, %v558, 0
    %v590 = vsel %vm327, %v584, 0
    %592 = vmatpush.msra.mxu0 0.0
    %593 = vmatpush.msra.mxu0 0.0
    %594 = vmatpush.msra.mxu0 0.0
    %595 = vmatpush.msra.mxu0 0.0
    %596 = vmatpush.msra.mxu0 0.0
    %597 = vmatpush.msra.mxu0 0.0
    %598 = vmatpush.msra.mxu0 0.0
    %599 = vmatpush.msra.mxu0 0.0
    %600 = vmatpush.msra.mxu0 0.0
    %601 = vmatpush.msra.mxu0 0.0
    %602 = vmatpush.msra.mxu0 0.0
    %603 = vmatpush.msra.mxu0 0.0
    %604 = vmatpush.msra.mxu0 0.0
    %605 = vmatpush.msra.mxu0 0.0
    %606 = vmatpush.msra.mxu0 %v321
    %607 = vmatpush.msra.mxu0 %v320
    %608 = vmatmul.f32.gmra.mxu0 %v587
    %v609 = vpop.f32.mrf.mxu0
    %v610 = vadd.f32 0.0, %v609
    %611 = vmatmul.f32.gmra.mxu0 %v590
    %v612 = vpop.f32.mrf.mxu0
    %v613 = vadd.f32 0.0, %v612
    %614 = vdwg.mxu0
    %v616 = vsel %vm327, %v428, 0
    %v619 = vsel %vm327, %v454, 0
    %621 = vmatpush.msra.mxu0 0.0
    %622 = vmatpush.msra.mxu0 0.0
    %623 = vmatpush.msra.mxu0 0.0
    %624 = vmatpush.msra.mxu0 0.0
    %625 = vmatpush.msra.mxu0 0.0
    %626 = vmatpush.msra.mxu0 0.0
    %627 = vmatpush.msra.mxu0 0.0
    %628 = vmatpush.msra.mxu0 0.0
    %629 = vmatpush.msra.mxu0 0.0
    %630 = vmatpush.msra.mxu0 0.0
    %631 = vmatpush.msra.mxu0 0.0
    %632 = vmatpush.msra.mxu0 0.0
    %633 = vmatpush.msra.mxu0 0.0
    %634 = vmatpush.msra.mxu0 0.0
    %635 = vmatpush.msra.mxu0 %v319
    %636 = vmatpush.msra.mxu0 %v318
    %637 = vmatmul.f32.gmra.mxu0 %v616
    %v638 = vpop.f32.mrf.mxu0
    %v639 = vadd.f32 %v610, %v638
    %640 = vmatmul.f32.gmra.mxu0 %v619
    %v641 = vpop.f32.mrf.mxu0
    %v642 = vadd.f32 %v613, %v641
    %643 = vdwg.mxu0
    %v644 = vadd.f32 %v639, %v273
    %v645 = vadd.f32 %v642, %v274
    %v646 = vsel %vm213, %v644, 0.0
    %647 = vadd.xlane.f32.xlu0 %v646
    %v648 = vpop.xlane.xlu0 %647
    %v649 = vsel %vm213, %v645, 0.0
    %650 = vadd.xlane.f32.xlu0 %v649
    %v651 = vpop.xlane.xlu0 %650
    %v652 = vmul.f32 %v648, %v226
    %v653 = vmul.f32 %v651, %v226
    %v654 = vsub.f32 %v644, %v652
    %v655 = vsub.f32 %v645, %v653
    %v656 = vmul.f32 %v654, %v654
    %v657 = vmul.f32 %v655, %v655
    %v658 = vsel %vm213, %v656, 0.0
    %659 = vadd.xlane.f32.xlu0 %v658
    %v660 = vpop.xlane.xlu0 %659
    %v661 = vsel %vm213, %v657, 0.0
    %662 = vadd.xlane.f32.xlu0 %v661
    %v663 = vpop.xlane.xlu0 %662
    %v664 = vmul.f32 %v660, %v226
    %v665 = vmul.f32 %v663, %v226
    %v666 = vadd.f32 %v664, 1e-06
    %v667 = vadd.f32 %v665, 1e-06
    %v668 = vrsqrt.pop %v666
    %v669 = vmul.f32 %v668, %v666
    %v670 = vmul.f32 %v669, %v668
    %v671 = vmul.f32 0.5, %v670
    %v672 = vsub.f32 1.5, %v671
    %v673 = vmul.f32 %v668, %v672
    %vm674 = vweird.f32 %v666
    %vm675 = vweird.f32 %v668
    %vm676 = vmor %vm674, %vm675
    %v677 = vsel %vm676, %v668, %v673
    %v678 = vrsqrt.pop %v667
    %v679 = vmul.f32 %v678, %v667
    %v680 = vmul.f32 %v679, %v678
    %v681 = vmul.f32 0.5, %v680
    %v682 = vsub.f32 1.5, %v681
    %v683 = vmul.f32 %v678, %v682
    %vm684 = vweird.f32 %v667
    %vm685 = vweird.f32 %v678
    %vm686 = vmor %vm684, %vm685
    %v687 = vsel %vm686, %v678, %v683
    %v688 = vmul.f32 %v654, %v677
    %v689 = vmul.f32 %v655, %v687
    %v691 = vperm.slane %v322, 0
    %v693 = vmul.f32 %v688, %v691
    %v694 = vmul.f32 %v689, %v691
    %v696 = vperm.slane %v323, 0
    %v698 = vadd.f32 %v693, %v696
    %v699 = vadd.f32 %v694, %v696
    %v700 = vld [vmem:[%s11] sm:$0xff]
    %v701 = vld [vmem:[%s11 + $0x8] sm:$0xff]
    %v702 = vld [vmem:[%s11 + $0x10] sm:$0xff]
    %v703 = vld [vmem:[%s11 + $0x18] sm:$0xff]
    %v705 = vsel %vm213, %v698, 0
    %v708 = vsel %vm213, %v699, 0
    %710 = vmatpush.msra.mxu0 0.0
    %711 = vmatpush.msra.mxu0 0.0
    %712 = vmatpush.msra.mxu0 0.0
    %713 = vmatpush.msra.mxu0 0.0
    %714 = vmatpush.msra.mxu0 0.0
    %715 = vmatpush.msra.mxu0 0.0
    %716 = vmatpush.msra.mxu0 0.0
    %717 = vmatpush.msra.mxu0 0.0
    %718 = vmatpush.msra.mxu0 0.0
    %719 = vmatpush.msra.mxu0 0.0
    %720 = vmatpush.msra.mxu0 0.0
    %721 = vmatpush.msra.mxu0 0.0
    %722 = vmatpush.msra.mxu0 %v703
    %723 = vmatpush.msra.mxu0 %v702
    %724 = vmatpush.msra.mxu0 %v701
    %725 = vmatpush.msra.mxu0 %v700
    %726 = vmatmul.f32.gmra.mxu0 %v705
    %v727 = vpop.f32.mrf.mxu0
    %v728 = vadd.f32 0.0, %v727
    %729 = vmatmul.f32.gmra.mxu0 %v708
    %v730 = vpop.f32.mrf.mxu0
    %v731 = vadd.f32 0.0, %v730
    %732 = vdwg.mxu0
    %v733 = vmul.f32 %v728, 0.25
    %v734 = vmul.f32 %v731, 0.25
    %v735 = vld [vmem:[#allocation13] sm:$0xff]
    %v736 = vld [vmem:[#allocation13 + $0x8] sm:$0xff]
    %v737 = vld [vmem:[#allocation13 + $0x10] sm:$0xff]
    %v738 = vld [vmem:[#allocation13 + $0x18] sm:$0xff]
    %v740 = vsel %vm213, %v275, 0
    %v743 = vsel %vm213, %v276, 0
    %v746 = vsel %vm213, %v277, 0
    %v749 = vsel %vm213, %v278, 0
    %751 = vmatpush.msra.mxu0 0.0
    %752 = vmatpush.msra.mxu0 0.0
    %753 = vmatpush.msra.mxu0 0.0
    %754 = vmatpush.msra.mxu0 0.0
    %755 = vmatpush.msra.mxu0 0.0
    %756 = vmatpush.msra.mxu0 0.0
    %757 = vmatpush.msra.mxu0 0.0
    %758 = vmatpush.msra.mxu0 0.0
    %759 = vmatpush.msra.mxu0 0.0
    %760 = vmatpush.msra.mxu0 0.0
    %761 = vmatpush.msra.mxu0 0.0
    %762 = vmatpush.msra.mxu0 0.0
    %763 = vmatpush.msra.mxu0 %v738
    %764 = vmatpush.msra.mxu0 %v737
    %765 = vmatpush.msra.mxu0 %v736
    %766 = vmatpush.msra.mxu0 %v735
    %767 = vmatmul.f32.gmra.mxu0 %v740
    %v768 = vpop.f32.mrf.mxu0
    %v769 = vadd.f32 0.0, %v768
    %770 = vmatmul.f32.gmra.mxu0 %v743
    %v771 = vpop.f32.mrf.mxu0
    %v772 = vadd.f32 0.0, %v771
    %773 = vmatmul.f32.gmra.mxu0 %v746
    %v774 = vpop.f32.mrf.mxu0
    %v775 = vadd.f32 0.0, %v774
    %776 = vmatmul.f32.gmra.mxu0 %v749
    %v777 = vpop.f32.mrf.mxu0
    %v778 = vadd.f32 0.0, %v777
    %779 = vdwg.mxu0
    %v780 = vld [vmem:[#allocation14] sm:$0xff]
    %v781 = vld [vmem:[#allocation14 + $0x8] sm:$0xff]
    %v782 = vld [vmem:[#allocation14 + $0x10] sm:$0xff]
    %v783 = vld [vmem:[#allocation14 + $0x18] sm:$0xff]
    %v784 = vld [vmem:[%s14] sm:$0x1]
    %v785 = vld [vmem:[%s15] sm:$0x1]
    %v788 = vperm.slane %v281, 0
    %v789 = vperm.slane %v282, 0
    %v793 = vsel %vm327, %v733, 0
    %v796 = vsel %vm327, %v769, 0
    %v799 = vsel %vm327, %v772, 0
    %801 = vmatpush.xpose.msra.mxu0 0.0
    %802 = vmatpush.xpose.msra.mxu0 0.0
    %803 = vmatpush.xpose.msra.mxu0 0.0
    %804 = vmatpush.xpose.msra.mxu0 0.0
    %805 = vmatpush.xpose.msra.mxu0 0.0
    %806 = vmatpush.xpose.msra.mxu0 0.0
    %807 = vmatpush.xpose.msra.mxu0 0.0
    %808 = vmatpush.xpose.msra.mxu0 0.0
    %809 = vmatpush.xpose.msra.mxu0 0.0
    %810 = vmatpush.xpose.msra.mxu0 0.0
    %811 = vmatpush.xpose.msra.mxu0 0.0
    %812 = vmatpush.xpose.msra.mxu0 0.0
    %813 = vmatpush.xpose.msra.mxu0 0.0
    %814 = vmatpush.xpose.msra.mxu0 0.0
    %815 = vmatpush.xpose.msra.mxu0 %v799
    %816 = vmatpush.xpose.msra.mxu0 %v796
    %817 = vmatmul.f32.gmra.mxu0 %v793
    %v818 = vpop.f32.mrf.mxu0
    %v819 = vadd.f32 %v788, %v818
    %820 = vdwg.mxu0
    %v822 = vsel %vm327, %v734, 0
    %v825 = vsel %vm327, %v775, 0
    %v828 = vsel %vm327, %v778, 0
    %830 = vmatpush.xpose.msra.mxu0 0.0
    %831 = vmatpush.xpose.msra.mxu0 0.0
    %832 = vmatpush.xpose.msra.mxu0 0.0
    %833 = vmatpush.xpose.msra.mxu0 0.0
    %834 = vmatpush.xpose.msra.mxu0 0.0
    %835 = vmatpush.xpose.msra.mxu0 0.0
    %836 = vmatpush.xpose.msra.mxu0 0.0
    %837 = vmatpush.xpose.msra.mxu0 0.0
    %838 = vmatpush.xpose.msra.mxu0 0.0
    %839 = vmatpush.xpose.msra.mxu0 0.0
    %840 = vmatpush.xpose.msra.mxu0 0.0
    %841 = vmatpush.xpose.msra.mxu0 0.0
    %842 = vmatpush.xpose.msra.mxu0 0.0
    %843 = vmatpush.xpose.msra.mxu0 0.0
    %844 = vmatpush.xpose.msra.mxu0 %v828
    %845 = vmatpush.xpose.msra.mxu0 %v825
    %846 = vmatmul.f32.gmra.mxu0 %v822
    %v847 = vpop.f32.mrf.mxu0
    %v848 = vadd.f32 %v789, %v847
    %849 = vdwg.mxu0
    %v850 = vsel %vm327, %v819, -inf
    %851 = vmax.xlane.f32.xlu0 %v850
    %v852 = vpop.xlane.xlu0 %851
    %v853 = vsel %vm327, %v848, -inf
    %854 = vmax.xlane.f32.xlu0 %v853
    %v855 = vpop.xlane.xlu0 %854
    %v856 = vsub.f32 %v819, %v852
    %v857 = vsub.f32 %v848, %v855
    %v858 = vmul.f32 %v856, 1.442695
    %v859 = vpow.pop %v858
    %v860 = vmul.f32 %v857, 1.442695
    %v861 = vpow.pop %v860
    %v862 = vsel %vm327, %v859, 0.0
    %863 = vadd.xlane.f32.xlu0 %v862
    %v864 = vpop.xlane.xlu0 %863
    %v865 = vsel %vm327, %v861, 0.0
    %866 = vadd.xlane.f32.xlu0 %v865
    %v867 = vpop.xlane.xlu0 %866
    %v868 = vrcp.pop %v864
    %v869 = vrcp.pop %v867
    %v870 = vmul.f32 %v859, %v868
    %v871 = vmul.f32 %v861, %v869
    %872 = vrot.lane.b32.xlu0 %v769, 96
    %v873 = vpop.permute.xlu0 %872
    %874 = vrot.lane.b32.xlu0 %v772, 96
    %v875 = vpop.permute.xlu0 %874
    %v879 = vsel %vm327, %v870, 0
    %881 = vmatpush.msra.mxu0 0.0
    %882 = vmatpush.msra.mxu0 0.0
    %883 = vmatpush.msra.mxu0 0.0
    %884 = vmatpush.msra.mxu0 0.0
    %885 = vmatpush.msra.mxu0 0.0
    %886 = vmatpush.msra.mxu0 0.0
    %887 = vmatpush.msra.mxu0 0.0
    %888 = vmatpush.msra.mxu0 0.0
    %889 = vmatpush.msra.mxu0 0.0
    %890 = vmatpush.msra.mxu0 0.0
    %891 = vmatpush.msra.mxu0 0.0
    %892 = vmatpush.msra.mxu0 0.0
    %893 = vmatpush.msra.mxu0 0.0
    %894 = vmatpush.msra.mxu0 0.0
    %895 = vmatpush.msra.mxu0 %v875
    %896 = vmatpush.msra.mxu0 %v873
    %897 = vmatmul.f32.gmra.mxu0 %v879
    %v898 = vpop.f32.mrf.mxu0
    %v899 = vadd.f32 0.0, %v898
    %900 = vdwg.mxu0
    %901 = vrot.lane.b32.xlu0 %v775, 96
    %v902 = vpop.permute.xlu0 %901
    %903 = vrot.lane.b32.xlu0 %v778, 96
    %v904 = vpop.permute.xlu0 %903
    %v908 = vsel %vm327, %v871, 0
    %910 = vmatpush.msra.mxu0 0.0
    %911 = vmatpush.msra.mxu0 0.0
    %912 = vmatpush.msra.mxu0 0.0
    %913 = vmatpush.msra.mxu0 0.0
    %914 = vmatpush.msra.mxu0 0.0
    %915 = vmatpush.msra.mxu0 0.0
    %916 = vmatpush.msra.mxu0 0.0
    %917 = vmatpush.msra.mxu0 0.0
    %918 = vmatpush.msra.mxu0 0.0
    %919 = vmatpush.msra.mxu0 0.0
    %920 = vmatpush.msra.mxu0 0.0
    %921 = vmatpush.msra.mxu0 0.0
    %922 = vmatpush.msra.mxu0 0.0
    %923 = vmatpush.msra.mxu0 0.0
    %924 = vmatpush.msra.mxu0 %v904
    %925 = vmatpush.msra.mxu0 %v902
    %926 = vmatmul.f32.gmra.mxu0 %v908
    %v927 = vpop.f32.mrf.mxu0
    %v928 = vadd.f32 0.0, %v927
    %929 = vdwg.mxu0
    %930 = vrot.lane.b32.xlu0 %v733, 112
    %v931 = vpop.permute.xlu0 %930
    %932 = vrot.lane.b32.xlu0 %v769, 112
    %v933 = vpop.permute.xlu0 %932
    %934 = vrot.lane.b32.xlu0 %v772, 112
    %v935 = vpop.permute.xlu0 %934
    %v936 = vsel %vm327, %v931, 0
    %v938 = vsel %vm327, %v933, 0
    %v940 = vsel %vm327, %v935, 0
    %942 = vmatpush.xpose.msra.mxu0 0.0
    %943 = vmatpush.xpose.msra.mxu0 0.0
    %944 = vmatpush.xpose.msra.mxu0 0.0
    %945 = vmatpush.xpose.msra.mxu0 0.0
    %946 = vmatpush.xpose.msra.mxu0 0.0
    %947 = vmatpush.xpose.msra.mxu0 0.0
    %948 = vmatpush.xpose.msra.mxu0 0.0
    %949 = vmatpush.xpose.msra.mxu0 0.0
    %950 = vmatpush.xpose.msra.mxu0 0.0
    %951 = vmatpush.xpose.msra.mxu0 0.0
    %952 = vmatpush.xpose.msra.mxu0 0.0
    %953 = vmatpush.xpose.msra.mxu0 0.0
    %954 = vmatpush.xpose.msra.mxu0 0.0
    %955 = vmatpush.xpose.msra.mxu0 0.0
    %956 = vmatpush.xpose.msra.mxu0 %v940
    %957 = vmatpush.xpose.msra.mxu0 %v938
    %958 = vmatmul.f32.gmra.mxu0 %v936
    %v959 = vpop.f32.mrf.mxu0
    %v960 = vadd.f32 %v788, %v959
    %961 = vdwg.mxu0
    %962 = vrot.lane.b32.xlu0 %v734, 112
    %v963 = vpop.permute.xlu0 %962
    %964 = vrot.lane.b32.xlu0 %v775, 112
    %v965 = vpop.permute.xlu0 %964
    %966 = vrot.lane.b32.xlu0 %v778, 112
    %v967 = vpop.permute.xlu0 %966
    %v968 = vsel %vm327, %v963, 0
    %v970 = vsel %vm327, %v965, 0
    %v972 = vsel %vm327, %v967, 0
    %974 = vmatpush.xpose.msra.mxu0 0.0
    %975 = vmatpush.xpose.msra.mxu0 0.0
    %976 = vmatpush.xpose.msra.mxu0 0.0
    %977 = vmatpush.xpose.msra.mxu0 0.0
    %978 = vmatpush.xpose.msra.mxu0 0.0
    %979 = vmatpush.xpose.msra.mxu0 0.0
    %980 = vmatpush.xpose.msra.mxu0 0.0
    %981 = vmatpush.xpose.msra.mxu0 0.0
    %982 = vmatpush.xpose.msra.mxu0 0.0
    %983 = vmatpush.xpose.msra.mxu0 0.0
    %984 = vmatpush.xpose.msra.mxu0 0.0
    %985 = vmatpush.xpose.msra.mxu0 0.0
    %986 = vmatpush.xpose.msra.mxu0 0.0
    %987 = vmatpush.xpose.msra.mxu0 0.0
    %988 = vmatpush.xpose.msra.mxu0 %v972
    %989 = vmatpush.xpose.msra.mxu0 %v970
    %990 = vmatmul.f32.gmra.mxu0 %v968
    %v991 = vpop.f32.mrf.mxu0
    %v992 = vadd.f32 %v789, %v991
    %993 = vdwg.mxu0
    %v994 = vsel %vm327, %v960, -inf
    %995 = vmax.xlane.f32.xlu0 %v994
    %v996 = vpop.xlane.xlu0 %995
    %v997 = vsel %vm327, %v992, -inf
    %998 = vmax.xlane.f32.xlu0 %v997
    %v999 = vpop.xlane.xlu0 %998
    %v1000 = vsub.f32 %v960, %v996
    %v1001 = vsub.f32 %v992, %v999
    %v1002 = vmul.f32 %v1000, 1.442695
    %v1003 = vpow.pop %v1002
    %v1004 = vmul.f32 %v1001, 1.442695
    %v1005 = vpow.pop %v1004
    %v1006 = vsel %vm327, %v1003, 0.0
    %1007 = vadd.xlane.f32.xlu0 %v1006
    %v1008 = vpop.xlane.xlu0 %1007
    %v1009 = vsel %vm327, %v1005, 0.0
    %1010 = vadd.xlane.f32.xlu0 %v1009
    %v1011 = vpop.xlane.xlu0 %1010
    %v1012 = vrcp.pop %v1008
    %v1013 = vrcp.pop %v1011
    %v1014 = vmul.f32 %v1003, %v1012
    %v1015 = vmul.f32 %v1005, %v1013
    %1016 = vrot.lane.b32.xlu0 %v769, 80
    %v1017 = vpop.permute.xlu0 %1016
    %1018 = vrot.lane.b32.xlu0 %v772, 80
    %v1019 = vpop.permute.xlu0 %1018
    %v1023 = vsel %vm327, %v1014, 0
    %1025 = vmatpush.msra.mxu0 0.0
    %1026 = vmatpush.msra.mxu0 0.0
    %1027 = vmatpush.msra.mxu0 0.0
    %1028 = vmatpush.msra.mxu0 0.0
    %1029 = vmatpush.msra.mxu0 0.0
    %1030 = vmatpush.msra.mxu0 0.0
    %1031 = vmatpush.msra.mxu0 0.0
    %1032 = vmatpush.msra.mxu0 0.0
    %1033 = vmatpush.msra.mxu0 0.0
    %1034 = vmatpush.msra.mxu0 0.0
    %1035 = vmatpush.msra.mxu0 0.0
    %1036 = vmatpush.msra.mxu0 0.0
    %1037 = vmatpush.msra.mxu0 0.0
    %1038 = vmatpush.msra.mxu0 0.0
    %1039 = vmatpush.msra.mxu0 %v1019
    %1040 = vmatpush.msra.mxu0 %v1017
    %1041 = vmatmul.f32.gmra.mxu0 %v1023
    %v1042 = vpop.f32.mrf.mxu0
    %v1043 = vadd.f32 0.0, %v1042
    %1044 = vdwg.mxu0
    %1045 = vrot.lane.b32.xlu0 %v775, 80
    %v1046 = vpop.permute.xlu0 %1045
    %1047 = vrot.lane.b32.xlu0 %v778, 80
    %v1048 = vpop.permute.xlu0 %1047
    %v1052 = vsel %vm327, %v1015, 0
    %1054 = vmatpush.msra.mxu0 0.0
    %1055 = vmatpush.msra.mxu0 0.0
    %1056 = vmatpush.msra.mxu0 0.0
    %1057 = vmatpush.msra.mxu0 0.0
    %1058 = vmatpush.msra.mxu0 0.0
    %1059 = vmatpush.msra.mxu0 0.0
    %1060 = vmatpush.msra.mxu0 0.0
    %1061 = vmatpush.msra.mxu0 0.0
    %1062 = vmatpush.msra.mxu0 0.0
    %1063 = vmatpush.msra.mxu0 0.0
    %1064 = vmatpush.msra.mxu0 0.0
    %1065 = vmatpush.msra.mxu0 0.0
    %1066 = vmatpush.msra.mxu0 0.0
    %1067 = vmatpush.msra.mxu0 0.0
    %1068 = vmatpush.msra.mxu0 %v1048
    %1069 = vmatpush.msra.mxu0 %v1046
    %1070 = vmatmul.f32.gmra.mxu0 %v1052
    %v1071 = vpop.f32.mrf.mxu0
    %v1072 = vadd.f32 0.0, %v1071
    %1073 = vdwg.mxu0
    %v1075 = vsel %vm327, %v1043, 0
    %v1078 = vsel %vm327, %v1072, 0
    %1080 = vmatpush.msra.mxu0 0.0
    %1081 = vmatpush.msra.mxu0 0.0
    %1082 = vmatpush.msra.mxu0 0.0
    %1083 = vmatpush.msra.mxu0 0.0
    %1084 = vmatpush.msra.mxu0 0.0
    %1085 = vmatpush.msra.mxu0 0.0
    %1086 = vmatpush.msra.mxu0 0.0
    %1087 = vmatpush.msra.mxu0 0.0
    %1088 = vmatpush.msra.mxu0 0.0
    %1089 = vmatpush.msra.mxu0 0.0
    %1090 = vmatpush.msra.mxu0 0.0
    %1091 = vmatpush.msra.mxu0 0.0
    %1092 = vmatpush.msra.mxu0 0.0
    %1093 = vmatpush.msra.mxu0 0.0
    %1094 = vmatpush.msra.mxu0 %v783
    %1095 = vmatpush.msra.mxu0 %v782
    %1096 = vmatmul.f32.gmra.mxu0 %v1075
    %v1097 = vpop.f32.mrf.mxu0
    %v1098 = vadd.f32 0.0, %v1097
    %1099 = vmatmul.f32.gmra.mxu0 %v1078
    %v1100 = vpop.f32.mrf.mxu0
    %v1101 = vadd.f32 0.0, %v1100
    %1102 = vdwg.mxu0
    %v1104 = vsel %vm327, %v899, 0
    %v1107 = vsel %vm327, %v928, 0
    %1109 = vmatpush.msra.mxu0 0.0
    %1110 = vmatpush.msra.mxu0 0.0
    %1111 = vmatpush.msra.mxu0 0.0
    %1112 = vmatpush.msra.mxu0 0.0
    %1113 = vmatpush.msra.mxu0 0.0
    %1114 = vmatpush.msra.mxu0 0.0
    %1115 = vmatpush.msra.mxu0 0.0
    %1116 = vmatpush.msra.mxu0 0.0
    %1117 = vmatpush.msra.mxu0 0.0
    %1118 = vmatpush.msra.mxu0 0.0
    %1119 = vmatpush.msra.mxu0 0.0
    %1120 = vmatpush.msra.mxu0 0.0
    %1121 = vmatpush.msra.mxu0 0.0
    %1122 = vmatpush.msra.mxu0 0.0
    %1123 = vmatpush.msra.mxu0 %v781
    %1124 = vmatpush.msra.mxu0 %v780
    %1125 = vmatmul.f32.gmra.mxu0 %v1104
    %v1126 = vpop.f32.mrf.mxu0
    %v1127 = vadd.f32 %v1098, %v1126
    %1128 = vmatmul.f32.gmra.mxu0 %v1107
    %v1129 = vpop.f32.mrf.mxu0
    %v1130 = vadd.f32 %v1101, %v1129
    %1131 = vdwg.mxu0
    %v1132 = vadd.f32 %v1127, %v698
    %v1133 = vadd.f32 %v1130, %v699
    %v1134 = vsel %vm213, %v1132, 0.0
    %1135 = vadd.xlane.f32.xlu0 %v1134
    %v1136 = vpop.xlane.xlu0 %1135
    %v1137 = vsel %vm213, %v1133, 0.0
    %1138 = vadd.xlane.f32.xlu0 %v1137
    %v1139 = vpop.xlane.xlu0 %1138
    %v1140 = vmul.f32 %v1136, %v226
    %v1141 = vmul.f32 %v1139, %v226
    %v1142 = vsub.f32 %v1132, %v1140
    %v1143 = vsub.f32 %v1133, %v1141
    %v1144 = vmul.f32 %v1142, %v1142
    %v1145 = vmul.f32 %v1143, %v1143
    %v1146 = vsel %vm213, %v1144, 0.0
    %1147 = vadd.xlane.f32.xlu0 %v1146
    %v1148 = vpop.xlane.xlu0 %1147
    %v1149 = vsel %vm213, %v1145, 0.0
    %1150 = vadd.xlane.f32.xlu0 %v1149
    %v1151 = vpop.xlane.xlu0 %1150
    %v1152 = vmul.f32 %v1148, %v226
    %v1153 = vmul.f32 %v1151, %v226
    %v1154 = vadd.f32 %v1152, 1e-06
    %v1155 = vadd.f32 %v1153, 1e-06
    %v1156 = vrsqrt.pop %v1154
    %v1157 = vmul.f32 %v1156, %v1154
    %v1158 = vmul.f32 %v1157, %v1156
    %v1159 = vmul.f32 0.5, %v1158
    %v1160 = vsub.f32 1.5, %v1159
    %v1161 = vmul.f32 %v1156, %v1160
    %vm1162 = vweird.f32 %v1154
    %vm1163 = vweird.f32 %v1156
    %vm1164 = vmor %vm1162, %vm1163
    %v1165 = vsel %vm1164, %v1156, %v1161
    %v1166 = vrsqrt.pop %v1155
    %v1167 = vmul.f32 %v1166, %v1155
    %v1168 = vmul.f32 %v1167, %v1166
    %v1169 = vmul.f32 0.5, %v1168
    %v1170 = vsub.f32 1.5, %v1169
    %v1171 = vmul.f32 %v1166, %v1170
    %vm1172 = vweird.f32 %v1155
    %vm1173 = vweird.f32 %v1166
    %vm1174 = vmor %vm1172, %vm1173
    %v1175 = vsel %vm1174, %v1166, %v1171
    %v1176 = vmul.f32 %v1142, %v1165
    %v1177 = vmul.f32 %v1143, %v1175
    %v1179 = vperm.slane %v784, 0
    %v1181 = vmul.f32 %v1176, %v1179
    %v1182 = vmul.f32 %v1177, %v1179
    %v1184 = vperm.slane %v785, 0
    %v1186 = vadd.f32 %v1181, %v1184
    %v1187 = vadd.f32 %v1182, %v1184
    %v1188 = vld [vmem:[#allocation16] sm:$0xff]
    %v1189 = vld [vmem:[#allocation16 + $0x8] sm:$0xff]
    %v1190 = vld [vmem:[#allocation16 + $0x10] sm:$0xff]
    %v1191 = vld [vmem:[#allocation16 + $0x18] sm:$0xff]
    %v1192 = vld [vmem:[%s17] sm:$0x1]
    %v1194 = vperm.slane %v1192, 0
    %v1197 = vsel %vm213, %v1186, 0
    %v1200 = vsel %vm213, %v1187, 0
    %1202 = vmatpush.msra.mxu0 0.0
    %1203 = vmatpush.msra.mxu0 0.0
    %1204 = vmatpush.msra.mxu0 0.0
    %1205 = vmatpush.msra.mxu0 0.0
    %1206 = vmatpush.msra.mxu0 0.0
    %1207 = vmatpush.msra.mxu0 0.0
    %1208 = vmatpush.msra.mxu0 0.0
    %1209 = vmatpush.msra.mxu0 0.0
    %1210 = vmatpush.msra.mxu0 0.0
    %1211 = vmatpush.msra.mxu0 0.0
    %1212 = vmatpush.msra.mxu0 0.0
    %1213 = vmatpush.msra.mxu0 0.0
    %1214 = vmatpush.msra.mxu0 %v1191
    %1215 = vmatpush.msra.mxu0 %v1190
    %1216 = vmatpush.msra.mxu0 %v1189
    %1217 = vmatpush.msra.mxu0 %v1188
    %1218 = vmatmul.f32.gmra.mxu0 %v1197
    %v1219 = vpop.f32.mrf.mxu0
    %v1220 = vadd.f32 %v1194, %v1219
    %1221 = vmatmul.f32.gmra.mxu0 %v1200
    %v1222 = vpop.f32.mrf.mxu0
    %v1223 = vadd.f32 %v1194, %v1222
    %1224 = vdwg.mxu0
    %v1225 = vmax.f32 %v1220, 0.0
    %v1226 = vmax.f32 %v1223, 0.0
    %v1227 = vld [vmem:[%s18] sm:$0xff]
    %v1228 = vld [vmem:[%s18 + $0x8] sm:$0xff]
    %v1229 = vld [vmem:[%s18 + $0x10] sm:$0xff]
    %v1230 = vld [vmem:[%s18 + $0x18] sm:$0xff]
    %v1231 = vld [vmem:[%s18 + $0x20] sm:$0xff]
    %v1232 = vld [vmem:[%s18 + $0x28] sm:$0xff]
    %v1233 = vld [vmem:[%s18 + $0x30] sm:$0xff]
    %v1234 = vld [vmem:[%s18 + $0x38] sm:$0xff]
    %v1235 = vld [vmem:[%s19] sm:$0x1]
    %v1237 = vperm.slane %v1235, 0
    %vm1239 = vcmask 523264
    %v1241 = vsel %vm1239, %v1225, 0
    %v1244 = vsel %vm1239, %v1226, 0
    %1246 = vmatpush.msra.mxu0 0.0
    %1247 = vmatpush.msra.mxu0 0.0
    %1248 = vmatpush.msra.mxu0 0.0
    %1249 = vmatpush.msra.mxu0 0.0
    %1250 = vmatpush.msra.mxu0 0.0
    %1251 = vmatpush.msra.mxu0 0.0
    %1252 = vmatpush.msra.mxu0 0.0
    %1253 = vmatpush.msra.mxu0 0.0
    %1254 = vmatpush.msra.mxu0 %v1234
    %1255 = vmatpush.msra.mxu0 %v1233
    %1256 = vmatpush.msra.mxu0 %v1232
    %1257 = vmatpush.msra.mxu0 %v1231
    %1258 = vmatpush.msra.mxu0 %v1230
    %1259 = vmatpush.msra.mxu0 %v1229
    %1260 = vmatpush.msra.mxu0 %v1228
    %1261 = vmatpush.msra.mxu0 %v1227
    %1262 = vmatmul.f32.gmra.mxu0 %v1241
    %v1263 = vpop.f32.mrf.mxu0
    %v1264 = vadd.f32 %v1237, %v1263
    %1265 = vmatmul.f32.gmra.mxu0 %v1244
    %v1266 = vpop.f32.mrf.mxu0
    %v1267 = vadd.f32 %v1237, %v1266
    %1268 = vdwg.mxu0
    %v1269 = vadd.f32 %v1264, %v1186
    %v1270 = vadd.f32 %v1267, %v1187
    %v1271 = vld [vmem:[%s20] sm:$0x1]
    %v1272 = vld [vmem:[%s21] sm:$0x1]
    %v1273 = vsel %vm213, %v1269, 0.0
    %1274 = vadd.xlane.f32.xlu0 %v1273
    %v1275 = vpop.xlane.xlu0 %1274
    %v1276 = vsel %vm213, %v1270, 0.0
    %1277 = vadd.xlane.f32.xlu0 %v1276
    %v1278 = vpop.xlane.xlu0 %1277
    %v1279 = vmul.f32 %v1275, %v226
    %v1280 = vmul.f32 %v1278, %v226
    %v1281 = vsub.f32 %v1269, %v1279
    %v1282 = vsub.f32 %v1270, %v1280
    %v1283 = vmul.f32 %v1281, %v1281
    %v1284 = vmul.f32 %v1282, %v1282
    %v1285 = vsel %vm213, %v1283, 0.0
    %1286 = vadd.xlane.f32.xlu0 %v1285
    %v1287 = vpop.xlane.xlu0 %1286
    %v1288 = vsel %vm213, %v1284, 0.0
    %1289 = vadd.xlane.f32.xlu0 %v1288
    %v1290 = vpop.xlane.xlu0 %1289
    %v1291 = vmul.f32 %v1287, %v226
    %v1292 = vmul.f32 %v1290, %v226
    %v1293 = vadd.f32 %v1291, 1e-06
    %v1294 = vadd.f32 %v1292, 1e-06
    %v1295 = vrsqrt.pop %v1293
    %v1296 = vmul.f32 %v1295, %v1293
    %v1297 = vmul.f32 %v1296, %v1295
    %v1298 = vmul.f32 0.5, %v1297
    %v1299 = vsub.f32 1.5, %v1298
    %v1300 = vmul.f32 %v1295, %v1299
    %vm1301 = vweird.f32 %v1293
    %vm1302 = vweird.f32 %v1295
    %vm1303 = vmor %vm1301, %vm1302
    %v1304 = vsel %vm1303, %v1295, %v1300
    %v1305 = vrsqrt.pop %v1294
    %v1306 = vmul.f32 %v1305, %v1294
    %v1307 = vmul.f32 %v1306, %v1305
    %v1308 = vmul.f32 0.5, %v1307
    %v1309 = vsub.f32 1.5, %v1308
    %v1310 = vmul.f32 %v1305, %v1309
    %vm1311 = vweird.f32 %v1294
    %vm1312 = vweird.f32 %v1305
    %vm1313 = vmor %vm1311, %vm1312
    %v1314 = vsel %vm1313, %v1305, %v1310
    %v1315 = vmul.f32 %v1281, %v1304
    %v1316 = vmul.f32 %v1282, %v1314
    %v1318 = vperm.slane %v1271, 0
    %v1320 = vmul.f32 %v1315, %v1318
    %v1321 = vmul.f32 %v1316, %v1318
    %v1323 = vperm.slane %v1272, 0
    %v1325 = vadd.f32 %v1320, %v1323
    %v1326 = vadd.f32 %v1321, %v1323
    %s1327 = scalar_lea.vmem %s7, 32
    %v1328 = vld [vmem:[%s1327] sm:$0xff]
    %v1329 = vld [vmem:[%s1327 + $0x8] sm:$0xff]
    %v1330 = vld [vmem:[%s1327 + $0x10] sm:$0xff]
    %v1331 = vld [vmem:[%s1327 + $0x18] sm:$0xff]
    %v1333 = vsel %vm213, %v1325, 0
    %v1336 = vsel %vm213, %v1326, 0
    %1338 = vmatpush.msra.mxu0 0.0
    %1339 = vmatpush.msra.mxu0 0.0
    %1340 = vmatpush.msra.mxu0 0.0
    %1341 = vmatpush.msra.mxu0 0.0
    %1342 = vmatpush.msra.mxu0 0.0
    %1343 = vmatpush.msra.mxu0 0.0
    %1344 = vmatpush.msra.mxu0 0.0
    %1345 = vmatpush.msra.mxu0 0.0
    %1346 = vmatpush.msra.mxu0 0.0
    %1347 = vmatpush.msra.mxu0 0.0
    %1348 = vmatpush.msra.mxu0 0.0
    %1349 = vmatpush.msra.mxu0 0.0
    %1350 = vmatpush.msra.mxu0 %v1331
    %1351 = vmatpush.msra.mxu0 %v1330
    %1352 = vmatpush.msra.mxu0 %v1329
    %1353 = vmatpush.msra.mxu0 %v1328
    %1354 = vmatmul.f32.gmra.mxu0 %v1333
    %v1355 = vpop.f32.mrf.mxu0
    %v1356 = vadd.f32 0.0, %v1355
    %1357 = vmatmul.f32.gmra.mxu0 %v1336
    %v1358 = vpop.f32.mrf.mxu0
    %v1359 = vadd.f32 0.0, %v1358
    %1360 = vdwg.mxu0
    %v1361 = vmul.f32 %v1356, 0.25
    %v1362 = vmul.f32 %v1359, 0.25
    %s1363 = scalar_lea.vmem %s8, 32
    %v1364 = vld [vmem:[%s1363] sm:$0xff]
    %v1365 = vld [vmem:[%s1363 + $0x8] sm:$0xff]
    %v1366 = vld [vmem:[%s1363 + $0x10] sm:$0xff]
    %v1367 = vld [vmem:[%s1363 + $0x18] sm:$0xff]
    %s1368 = scalar_lea.vmem %s9, 1
    %v1369 = vld [vmem:[%s1368] sm:$0x1]
    %s1370 = scalar_lea.vmem %s10, 1
    %v1371 = vld [vmem:[%s1370] sm:$0x1]
    %1373 = vrot.lane.b32.xlu0 %v1356, 96
    %v1374 = vpop.permute.xlu0 %1373
    %v1376 = vsel %vm327, %v1361, 0
    %v1378 = vsel %vm327, %v1374, 0
    %1380 = vmatpush.xpose.msra.mxu0 0.0
    %1381 = vmatpush.xpose.msra.mxu0 0.0
    %1382 = vmatpush.xpose.msra.mxu0 0.0
    %1383 = vmatpush.xpose.msra.mxu0 0.0
    %1384 = vmatpush.xpose.msra.mxu0 0.0
    %1385 = vmatpush.xpose.msra.mxu0 0.0
    %1386 = vmatpush.xpose.msra.mxu0 0.0
    %1387 = vmatpush.xpose.msra.mxu0 0.0
    %1388 = vmatpush.xpose.msra.mxu0 0.0
    %1389 = vmatpush.xpose.msra.mxu0 0.0
    %1390 = vmatpush.xpose.msra.mxu0 0.0
    %1391 = vmatpush.xpose.msra.mxu0 0.0
    %1392 = vmatpush.xpose.msra.mxu0 0.0
    %1393 = vmatpush.xpose.msra.mxu0 0.0
    %1394 = vmatpush.xpose.msra.mxu0 0.0
    %1395 = vmatpush.xpose.msra.mxu0 %v1378
    %1396 = vmatmul.f32.gmra.mxu0 %v1376
    %v1397 = vpop.f32.mrf.mxu0
    %v1398 = vadd.f32 %v279, %v1397
    %1399 = vdwg.mxu0
    %1401 = vrot.lane.b32.xlu0 %v1359, 96
    %v1402 = vpop.permute.xlu0 %1401
    %v1404 = vsel %vm327, %v1362, 0
    %v1406 = vsel %vm327, %v1402, 0
    %1408 = vmatpush.xpose.msra.mxu0 0.0
    %1409 = vmatpush.xpose.msra.mxu0 0.0
    %1410 = vmatpush.xpose.msra.mxu0 0.0
    %1411 = vmatpush.xpose.msra.mxu0 0.0
    %1412 = vmatpush.xpose.msra.mxu0 0.0
    %1413 = vmatpush.xpose.msra.mxu0 0.0
    %1414 = vmatpush.xpose.msra.mxu0 0.0
    %1415 = vmatpush.xpose.msra.mxu0 0.0
    %1416 = vmatpush.xpose.msra.mxu0 0.0
    %1417 = vmatpush.xpose.msra.mxu0 0.0
    %1418 = vmatpush.xpose.msra.mxu0 0.0
    %1419 = vmatpush.xpose.msra.mxu0 0.0
    %1420 = vmatpush.xpose.msra.mxu0 0.0
    %1421 = vmatpush.xpose.msra.mxu0 0.0
    %1422 = vmatpush.xpose.msra.mxu0 0.0
    %1423 = vmatpush.xpose.msra.mxu0 %v1406
    %1424 = vmatmul.f32.gmra.mxu0 %v1404
    %v1425 = vpop.f32.mrf.mxu0
    %v1426 = vadd.f32 %v280, %v1425
    %1427 = vdwg.mxu0
    %v1428 = vsel %vm381, %v1398, -inf
    %1429 = vmax.xlane.f32.xlu0 %v1428
    %v1430 = vpop.xlane.xlu0 %1429
    %v1431 = vsel %vm381, %v1426, -inf
    %1432 = vmax.xlane.f32.xlu0 %v1431
    %v1433 = vpop.xlane.xlu0 %1432
    %v1434 = vsub.f32 %v1398, %v1430
    %v1435 = vsub.f32 %v1426, %v1433
    %v1436 = vmul.f32 %v1434, 1.442695
    %v1437 = vpow.pop %v1436
    %v1438 = vmul.f32 %v1435, 1.442695
    %v1439 = vpow.pop %v1438
    %v1440 = vsel %vm381, %v1437, 0.0
    %1441 = vadd.xlane.f32.xlu0 %v1440
    %v1442 = vpop.xlane.xlu0 %1441
    %v1443 = vsel %vm381, %v1439, 0.0
    %1444 = vadd.xlane.f32.xlu0 %v1443
    %v1445 = vpop.xlane.xlu0 %1444
    %v1446 = vrcp.pop %v1442
    %v1447 = vrcp.pop %v1445
    %v1448 = vmul.f32 %v1437, %v1446
    %v1449 = vmul.f32 %v1439, %v1447
    %1450 = vrot.lane.b32.xlu0 %v1356, 64
    %v1451 = vpop.permute.xlu0 %1450
    %v1454 = vsel %vm381, %v1448, 0
    %1456 = vmatpush.msra.mxu0 0.0
    %1457 = vmatpush.msra.mxu0 0.0
    %1458 = vmatpush.msra.mxu0 0.0
    %1459 = vmatpush.msra.mxu0 0.0
    %1460 = vmatpush.msra.mxu0 0.0
    %1461 = vmatpush.msra.mxu0 0.0
    %1462 = vmatpush.msra.mxu0 0.0
    %1463 = vmatpush.msra.mxu0 0.0
    %1464 = vmatpush.msra.mxu0 0.0
    %1465 = vmatpush.msra.mxu0 0.0
    %1466 = vmatpush.msra.mxu0 0.0
    %1467 = vmatpush.msra.mxu0 0.0
    %1468 = vmatpush.msra.mxu0 0.0
    %1469 = vmatpush.msra.mxu0 0.0
    %1470 = vmatpush.msra.mxu0 0.0
    %1471 = vmatpush.msra.mxu0 %v1451
    %1472 = vmatmul.f32.gmra.mxu0 %v1454
    %v1473 = vpop.f32.mrf.mxu0
    %v1474 = vadd.f32 0.0, %v1473
    %1475 = vdwg.mxu0
    %1476 = vrot.lane.b32.xlu0 %v1359, 64
    %v1477 = vpop.permute.xlu0 %1476
    %v1480 = vsel %vm381, %v1449, 0
    %1482 = vmatpush.msra.mxu0 0.0
    %1483 = vmatpush.msra.mxu0 0.0
    %1484 = vmatpush.msra.mxu0 0.0
    %1485 = vmatpush.msra.mxu0 0.0
    %1486 = vmatpush.msra.mxu0 0.0
    %1487 = vmatpush.msra.mxu0 0.0
    %1488 = vmatpush.msra.mxu0 0.0
    %1489 = vmatpush.msra.mxu0 0.0
    %1490 = vmatpush.msra.mxu0 0.0
    %1491 = vmatpush.msra.mxu0 0.0
    %1492 = vmatpush.msra.mxu0 0.0
    %1493 = vmatpush.msra.mxu0 0.0
    %1494 = vmatpush.msra.mxu0 0.0
    %1495 = vmatpush.msra.mxu0 0.0
    %1496 = vmatpush.msra.mxu0 0.0
    %1497 = vmatpush.msra.mxu0 %v1477
    %1498 = vmatmul.f32.gmra.mxu0 %v1480
    %v1499 = vpop.f32.mrf.mxu0
    %v1500 = vadd.f32 0.0, %v1499
    %1501 = vdwg.mxu0
    %1502 = vrot.lane.b32.xlu0 %v1361, 112
    %v1503 = vpop.permute.xlu0 %1502
    %1504 = vrot.lane.b32.xlu0 %v1356, 80
    %v1505 = vpop.permute.xlu0 %1504
    %v1506 = vsel %vm327, %v1503, 0
    %v1508 = vsel %vm327, %v1505, 0
    %1510 = vmatpush.xpose.msra.mxu0 0.0
    %1511 = vmatpush.xpose.msra.mxu0 0.0
    %1512 = vmatpush.xpose.msra.mxu0 0.0
    %1513 = vmatpush.xpose.msra.mxu0 0.0
    %1514 = vmatpush.xpose.msra.mxu0 0.0
    %1515 = vmatpush.xpose.msra.mxu0 0.0
    %1516 = vmatpush.xpose.msra.mxu0 0.0
    %1517 = vmatpush.xpose.msra.mxu0 0.0
    %1518 = vmatpush.xpose.msra.mxu0 0.0
    %1519 = vmatpush.xpose.msra.mxu0 0.0
    %1520 = vmatpush.xpose.msra.mxu0 0.0
    %1521 = vmatpush.xpose.msra.mxu0 0.0
    %1522 = vmatpush.xpose.msra.mxu0 0.0
    %1523 = vmatpush.xpose.msra.mxu0 0.0
    %1524 = vmatpush.xpose.msra.mxu0 0.0
    %1525 = vmatpush.xpose.msra.mxu0 %v1508
    %1526 = vmatmul.f32.gmra.mxu0 %v1506
    %v1527 = vpop.f32.mrf.mxu0
    %v1528 = vadd.f32 %v279, %v1527
    %1529 = vdwg.mxu0
    %1530 = vrot.lane.b32.xlu0 %v1362, 112
    %v1531 = vpop.permute.xlu0 %1530
    %1532 = vrot.lane.b32.xlu0 %v1359, 80
    %v1533 = vpop.permute.xlu0 %1532
    %v1534 = vsel %vm327, %v1531, 0
    %v1536 = vsel %vm327, %v1533, 0
    %1538 = vmatpush.xpose.msra.mxu0 0.0
    %1539 = vmatpush.xpose.msra.mxu0 0.0
    %1540 = vmatpush.xpose.msra.mxu0 0.0
    %1541 = vmatpush.xpose.msra.mxu0 0.0
    %1542 = vmatpush.xpose.msra.mxu0 0.0
    %1543 = vmatpush.xpose.msra.mxu0 0.0
    %1544 = vmatpush.xpose.msra.mxu0 0.0
    %1545 = vmatpush.xpose.msra.mxu0 0.0
    %1546 = vmatpush.xpose.msra.mxu0 0.0
    %1547 = vmatpush.xpose.msra.mxu0 0.0
    %1548 = vmatpush.xpose.msra.mxu0 0.0
    %1549 = vmatpush.xpose.msra.mxu0 0.0
    %1550 = vmatpush.xpose.msra.mxu0 0.0
    %1551 = vmatpush.xpose.msra.mxu0 0.0
    %1552 = vmatpush.xpose.msra.mxu0 0.0
    %1553 = vmatpush.xpose.msra.mxu0 %v1536
    %1554 = vmatmul.f32.gmra.mxu0 %v1534
    %v1555 = vpop.f32.mrf.mxu0
    %v1556 = vadd.f32 %v280, %v1555
    %1557 = vdwg.mxu0
    %v1558 = vsel %vm381, %v1528, -inf
    %1559 = vmax.xlane.f32.xlu0 %v1558
    %v1560 = vpop.xlane.xlu0 %1559
    %v1561 = vsel %vm381, %v1556, -inf
    %1562 = vmax.xlane.f32.xlu0 %v1561
    %v1563 = vpop.xlane.xlu0 %1562
    %v1564 = vsub.f32 %v1528, %v1560
    %v1565 = vsub.f32 %v1556, %v1563
    %v1566 = vmul.f32 %v1564, 1.442695
    %v1567 = vpow.pop %v1566
    %v1568 = vmul.f32 %v1565, 1.442695
    %v1569 = vpow.pop %v1568
    %v1570 = vsel %vm381, %v1567, 0.0
    %1571 = vadd.xlane.f32.xlu0 %v1570
    %v1572 = vpop.xlane.xlu0 %1571
    %v1573 = vsel %vm381, %v1569, 0.0
    %1574 = vadd.xlane.f32.xlu0 %v1573
    %v1575 = vpop.xlane.xlu0 %1574
    %v1576 = vrcp.pop %v1572
    %v1577 = vrcp.pop %v1575
    %v1578 = vmul.f32 %v1567, %v1576
    %v1579 = vmul.f32 %v1569, %v1577
    %1580 = vrot.lane.b32.xlu0 %v1356, 48
    %v1581 = vpop.permute.xlu0 %1580
    %v1584 = vsel %vm381, %v1578, 0
    %1586 = vmatpush.msra.mxu0 0.0
    %1587 = vmatpush.msra.mxu0 0.0
    %1588 = vmatpush.msra.mxu0 0.0
    %1589 = vmatpush.msra.mxu0 0.0
    %1590 = vmatpush.msra.mxu0 0.0
    %1591 = vmatpush.msra.mxu0 0.0
    %1592 = vmatpush.msra.mxu0 0.0
    %1593 = vmatpush.msra.mxu0 0.0
    %1594 = vmatpush.msra.mxu0 0.0
    %1595 = vmatpush.msra.mxu0 0.0
    %1596 = vmatpush.msra.mxu0 0.0
    %1597 = vmatpush.msra.mxu0 0.0
    %1598 = vmatpush.msra.mxu0 0.0
    %1599 = vmatpush.msra.mxu0 0.0
    %1600 = vmatpush.msra.mxu0 0.0
    %1601 = vmatpush.msra.mxu0 %v1581
    %1602 = vmatmul.f32.gmra.mxu0 %v1584
    %v1603 = vpop.f32.mrf.mxu0
    %v1604 = vadd.f32 0.0, %v1603
    %1605 = vdwg.mxu0
    %1606 = vrot.lane.b32.xlu0 %v1359, 48
    %v1607 = vpop.permute.xlu0 %1606
    %v1610 = vsel %vm381, %v1579, 0
    %1612 = vmatpush.msra.mxu0 0.0
    %1613 = vmatpush.msra.mxu0 0.0
    %1614 = vmatpush.msra.mxu0 0.0
    %1615 = vmatpush.msra.mxu0 0.0
    %1616 = vmatpush.msra.mxu0 0.0
    %1617 = vmatpush.msra.mxu0 0.0
    %1618 = vmatpush.msra.mxu0 0.0
    %1619 = vmatpush.msra.mxu0 0.0
    %1620 = vmatpush.msra.mxu0 0.0
    %1621 = vmatpush.msra.mxu0 0.0
    %1622 = vmatpush.msra.mxu0 0.0
    %1623 = vmatpush.msra.mxu0 0.0
    %1624 = vmatpush.msra.mxu0 0.0
    %1625 = vmatpush.msra.mxu0 0.0
    %1626 = vmatpush.msra.mxu0 0.0
    %1627 = vmatpush.msra.mxu0 %v1607
    %1628 = vmatmul.f32.gmra.mxu0 %v1610
    %v1629 = vpop.f32.mrf.mxu0
    %v1630 = vadd.f32 0.0, %v1629
    %1631 = vdwg.mxu0
    %v1633 = vsel %vm327, %v1604, 0
    %v1636 = vsel %vm327, %v1630, 0
    %1638 = vmatpush.msra.mxu0 0.0
    %1639 = vmatpush.msra.mxu0 0.0
    %1640 = vmatpush.msra.mxu0 0.0
    %1641 = vmatpush.msra.mxu0 0.0
    %1642 = vmatpush.msra.mxu0 0.0
    %1643 = vmatpush.msra.mxu0 0.0
    %1644 = vmatpush.msra.mxu0 0.0
    %1645 = vmatpush.msra.mxu0 0.0
    %1646 = vmatpush.msra.mxu0 0.0
    %1647 = vmatpush.msra.mxu0 0.0
    %1648 = vmatpush.msra.mxu0 0.0
    %1649 = vmatpush.msra.mxu0 0.0
    %1650 = vmatpush.msra.mxu0 0.0
    %1651 = vmatpush.msra.mxu0 0.0
    %1652 = vmatpush.msra.mxu0 %v1367
    %1653 = vmatpush.msra.mxu0 %v1366
    %1654 = vmatmul.f32.gmra.mxu0 %v1633
    %v1655 = vpop.f32.mrf.mxu0
    %v1656 = vadd.f32 0.0, %v1655
    %1657 = vmatmul.f32.gmra.mxu0 %v1636
    %v1658 = vpop.f32.mrf.mxu0
    %v1659 = vadd.f32 0.0, %v1658
    %1660 = vdwg.mxu0
    %v1662 = vsel %vm327, %v1474, 0
    %v1665 = vsel %vm327, %v1500, 0
    %1667 = vmatpush.msra.mxu0 0.0
    %1668 = vmatpush.msra.mxu0 0.0
    %1669 = vmatpush.msra.mxu0 0.0
    %1670 = vmatpush.msra.mxu0 0.0
    %1671 = vmatpush.msra.mxu0 0.0
    %1672 = vmatpush.msra.mxu0 0.0
    %1673 = vmatpush.msra.mxu0 0.0
    %1674 = vmatpush.msra.mxu0 0.0
    %1675 = vmatpush.msra.mxu0 0.0
    %1676 = vmatpush.msra.mxu0 0.0
    %1677 = vmatpush.msra.mxu0 0.0
    %1678 = vmatpush.msra.mxu0 0.0
    %1679 = vmatpush.msra.mxu0 0.0
    %1680 = vmatpush.msra.mxu0 0.0
    %1681 = vmatpush.msra.mxu0 %v1365
    %1682 = vmatpush.msra.mxu0 %v1364
    %1683 = vmatmul.f32.gmra.mxu0 %v1662
    %v1684 = vpop.f32.mrf.mxu0
    %v1685 = vadd.f32 %v1656, %v1684
    %1686 = vmatmul.f32.gmra.mxu0 %v1665
    %v1687 = vpop.f32.mrf.mxu0
    %v1688 = vadd.f32 %v1659, %v1687
    %1689 = vdwg.mxu0
    %v1690 = vadd.f32 %v1685, %v1325
    %v1691 = vadd.f32 %v1688, %v1326
    %v1692 = vsel %vm213, %v1690, 0.0
    %1693 = vadd.xlane.f32.xlu0 %v1692
    %v1694 = vpop.xlane.xlu0 %1693
    %v1695 = vsel %vm213, %v1691, 0.0
    %1696 = vadd.xlane.f32.xlu0 %v1695
    %v1697 = vpop.xlane.xlu0 %1696
    %v1698 = vmul.f32 %v1694, %v226
    %v1699 = vmul.f32 %v1697, %v226
    %v1700 = vsub.f32 %v1690, %v1698
    %v1701 = vsub.f32 %v1691, %v1699
    %v1702 = vmul.f32 %v1700, %v1700
    %v1703 = vmul.f32 %v1701, %v1701
    %v1704 = vsel %vm213, %v1702, 0.0
    %1705 = vadd.xlane.f32.xlu0 %v1704
    %v1706 = vpop.xlane.xlu0 %1705
    %v1707 = vsel %vm213, %v1703, 0.0
    %1708 = vadd.xlane.f32.xlu0 %v1707
    %v1709 = vpop.xlane.xlu0 %1708
    %v1710 = vmul.f32 %v1706, %v226
    %v1711 = vmul.f32 %v1709, %v226
    %v1712 = vadd.f32 %v1710, 1e-06
    %v1713 = vadd.f32 %v1711, 1e-06
    %v1714 = vrsqrt.pop %v1712
    %v1715 = vmul.f32 %v1714, %v1712
    %v1716 = vmul.f32 %v1715, %v1714
    %v1717 = vmul.f32 0.5, %v1716
    %v1718 = vsub.f32 1.5, %v1717
    %v1719 = vmul.f32 %v1714, %v1718
    %vm1720 = vweird.f32 %v1712
    %vm1721 = vweird.f32 %v1714
    %vm1722 = vmor %vm1720, %vm1721
    %v1723 = vsel %vm1722, %v1714, %v1719
    %v1724 = vrsqrt.pop %v1713
    %v1725 = vmul.f32 %v1724, %v1713
    %v1726 = vmul.f32 %v1725, %v1724
    %v1727 = vmul.f32 0.5, %v1726
    %v1728 = vsub.f32 1.5, %v1727
    %v1729 = vmul.f32 %v1724, %v1728
    %vm1730 = vweird.f32 %v1713
    %vm1731 = vweird.f32 %v1724
    %vm1732 = vmor %vm1730, %vm1731
    %v1733 = vsel %vm1732, %v1724, %v1729
    %v1734 = vmul.f32 %v1700, %v1723
    %v1735 = vmul.f32 %v1701, %v1733
    %v1737 = vperm.slane %v1369, 0
    %v1739 = vmul.f32 %v1734, %v1737
    %v1740 = vmul.f32 %v1735, %v1737
    %v1742 = vperm.slane %v1371, 0
    %v1744 = vadd.f32 %v1739, %v1742
    %v1745 = vadd.f32 %v1740, %v1742
    %s1746 = scalar_lea.vmem %s11, 32
    %v1747 = vld [vmem:[%s1746] sm:$0xff]
    %v1748 = vld [vmem:[%s1746 + $0x8] sm:$0xff]
    %v1749 = vld [vmem:[%s1746 + $0x10] sm:$0xff]
    %v1750 = vld [vmem:[%s1746 + $0x18] sm:$0xff]
    %v1752 = vsel %vm213, %v1744, 0
    %v1755 = vsel %vm213, %v1745, 0
    %1757 = vmatpush.msra.mxu0 0.0
    %1758 = vmatpush.msra.mxu0 0.0
    %1759 = vmatpush.msra.mxu0 0.0
    %1760 = vmatpush.msra.mxu0 0.0
    %1761 = vmatpush.msra.mxu0 0.0
    %1762 = vmatpush.msra.mxu0 0.0
    %1763 = vmatpush.msra.mxu0 0.0
    %1764 = vmatpush.msra.mxu0 0.0
    %1765 = vmatpush.msra.mxu0 0.0
    %1766 = vmatpush.msra.mxu0 0.0
    %1767 = vmatpush.msra.mxu0 0.0
    %1768 = vmatpush.msra.mxu0 0.0
    %1769 = vmatpush.msra.mxu0 %v1750
    %1770 = vmatpush.msra.mxu0 %v1749
    %1771 = vmatpush.msra.mxu0 %v1748
    %1772 = vmatpush.msra.mxu0 %v1747
    %1773 = vmatmul.f32.gmra.mxu0 %v1752
    %v1774 = vpop.f32.mrf.mxu0
    %v1775 = vadd.f32 0.0, %v1774
    %1776 = vmatmul.f32.gmra.mxu0 %v1755
    %v1777 = vpop.f32.mrf.mxu0
    %v1778 = vadd.f32 0.0, %v1777
    %1779 = vdwg.mxu0
    %v1780 = vmul.f32 %v1775, 0.25
    %v1781 = vmul.f32 %v1778, 0.25
    %s1782 = scalar_lea.vmem [#allocation13], 32
    %v1783 = vld [vmem:[%s1782] sm:$0xff]
    %v1784 = vld [vmem:[%s1782 + $0x8] sm:$0xff]
    %v1785 = vld [vmem:[%s1782 + $0x10] sm:$0xff]
    %v1786 = vld [vmem:[%s1782 + $0x18] sm:$0xff]
    %1787 = vmatpush.msra.mxu0 0.0
    %1788 = vmatpush.msra.mxu0 0.0
    %1789 = vmatpush.msra.mxu0 0.0
    %1790 = vmatpush.msra.mxu0 0.0
    %1791 = vmatpush.msra.mxu0 0.0
    %1792 = vmatpush.msra.mxu0 0.0
    %1793 = vmatpush.msra.mxu0 0.0
    %1794 = vmatpush.msra.mxu0 0.0
    %1795 = vmatpush.msra.mxu0 0.0
    %1796 = vmatpush.msra.mxu0 0.0
    %1797 = vmatpush.msra.mxu0 0.0
    %1798 = vmatpush.msra.mxu0 0.0
    %1799 = vmatpush.msra.mxu0 %v1786
    %1800 = vmatpush.msra.mxu0 %v1785
    %1801 = vmatpush.msra.mxu0 %v1784
    %1802 = vmatpush.msra.mxu0 %v1783
    %1803 = vmatmul.f32.gmra.mxu0 %v740
    %v1804 = vpop.f32.mrf.mxu0
    %v1805 = vadd.f32 0.0, %v1804
    %1806 = vmatmul.f32.gmra.mxu0 %v743
    %v1807 = vpop.f32.mrf.mxu0
    %v1808 = vadd.f32 0.0, %v1807
    %1809 = vmatmul.f32.gmra.mxu0 %v746
    %v1810 = vpop.f32.mrf.mxu0
    %v1811 = vadd.f32 0.0, %v1810
    %1812 = vmatmul.f32.gmra.mxu0 %v749
    %v1813 = vpop.f32.mrf.mxu0
    %v1814 = vadd.f32 0.0, %v1813
    %1815 = vdwg.mxu0
    %s1816 = scalar_lea.vmem [#allocation14], 32
    %v1817 = vld [vmem:[%s1816] sm:$0xff]
    %v1818 = vld [vmem:[%s1816 + $0x8] sm:$0xff]
    %v1819 = vld [vmem:[%s1816 + $0x10] sm:$0xff]
    %v1820 = vld [vmem:[%s1816 + $0x18] sm:$0xff]
    %s1821 = scalar_lea.vmem %s14, 1
    %v1822 = vld [vmem:[%s1821] sm:$0x1]
    %s1823 = scalar_lea.vmem %s15, 1
    %v1824 = vld [vmem:[%s1823] sm:$0x1]
    %v1826 = vsel %vm327, %v1780, 0
    %v1829 = vsel %vm327, %v1805, 0
    %v1832 = vsel %vm327, %v1808, 0
    %1834 = vmatpush.xpose.msra.mxu0 0.0
    %1835 = vmatpush.xpose.msra.mxu0 0.0
    %1836 = vmatpush.xpose.msra.mxu0 0.0
    %1837 = vmatpush.xpose.msra.mxu0 0.0
    %1838 = vmatpush.xpose.msra.mxu0 0.0
    %1839 = vmatpush.xpose.msra.mxu0 0.0
    %1840 = vmatpush.xpose.msra.mxu0 0.0
    %1841 = vmatpush.xpose.msra.mxu0 0.0
    %1842 = vmatpush.xpose.msra.mxu0 0.0
    %1843 = vmatpush.xpose.msra.mxu0 0.0
    %1844 = vmatpush.xpose.msra.mxu0 0.0
    %1845 = vmatpush.xpose.msra.mxu0 0.0
    %1846 = vmatpush.xpose.msra.mxu0 0.0
    %1847 = vmatpush.xpose.msra.mxu0 0.0
    %1848 = vmatpush.xpose.msra.mxu0 %v1832
    %1849 = vmatpush.xpose.msra.mxu0 %v1829
    %1850 = vmatmul.f32.gmra.mxu0 %v1826
    %v1851 = vpop.f32.mrf.mxu0
    %v1852 = vadd.f32 %v788, %v1851
    %1853 = vdwg.mxu0
    %v1855 = vsel %vm327, %v1781, 0
    %v1858 = vsel %vm327, %v1811, 0
    %v1861 = vsel %vm327, %v1814, 0
    %1863 = vmatpush.xpose.msra.mxu0 0.0
    %1864 = vmatpush.xpose.msra.mxu0 0.0
    %1865 = vmatpush.xpose.msra.mxu0 0.0
    %1866 = vmatpush.xpose.msra.mxu0 0.0
    %1867 = vmatpush.xpose.msra.mxu0 0.0
    %1868 = vmatpush.xpose.msra.mxu0 0.0
    %1869 = vmatpush.xpose.msra.mxu0 0.0
    %1870 = vmatpush.xpose.msra.mxu0 0.0
    %1871 = vmatpush.xpose.msra.mxu0 0.0
    %1872 = vmatpush.xpose.msra.mxu0 0.0
    %1873 = vmatpush.xpose.msra.mxu0 0.0
    %1874 = vmatpush.xpose.msra.mxu0 0.0
    %1875 = vmatpush.xpose.msra.mxu0 0.0
    %1876 = vmatpush.xpose.msra.mxu0 0.0
    %1877 = vmatpush.xpose.msra.mxu0 %v1861
    %1878 = vmatpush.xpose.msra.mxu0 %v1858
    %1879 = vmatmul.f32.gmra.mxu0 %v1855
    %v1880 = vpop.f32.mrf.mxu0
    %v1881 = vadd.f32 %v789, %v1880
    %1882 = vdwg.mxu0
    %v1883 = vsel %vm327, %v1852, -inf
    %1884 = vmax.xlane.f32.xlu0 %v1883
    %v1885 = vpop.xlane.xlu0 %1884
    %v1886 = vsel %vm327, %v1881, -inf
    %1887 = vmax.xlane.f32.xlu0 %v1886
    %v1888 = vpop.xlane.xlu0 %1887
    %v1889 = vsub.f32 %v1852, %v1885
    %v1890 = vsub.f32 %v1881, %v1888
    %v1891 = vmul.f32 %v1889, 1.442695
    %v1892 = vpow.pop %v1891
    %v1893 = vmul.f32 %v1890, 1.442695
    %v1894 = vpow.pop %v1893
    %v1895 = vsel %vm327, %v1892, 0.0
    %1896 = vadd.xlane.f32.xlu0 %v1895
    %v1897 = vpop.xlane.xlu0 %1896
    %v1898 = vsel %vm327, %v1894, 0.0
    %1899 = vadd.xlane.f32.xlu0 %v1898
    %v1900 = vpop.xlane.xlu0 %1899
    %v1901 = vrcp.pop %v1897
    %v1902 = vrcp.pop %v1900
    %v1903 = vmul.f32 %v1892, %v1901
    %v1904 = vmul.f32 %v1894, %v1902
    %1905 = vrot.lane.b32.xlu0 %v1805, 96
    %v1906 = vpop.permute.xlu0 %1905
    %1907 = vrot.lane.b32.xlu0 %v1808, 96
    %v1908 = vpop.permute.xlu0 %1907
    %v1912 = vsel %vm327, %v1903, 0
    %1914 = vmatpush.msra.mxu0 0.0
    %1915 = vmatpush.msra.mxu0 0.0
    %1916 = vmatpush.msra.mxu0 0.0
    %1917 = vmatpush.msra.mxu0 0.0
    %1918 = vmatpush.msra.mxu0 0.0
    %1919 = vmatpush.msra.mxu0 0.0
    %1920 = vmatpush.msra.mxu0 0.0
    %1921 = vmatpush.msra.mxu0 0.0
    %1922 = vmatpush.msra.mxu0 0.0
    %1923 = vmatpush.msra.mxu0 0.0
    %1924 = vmatpush.msra.mxu0 0.0
    %1925 = vmatpush.msra.mxu0 0.0
    %1926 = vmatpush.msra.mxu0 0.0
    %1927 = vmatpush.msra.mxu0 0.0
    %1928 = vmatpush.msra.mxu0 %v1908
    %1929 = vmatpush.msra.mxu0 %v1906
    %1930 = vmatmul.f32.gmra.mxu0 %v1912
    %v1931 = vpop.f32.mrf.mxu0
    %v1932 = vadd.f32 0.0, %v1931
    %1933 = vdwg.mxu0
    %1934 = vrot.lane.b32.xlu0 %v1811, 96
    %v1935 = vpop.permute.xlu0 %1934
    %1936 = vrot.lane.b32.xlu0 %v1814, 96
    %v1937 = vpop.permute.xlu0 %1936
    %v1941 = vsel %vm327, %v1904, 0
    %1943 = vmatpush.msra.mxu0 0.0
    %1944 = vmatpush.msra.mxu0 0.0
    %1945 = vmatpush.msra.mxu0 0.0
    %1946 = vmatpush.msra.mxu0 0.0
    %1947 = vmatpush.msra.mxu0 0.0
    %1948 = vmatpush.msra.mxu0 0.0
    %1949 = vmatpush.msra.mxu0 0.0
    %1950 = vmatpush.msra.mxu0 0.0
    %1951 = vmatpush.msra.mxu0 0.0
    %1952 = vmatpush.msra.mxu0 0.0
    %1953 = vmatpush.msra.mxu0 0.0
    %1954 = vmatpush.msra.mxu0 0.0
    %1955 = vmatpush.msra.mxu0 0.0
    %1956 = vmatpush.msra.mxu0 0.0
    %1957 = vmatpush.msra.mxu0 %v1937
    %1958 = vmatpush.msra.mxu0 %v1935
    %1959 = vmatmul.f32.gmra.mxu0 %v1941
    %v1960 = vpop.f32.mrf.mxu0
    %v1961 = vadd.f32 0.0, %v1960
    %1962 = vdwg.mxu0
    %1963 = vrot.lane.b32.xlu0 %v1780, 112
    %v1964 = vpop.permute.xlu0 %1963
    %1965 = vrot.lane.b32.xlu0 %v1805, 112
    %v1966 = vpop.permute.xlu0 %1965
    %1967 = vrot.lane.b32.xlu0 %v1808, 112
    %v1968 = vpop.permute.xlu0 %1967
    %v1969 = vsel %vm327, %v1964, 0
    %v1971 = vsel %vm327, %v1966, 0
    %v1973 = vsel %vm327, %v1968, 0
    %1975 = vmatpush.xpose.msra.mxu0 0.0
    %1976 = vmatpush.xpose.msra.mxu0 0.0
    %1977 = vmatpush.xpose.msra.mxu0 0.0
    %1978 = vmatpush.xpose.msra.mxu0 0.0
    %1979 = vmatpush.xpose.msra.mxu0 0.0
    %1980 = vmatpush.xpose.msra.mxu0 0.0
    %1981 = vmatpush.xpose.msra.mxu0 0.0
    %1982 = vmatpush.xpose.msra.mxu0 0.0
    %1983 = vmatpush.xpose.msra.mxu0 0.0
    %1984 = vmatpush.xpose.msra.mxu0 0.0
    %1985 = vmatpush.xpose.msra.mxu0 0.0
    %1986 = vmatpush.xpose.msra.mxu0 0.0
    %1987 = vmatpush.xpose.msra.mxu0 0.0
    %1988 = vmatpush.xpose.msra.mxu0 0.0
    %1989 = vmatpush.xpose.msra.mxu0 %v1973
    %1990 = vmatpush.xpose.msra.mxu0 %v1971
    %1991 = vmatmul.f32.gmra.mxu0 %v1969
    %v1992 = vpop.f32.mrf.mxu0
    %v1993 = vadd.f32 %v788, %v1992
    %1994 = vdwg.mxu0
    %1995 = vrot.lane.b32.xlu0 %v1781, 112
    %v1996 = vpop.permute.xlu0 %1995
    %1997 = vrot.lane.b32.xlu0 %v1811, 112
    %v1998 = vpop.permute.xlu0 %1997
    %1999 = vrot.lane.b32.xlu0 %v1814, 112
    %v2000 = vpop.permute.xlu0 %1999
    %v2001 = vsel %vm327, %v1996, 0
    %v2003 = vsel %vm327, %v1998, 0
    %v2005 = vsel %vm327, %v2000, 0
    %2007 = vmatpush.xpose.msra.mxu0 0.0
    %2008 = vmatpush.xpose.msra.mxu0 0.0
    %2009 = vmatpush.xpose.msra.mxu0 0.0
    %2010 = vmatpush.xpose.msra.mxu0 0.0
    %2011 = vmatpush.xpose.msra.mxu0 0.0
    %2012 = vmatpush.xpose.msra.mxu0 0.0
    %2013 = vmatpush.xpose.msra.mxu0 0.0
    %2014 = vmatpush.xpose.msra.mxu0 0.0
    %2015 = vmatpush.xpose.msra.mxu0 0.0
    %2016 = vmatpush.xpose.msra.mxu0 0.0
    %2017 = vmatpush.xpose.msra.mxu0 0.0
    %2018 = vmatpush.xpose.msra.mxu0 0.0
    %2019 = vmatpush.xpose.msra.mxu0 0.0
    %2020 = vmatpush.xpose.msra.mxu0 0.0
    %2021 = vmatpush.xpose.msra.mxu0 %v2005
    %2022 = vmatpush.xpose.msra.mxu0 %v2003
    %2023 = vmatmul.f32.gmra.mxu0 %v2001
    %v2024 = vpop.f32.mrf.mxu0
    %v2025 = vadd.f32 %v789, %v2024
    %2026 = vdwg.mxu0
    %v2027 = vsel %vm327, %v1993, -inf
    %2028 = vmax.xlane.f32.xlu0 %v2027
    %v2029 = vpop.xlane.xlu0 %2028
    %v2030 = vsel %vm327, %v2025, -inf
    %2031 = vmax.xlane.f32.xlu0 %v2030
    %v2032 = vpop.xlane.xlu0 %2031
    %v2033 = vsub.f32 %v1993, %v2029
    %v2034 = vsub.f32 %v2025, %v2032
    %v2035 = vmul.f32 %v2033, 1.442695
    %v2036 = vpow.pop %v2035
    %v2037 = vmul.f32 %v2034, 1.442695
    %v2038 = vpow.pop %v2037
    %v2039 = vsel %vm327, %v2036, 0.0
    %2040 = vadd.xlane.f32.xlu0 %v2039
    %v2041 = vpop.xlane.xlu0 %2040
    %v2042 = vsel %vm327, %v2038, 0.0
    %2043 = vadd.xlane.f32.xlu0 %v2042
    %v2044 = vpop.xlane.xlu0 %2043
    %v2045 = vrcp.pop %v2041
    %v2046 = vrcp.pop %v2044
    %v2047 = vmul.f32 %v2036, %v2045
    %v2048 = vmul.f32 %v2038, %v2046
    %2049 = vrot.lane.b32.xlu0 %v1805, 80
    %v2050 = vpop.permute.xlu0 %2049
    %2051 = vrot.lane.b32.xlu0 %v1808, 80
    %v2052 = vpop.permute.xlu0 %2051
    %v2056 = vsel %vm327, %v2047, 0
    %2058 = vmatpush.msra.mxu0 0.0
    %2059 = vmatpush.msra.mxu0 0.0
    %2060 = vmatpush.msra.mxu0 0.0
    %2061 = vmatpush.msra.mxu0 0.0
    %2062 = vmatpush.msra.mxu0 0.0
    %2063 = vmatpush.msra.mxu0 0.0
    %2064 = vmatpush.msra.mxu0 0.0
    %2065 = vmatpush.msra.mxu0 0.0
    %2066 = vmatpush.msra.mxu0 0.0
    %2067 = vmatpush.msra.mxu0 0.0
    %2068 = vmatpush.msra.mxu0 0.0
    %2069 = vmatpush.msra.mxu0 0.0
    %2070 = vmatpush.msra.mxu0 0.0
    %2071 = vmatpush.msra.mxu0 0.0
    %2072 = vmatpush.msra.mxu0 %v2052
    %2073 = vmatpush.msra.mxu0 %v2050
    %2074 = vmatmul.f32.gmra.mxu0 %v2056
    %v2075 = vpop.f32.mrf.mxu0
    %v2076 = vadd.f32 0.0, %v2075
    %2077 = vdwg.mxu0
    %2078 = vrot.lane.b32.xlu0 %v1811, 80
    %v2079 = vpop.permute.xlu0 %2078
    %2080 = vrot.lane.b32.xlu0 %v1814, 80
    %v2081 = vpop.permute.xlu0 %2080
    %v2085 = vsel %vm327, %v2048, 0
    %2087 = vmatpush.msra.mxu0 0.0
    %2088 = vmatpush.msra.mxu0 0.0
    %2089 = vmatpush.msra.mxu0 0.0
    %2090 = vmatpush.msra.mxu0 0.0
    %2091 = vmatpush.msra.mxu0 0.0
    %2092 = vmatpush.msra.mxu0 0.0
    %2093 = vmatpush.msra.mxu0 0.0
    %2094 = vmatpush.msra.mxu0 0.0
    %2095 = vmatpush.msra.mxu0 0.0
    %2096 = vmatpush.msra.mxu0 0.0
    %2097 = vmatpush.msra.mxu0 0.0
    %2098 = vmatpush.msra.mxu0 0.0
    %2099 = vmatpush.msra.mxu0 0.0
    %2100 = vmatpush.msra.mxu0 0.0
    %2101 = vmatpush.msra.mxu0 %v2081
    %2102 = vmatpush.msra.mxu0 %v2079
    %2103 = vmatmul.f32.gmra.mxu0 %v2085
    %v2104 = vpop.f32.mrf.mxu0
    %v2105 = vadd.f32 0.0, %v2104
    %2106 = vdwg.mxu0
    %v2108 = vsel %vm327, %v2076, 0
    %v2111 = vsel %vm327, %v2105, 0
    %2113 = vmatpush.msra.mxu0 0.0
    %2114 = vmatpush.msra.mxu0 0.0
    %2115 = vmatpush.msra.mxu0 0.0
    %2116 = vmatpush.msra.mxu0 0.0
    %2117 = vmatpush.msra.mxu0 0.0
    %2118 = vmatpush.msra.mxu0 0.0
    %2119 = vmatpush.msra.mxu0 0.0
    %2120 = vmatpush.msra.mxu0 0.0
    %2121 = vmatpush.msra.mxu0 0.0
    %2122 = vmatpush.msra.mxu0 0.0
    %2123 = vmatpush.msra.mxu0 0.0
    %2124 = vmatpush.msra.mxu0 0.0
    %2125 = vmatpush.msra.mxu0 0.0
    %2126 = vmatpush.msra.mxu0 0.0
    %2127 = vmatpush.msra.mxu0 %v1820
    %2128 = vmatpush.msra.mxu0 %v1819
    %2129 = vmatmul.f32.gmra.mxu0 %v2108
    %v2130 = vpop.f32.mrf.mxu0
    %v2131 = vadd.f32 0.0, %v2130
    %2132 = vmatmul.f32.gmra.mxu0 %v2111
    %v2133 = vpop.f32.mrf.mxu0
    %v2134 = vadd.f32 0.0, %v2133
    %2135 = vdwg.mxu0
    %v2137 = vsel %vm327, %v1932, 0
    %v2140 = vsel %vm327, %v1961, 0
    %2142 = vmatpush.msra.mxu0 0.0
    %2143 = vmatpush.msra.mxu0 0.0
    %2144 = vmatpush.msra.mxu0 0.0
    %2145 = vmatpush.msra.mxu0 0.0
    %2146 = vmatpush.msra.mxu0 0.0
    %2147 = vmatpush.msra.mxu0 0.0
    %2148 = vmatpush.msra.mxu0 0.0
    %2149 = vmatpush.msra.mxu0 0.0
    %2150 = vmatpush.msra.mxu0 0.0
    %2151 = vmatpush.msra.mxu0 0.0
    %2152 = vmatpush.msra.mxu0 0.0
    %2153 = vmatpush.msra.mxu0 0.0
    %2154 = vmatpush.msra.mxu0 0.0
    %2155 = vmatpush.msra.mxu0 0.0
    %2156 = vmatpush.msra.mxu0 %v1818
    %2157 = vmatpush.msra.mxu0 %v1817
    %2158 = vmatmul.f32.gmra.mxu0 %v2137
    %v2159 = vpop.f32.mrf.mxu0
    %v2160 = vadd.f32 %v2131, %v2159
    %2161 = vmatmul.f32.gmra.mxu0 %v2140
    %v2162 = vpop.f32.mrf.mxu0
    %v2163 = vadd.f32 %v2134, %v2162
    %2164 = vdwg.mxu0
    %v2165 = vadd.f32 %v2160, %v1744
    %v2166 = vadd.f32 %v2163, %v1745
    %v2167 = vsel %vm213, %v2165, 0.0
    %2168 = vadd.xlane.f32.xlu0 %v2167
    %v2169 = vpop.xlane.xlu0 %2168
    %v2170 = vsel %vm213, %v2166, 0.0
    %2171 = vadd.xlane.f32.xlu0 %v2170
    %v2172 = vpop.xlane.xlu0 %2171
    %v2173 = vmul.f32 %v2169, %v226
    %v2174 = vmul.f32 %v2172, %v226
    %v2175 = vsub.f32 %v2165, %v2173
    %v2176 = vsub.f32 %v2166, %v2174
    %v2177 = vmul.f32 %v2175, %v2175
    %v2178 = vmul.f32 %v2176, %v2176
    %v2179 = vsel %vm213, %v2177, 0.0
    %2180 = vadd.xlane.f32.xlu0 %v2179
    %v2181 = vpop.xlane.xlu0 %2180
    %v2182 = vsel %vm213, %v2178, 0.0
    %2183 = vadd.xlane.f32.xlu0 %v2182
    %v2184 = vpop.xlane.xlu0 %2183
    %v2185 = vmul.f32 %v2181, %v226
    %v2186 = vmul.f32 %v2184, %v226
    %v2187 = vadd.f32 %v2185, 1e-06
    %v2188 = vadd.f32 %v2186, 1e-06
    %v2189 = vrsqrt.pop %v2187
    %v2190 = vmul.f32 %v2189, %v2187
    %v2191 = vmul.f32 %v2190, %v2189
    %v2192 = vmul.f32 0.5, %v2191
    %v2193 = vsub.f32 1.5, %v2192
    %v2194 = vmul.f32 %v2189, %v2193
    %vm2195 = vweird.f32 %v2187
    %vm2196 = vweird.f32 %v2189
    %vm2197 = vmor %vm2195, %vm2196
    %v2198 = vsel %vm2197, %v2189, %v2194
    %v2199 = vrsqrt.pop %v2188
    %v2200 = vmul.f32 %v2199, %v2188
    %v2201 = vmul.f32 %v2200, %v2199
    %v2202 = vmul.f32 0.5, %v2201
    %v2203 = vsub.f32 1.5, %v2202
    %v2204 = vmul.f32 %v2199, %v2203
    %vm2205 = vweird.f32 %v2188
    %vm2206 = vweird.f32 %v2199
    %vm2207 = vmor %vm2205, %vm2206
    %v2208 = vsel %vm2207, %v2199, %v2204
    %v2209 = vmul.f32 %v2175, %v2198
    %v2210 = vmul.f32 %v2176, %v2208
    %v2212 = vperm.slane %v1822, 0
    %v2214 = vmul.f32 %v2209, %v2212
    %v2215 = vmul.f32 %v2210, %v2212
    %v2217 = vperm.slane %v1824, 0
    %v2219 = vadd.f32 %v2214, %v2217
    %v2220 = vadd.f32 %v2215, %v2217
    %s2221 = scalar_lea.vmem [#allocation16], 32
    %v2222 = vld [vmem:[%s2221] sm:$0xff]
    %v2223 = vld [vmem:[%s2221 + $0x8] sm:$0xff]
    %v2224 = vld [vmem:[%s2221 + $0x10] sm:$0xff]
    %v2225 = vld [vmem:[%s2221 + $0x18] sm:$0xff]
    %s2226 = scalar_lea.vmem %s17, 1
    %v2227 = vld [vmem:[%s2226] sm:$0x1]
    %v2229 = vperm.slane %v2227, 0
    %v2232 = vsel %vm213, %v2219, 0
    %v2235 = vsel %vm213, %v2220, 0
    %2237 = vmatpush.msra.mxu0 0.0
    %2238 = vmatpush.msra.mxu0 0.0
    %2239 = vmatpush.msra.mxu0 0.0
    %2240 = vmatpush.msra.mxu0 0.0
    %2241 = vmatpush.msra.mxu0 0.0
    %2242 = vmatpush.msra.mxu0 0.0
    %2243 = vmatpush.msra.mxu0 0.0
    %2244 = vmatpush.msra.mxu0 0.0
    %2245 = vmatpush.msra.mxu0 0.0
    %2246 = vmatpush.msra.mxu0 0.0
    %2247 = vmatpush.msra.mxu0 0.0
    %2248 = vmatpush.msra.mxu0 0.0
    %2249 = vmatpush.msra.mxu0 %v2225
    %2250 = vmatpush.msra.mxu0 %v2224
    %2251 = vmatpush.msra.mxu0 %v2223
    %2252 = vmatpush.msra.mxu0 %v2222
    %2253 = vmatmul.f32.gmra.mxu0 %v2232
    %v2254 = vpop.f32.mrf.mxu0
    %v2255 = vadd.f32 %v2229, %v2254
    %2256 = vmatmul.f32.gmra.mxu0 %v2235
    %v2257 = vpop.f32.mrf.mxu0
    %v2258 = vadd.f32 %v2229, %v2257
    %2259 = vdwg.mxu0
    %v2260 = vmax.f32 %v2255, 0.0
    %v2261 = vmax.f32 %v2258, 0.0
    %s2262 = scalar_lea.vmem %s18, 64
    %v2263 = vld [vmem:[%s2262] sm:$0xff]
    %v2264 = vld [vmem:[%s2262 + $0x8] sm:$0xff]
    %v2265 = vld [vmem:[%s2262 + $0x10] sm:$0xff]
    %v2266 = vld [vmem:[%s2262 + $0x18] sm:$0xff]
    %v2267 = vld [vmem:[%s2262 + $0x20] sm:$0xff]
    %v2268 = vld [vmem:[%s2262 + $0x28] sm:$0xff]
    %v2269 = vld [vmem:[%s2262 + $0x30] sm:$0xff]
    %v2270 = vld [vmem:[%s2262 + $0x38] sm:$0xff]
    %s2271 = scalar_lea.vmem %s19, 1
    %v2272 = vld [vmem:[%s2271] sm:$0x1]
    %v2274 = vperm.slane %v2272, 0
    %v2277 = vsel %vm1239, %v2260, 0
    %v2280 = vsel %vm1239, %v2261, 0
    %2282 = vmatpush.msra.mxu0 0.0
    %2283 = vmatpush.msra.mxu0 0.0
    %2284 = vmatpush.msra.mxu0 0.0
    %2285 = vmatpush.msra.mxu0 0.0
    %2286 = vmatpush.msra.mxu0 0.0
    %2287 = vmatpush.msra.mxu0 0.0
    %2288 = vmatpush.msra.mxu0 0.0
    %2289 = vmatpush.msra.mxu0 0.0
    %2290 = vmatpush.msra.mxu0 %v2270
    %2291 = vmatpush.msra.mxu0 %v2269
    %2292 = vmatpush.msra.mxu0 %v2268
    %2293 = vmatpush.msra.mxu0 %v2267
    %2294 = vmatpush.msra.mxu0 %v2266
    %2295 = vmatpush.msra.mxu0 %v2265
    %2296 = vmatpush.msra.mxu0 %v2264
    %2297 = vmatpush.msra.mxu0 %v2263
    %2298 = vmatmul.f32.gmra.mxu0 %v2277
    %v2299 = vpop.f32.mrf.mxu0
    %v2300 = vadd.f32 %v2274, %v2299
    %2301 = vmatmul.f32.gmra.mxu0 %v2280
    %v2302 = vpop.f32.mrf.mxu0
    %v2303 = vadd.f32 %v2274, %v2302
    %2304 = vdwg.mxu0
    %v2305 = vadd.f32 %v2300, %v2219
    %v2306 = vadd.f32 %v2303, %v2220
    %s2307 = scalar_lea.vmem %s20, 1
    %v2308 = vld [vmem:[%s2307] sm:$0x1]
    %s2309 = scalar_lea.vmem %s21, 1
    %v2310 = vld [vmem:[%s2309] sm:$0x1]
    %v2311 = vsel %vm213, %v2305, 0.0
    %2312 = vadd.xlane.f32.xlu0 %v2311
    %v2313 = vpop.xlane.xlu0 %2312
    %v2314 = vsel %vm213, %v2306, 0.0
    %2315 = vadd.xlane.f32.xlu0 %v2314
    %v2316 = vpop.xlane.xlu0 %2315
    %v2317 = vmul.f32 %v2313, %v226
    %v2318 = vmul.f32 %v2316, %v226
    %v2319 = vsub.f32 %v2305, %v2317
    %v2320 = vsub.f32 %v2306, %v2318
    %v2321 = vmul.f32 %v2319, %v2319
    %v2322 = vmul.f32 %v2320, %v2320
    %v2323 = vsel %vm213, %v2321, 0.0
    %2324 = vadd.xlane.f32.xlu0 %v2323
    %v2325 = vpop.xlane.xlu0 %2324
    %v2326 = vsel %vm213, %v2322, 0.0
    %2327 = vadd.xlane.f32.xlu0 %v2326
    %v2328 = vpop.xlane.xlu0 %2327
    %v2329 = vmul.f32 %v2325, %v226
    %v2330 = vmul.f32 %v2328, %v226
    %v2331 = vadd.f32 %v2329, 1e-06
    %v2332 = vadd.f32 %v2330, 1e-06
    %v2333 = vrsqrt.pop %v2331
    %v2334 = vmul.f32 %v2333, %v2331
    %v2335 = vmul.f32 %v2334, %v2333
    %v2336 = vmul.f32 0.5, %v2335
    %v2337 = vsub.f32 1.5, %v2336
    %v2338 = vmul.f32 %v2333, %v2337
    %vm2339 = vweird.f32 %v2331
    %vm2340 = vweird.f32 %v2333
    %vm2341 = vmor %vm2339, %vm2340
    %v2342 = vsel %vm2341, %v2333, %v2338
    %v2343 = vrsqrt.pop %v2332
    %v2344 = vmul.f32 %v2343, %v2332
    %v2345 = vmul.f32 %v2344, %v2343
    %v2346 = vmul.f32 0.5, %v2345
    %v2347 = vsub.f32 1.5, %v2346
    %v2348 = vmul.f32 %v2343, %v2347
    %vm2349 = vweird.f32 %v2332
    %vm2350 = vweird.f32 %v2343
    %vm2351 = vmor %vm2349, %vm2350
    %v2352 = vsel %vm2351, %v2343, %v2348
    %v2353 = vmul.f32 %v2319, %v2342
    %v2354 = vmul.f32 %v2320, %v2352
    %v2356 = vperm.slane %v2308, 0
    %v2358 = vmul.f32 %v2353, %v2356
    %v2359 = vmul.f32 %v2354, %v2356
    %v2361 = vperm.slane %v2310, 0
    %v2363 = vadd.f32 %v2358, %v2361
    %v2364 = vadd.f32 %v2359, %v2361
    %2365 = vst.msk [vmem:[#allocation17] sm:$0xff] %vm213, %v2363
    %2366 = vst.msk [vmem:[#allocation17 + $0x8] sm:$0xff] %vm213, %v2364
    // Predicated region
    $region126: #{tpu_custom_call.1} parent=1 // pred_check
      _
    $region127: #{tpu_custom_call.1} parent=1 // pred_check_branch
      %2368 = sbr.rel (0) target = $region129
    $region128: #{tpu_custom_call.1} parent=1 // pred_region
      %2370 = vsyncadd [#allocation4], 0
      %s2371 = sshll.u32 [#allocation17], 4
      %s2372 = int_to_ptr.vmem [resolvable:$true] %s2371
      %s2373 = sshll.u32 %s22, 4
      %s2374 = int_to_ptr.hbm [resolvable:$true] %s2373
      %2379 = dma.vmem_to_hbm [thread:$0]  %s2372, 256, %s2374, [#allocation4], 128, 128, 8
    $region129: #{tpu_custom_call.1} parent=1 // pred_fallthru
      _
    // Predicated region
    $region130: #{tpu_custom_call.1} parent=1 // pred_check
      _
    $region131: #{tpu_custom_call.1} parent=1 // pred_check_branch
      %2381 = sbr.rel (0) target = $region133
    $region132: #{tpu_custom_call.1} parent=1 // pred_region
      %2383 = dma.done [#allocation4], 256
    $region133: #{tpu_custom_call.1} parent=1 // pred_fallthru
      _
    %2384 = vsyncpa [#allocation3], 1
    %2385 = vsyncpa [#allocation6], 1
    %2386 = vsyncpa [#allocation9], 1
    %2387 = vsyncpa [#allocation12], 1
    %2388 = vsyncpa [#allocation15], 1
    %2389 = vsyncpa [#allocation4], 1

</llo_original>
